<compile_context>
chip_gen: v7x
topology: tpu7x:2x2x1
jax: 0.10.0
libtpu: 0.0.40
codegen_flags: <defaults>
</compile_context>

<pallas_src>
import jax
import jax.numpy as jnp
import numpy as np
from jax import lax
from jax.experimental import pallas as pl
from jax.experimental.pallas import tpu as pltpu

BN_EPS = 1e-5            # PyTorch BatchNorm2d default
BT = 8                   # images per grid step (batch blocking)
CIN_PAD = 4              # input channels padded 3 -> 4 (lane-dense layout)
USE_BF16_WEIGHTS = False  # opt-in: ~2-3x MXU throughput, needs tol ~1e-2


# ----------------------------------------------------------------------------
# Pallas kernel: whole DQN forward for BT images per grid step
# ----------------------------------------------------------------------------
def _layer(act, rs_ref, m_ref, shift_ref, *, relu):
    """relu?( sum_t slice_t(RS_all @ act) @ M_t + shift ).

    act       : (BT*Hin, Win*Cin) value, batch stacked along rows
    rs_ref    : (n_taps*BT*Hout, BT*Hin)  0/1 block-diagonal row selection
    m_ref     : (n_taps, Win*Cin, Wout*Cout) folded conv+BN weights
    shift_ref : (1, Wout*Cout) folded conv-bias + BN shift
    """
    n_taps = m_ref.shape[0]
    w_dtype = m_ref.dtype
    # Single selection matmul per layer (0/1 matrix, block-diagonal per image).
    sel_all = jnp.dot(rs_ref[...], act.astype(rs_ref.dtype),
                      preferred_element_type=jnp.float32)
    r = sel_all.shape[0] // n_taps
    parts = []
    for t in range(n_taps):
        sel_t = sel_all[t * r:(t + 1) * r, :].astype(w_dtype)  # static, 8-aligned
        parts.append(jnp.dot(sel_t, m_ref[t],
                             preferred_element_type=jnp.float32))
    if n_taps == 1:
        y = parts[0] + shift_ref[...]
    else:
        # Two independent partial sums -> MXU pops overlap with VPU adds.
        acc_a = parts[0]
        acc_b = parts[1] + shift_ref[...]
        for t in range(2, n_taps):
            if t % 2 == 0:
                acc_a = acc_a + parts[t]
            else:
                acc_b = acc_b + parts[t]
        y = acc_a + acc_b
    return jnp.maximum(y, 0.0) if relu else y


def _dqn_kernel(x_ref,
                rs1, m1, s1, rs2, m2, s2, rs3, m3, s3, rsh, mh, sh,
                o_ref):
    a = x_ref[...]                               # (BT*H, W*CIN_PAD)
    a = _layer(a, rs1, m1, s1, relu=True)        # conv1 + bn1 + relu
    a = _layer(a, rs2, m2, s2, relu=True)        # conv2 + bn2 + relu
    a = _layer(a, rs3, m3, s3, relu=True)        # conv3 + bn3 + relu
    a = _layer(a, rsh, mh, sh, relu=False)       # linear head -> (BT, outputs)
    o_ref[...] = a.astype(o_ref.dtype)


# ----------------------------------------------------------------------------
# Host-side, one-time constant folding (conv + BN + head permutation)
# ----------------------------------------------------------------------------
def conv2d_size_out(size, kernel_size=3, stride=2):
    return (size - (kernel_size - 1) - 1) // stride + 1


def prepare_constants(params, h, w, *, bt=BT):
    w_dtype = jnp.bfloat16 if USE_BF16_WEIGHTS else jnp.float32
    consts = {}
    hin, win, cin, cin_eff = h, w, 3, CIN_PAD
    for li in (1, 2, 3):
        w_c, b_c, gamma, beta, mean, var = (np.asarray(t, np.float32)
                                            for t in params[f"layer{li}"])
        cout = w_c.shape[0]
        hout, wout = conv2d_size_out(hin), conv2d_size_out(win)
        scale = gamma / np.sqrt(var + BN_EPS)
        shift = beta + (b_c - mean) * scale
        # (Cout,Cin,kh,kw) -> (kh,kw,Cin,Cout), BN scale folded into weights.
        weff = np.transpose(w_c, (2, 3, 1, 0)) * scale[None, None, None, :]

        # Concatenated block-diagonal 0/1 row selection: ONE matmul per layer.
        rs = np.zeros((3, bt * hout, bt * hin), np.float32)
        oo = np.arange(hout)
        for i in range(3):
            for b in range(bt):
                rs[i, b * hout + oo, b * hin + 2 * oo + i] = 1.0
        rs_all = rs.reshape(3 * bt * hout, bt * hin)

        # Column taps folded: M_i = sum_j M_ij (exact, blocks never overlap).
        m = np.zeros((3, win * cin_eff, wout * cout), np.float32)
        for i in range(3):
            for j in range(3):
                for v in range(wout):
                    r0 = (2 * v + j) * cin_eff
                    c0 = v * cout
                    m[i, r0:r0 + cin, c0:c0 + cout] = weff[i, j, :cin, :]
        shift_t = np.tile(shift, wout)[None, :].astype(np.float32)

        consts[f"layer{li}"] = (jnp.asarray(rs_all, dtype=w_dtype),
                                jnp.asarray(m, dtype=w_dtype),
                                jnp.asarray(shift_t))
        hin, win, cin = hout, wout, cout
        cin_eff = cin                      # only layer 1 is channel-padded

    # Head: rows permuted so the in-kernel (row=t, col=wq*C+c) layout matches
    # PyTorch's NCHW flatten  p = c*Hf*Wf + t*Wf + wq.
    w_head, b_head = (np.asarray(t, np.float32) for t in params["head"])
    hf, wf, cf = hin, win, cin
    outputs = w_head.shape[1]
    rsh = np.zeros((hf, bt, bt * hf), np.float32)
    mh = np.zeros((hf, wf * cf, outputs), np.float32)
    for t in range(hf):
        for b in range(bt):
            rsh[t, b, b * hf + t] = 1.0
        for wq in range(wf):
            for c in range(cf):
                mh[t, wq * cf + c, :] = w_head[c * hf * wf + t * wf + wq, :]
    consts["head"] = (jnp.asarray(rsh.reshape(hf * bt, bt * hf), dtype=w_dtype),
                      jnp.asarray(mh, dtype=w_dtype),
                      jnp.asarray(b_head[None, :].astype(np.float32)))
    return consts


# ----------------------------------------------------------------------------
# Wrapper: single pallas_call, grid over batch blocks of BT images
# ----------------------------------------------------------------------------
def dqn_forward(x_nchw, consts, *, bt=BT):
    B, C, H, W = x_nchw.shape
    outputs = consts["head"][2].shape[1]

    # Host-side glue: NCHW -> NHWC, zero-pad channels to CIN_PAD (lane-dense),
    # pad batch to a multiple of BT, stack batch along rows: (Bp*H, W*CIN_PAD).
    x_nhwc = jnp.transpose(x_nchw, (0, 2, 3, 1))
    x_nhwc = jnp.pad(x_nhwc, ((0, 0), (0, 0), (0, 0), (0, CIN_PAD - C)))
    b_pad = ((B + bt - 1) // bt) * bt
    if b_pad != B:
        x_nhwc = jnp.pad(x_nhwc, ((0, b_pad - B), (0, 0), (0, 0), (0, 0)))
    x2d = x_nhwc.reshape(b_pad * H, W * CIN_PAD)

    const_inputs = []
    for name in ("layer1", "layer2", "layer3", "head"):
        const_inputs.extend(consts[name])
    const_inputs = tuple(const_inputs)

    def const_spec(a):
        zeros = (0,) * a.ndim
        return pl.BlockSpec(tuple(a.shape), lambda g, z=zeros: z)

    in_specs = [pl.BlockSpec((bt * H, W * CIN_PAD), lambda g: (g, 0))]
    in_specs += [const_spec(a) for a in const_inputs]
    out_specs = pl.BlockSpec((bt, outputs), lambda g: (g, 0))

    num_steps = b_pad // bt
    # Advisory cost estimate so XLA schedules around the call sensibly.
    flops = 0
    for name in ("layer1", "layer2", "layer3", "head"):
        rs, m, _ = consts[name]
        r_all, k_in = rs.shape
        _, k, n = m.shape
        flops += 2 * r_all * k_in * k + 2 * r_all * k * n
    flops = int(flops) * num_steps
    bytes_accessed = int(x2d.size * x2d.dtype.itemsize
                         + sum(a.size * a.dtype.itemsize for a in const_inputs)
                         + b_pad * outputs * 4)

    out = pl.pallas_call(
        _dqn_kernel,
        out_shape=jax.ShapeDtypeStruct((b_pad, outputs), jnp.float32),
        grid=(num_steps,),
        in_specs=in_specs,
        out_specs=out_specs,
        compiler_params=pltpu.CompilerParams(
            dimension_semantics=("parallel",),       # v7x: 2 TCs split the grid
            vmem_limit_bytes=16 * 1024 * 1024),      # ~6 MiB actually resident
        cost_estimate=pl.CostEstimate(flops=flops, transcendentals=0,
                                      bytes_accessed=bytes_accessed),
    )(x2d, *const_inputs)
    return out[:B]


# ----------------------------------------------------------------------------
# Deterministic parameter init (synthetic, mirrors nn.Module shapes)
# ----------------------------------------------------------------------------
def init_params(h, w, outputs, key):
    convw = conv2d_size_out(conv2d_size_out(conv2d_size_out(w)))
    convh = conv2d_size_out(conv2d_size_out(conv2d_size_out(h)))
    linear_input = convw * convh * 32

    keys = jax.random.split(key, 14)
    params = {}
    conv_shapes = [(16, 3, 3, 3), (32, 16, 3, 3), (32, 32, 3, 3)]
    for li, shp in enumerate(conv_shapes):
        cout = shp[0]
        k_w, k_b, k_m, k_v = keys[4 * li:4 * li + 4]
        w_c = 0.05 * jax.random.normal(k_w, shp, jnp.float32)
        b_c = 0.05 * jax.random.normal(k_b, (cout,), jnp.float32)
        gamma = jnp.ones((cout,), jnp.float32)
        beta = jnp.zeros((cout,), jnp.float32)
        mean = 0.01 * jax.random.normal(k_m, (cout,), jnp.float32)
        var = jnp.ones((cout,), jnp.float32) + 0.1 * jnp.abs(
            jax.random.normal(k_v, (cout,), jnp.float32))
        params[f"layer{li + 1}"] = (w_c, b_c, gamma, beta, mean, var)

    w_head = 0.05 * jax.random.normal(keys[12], (linear_input, outputs), jnp.float32)
    b_head = 0.05 * jax.random.normal(keys[13], (outputs,), jnp.float32)
    params["head"] = (w_head, b_head)
    return params


# ----------------------------------------------------------------------------
# Pure-JAX reference (lax.conv, eval-mode BN) for correctness check
# ----------------------------------------------------------------------------
def reference_forward(x_nchw, params):
    x = x_nchw
    for li in range(1, 4):
        w_c, b, gamma, beta, mean, var = params[f"layer{li}"]
        y = lax.conv_general_dilated(
            x, w_c, window_strides=(2, 2), padding="VALID",
            dimension_numbers=("NCHW", "OIHW", "NCHW"),
        ) + b[None, :, None, None]
        y = gamma[None, :, None, None] * (y - mean[None, :, None, None]) / jnp.sqrt(
            var[None, :, None, None] + BN_EPS
        ) + beta[None, :, None, None]
        x = jnp.maximum(y, 0.0)
    feat = x.reshape(x.shape[0], -1)
    w_head, b_head = params["head"]
    return feat @ w_head + b_head


if __name__ == "__main__":
    B, C, H, W = 16, 3, 32, 32      # grid = B/BT = 2 (even -> both v7x TCs busy)
    outputs = 4

    key = jax.random.PRNGKey(0)
    k_x, k_p = jax.random.split(key)
    x = jax.random.normal(k_x, (B, C, H, W), jnp.float32)
    params = init_params(H, W, outputs, k_p)
    consts = prepare_constants(params, H, W, bt=BT)

    fwd = jax.jit(lambda inp: dqn_forward(inp, consts, bt=BT))
    out = jax.block_until_ready(fwd(x))
    ref = jax.block_until_ready(reference_forward(x, params))

    assert out.shape == (B, outputs), out.shape
    tol = 1e-2 if USE_BF16_WEIGHTS else 2e-4
    np.testing.assert_allclose(np.asarray(out), np.asarray(ref), rtol=tol, atol=tol)
    print("KERNEL_OK")
</pallas_src>

<mosaic_0001>
module attributes {stable_mosaic.version = 11 : i64} {
  func.func @_dqn_kernel(%arg0: i32, %arg1: memref<256x128xf32, #tpu.memory_space<vmem>>, %arg2: memref<360x256xf32, #tpu.memory_space<vmem>>, %arg3: memref<3x128x240xf32, #tpu.memory_space<vmem>>, %arg4: memref<1x240xf32, #tpu.memory_space<vmem>>, %arg5: memref<168x120xf32, #tpu.memory_space<vmem>>, %arg6: memref<3x240x224xf32, #tpu.memory_space<vmem>>, %arg7: memref<1x224xf32, #tpu.memory_space<vmem>>, %arg8: memref<72x56xf32, #tpu.memory_space<vmem>>, %arg9: memref<3x224x96xf32, #tpu.memory_space<vmem>>, %arg10: memref<1x96xf32, #tpu.memory_space<vmem>>, %arg11: memref<24x24xf32, #tpu.memory_space<vmem>>, %arg12: memref<3x96x4xf32, #tpu.memory_space<vmem>>, %arg13: memref<1x4xf32, #tpu.memory_space<vmem>>, %arg14: memref<8x4xf32, #tpu.memory_space<vmem>>) attributes {dimension_semantics = [#tpu.dimension_semantics<parallel>], iteration_bounds = array<i64: 2>, scalar_prefetch = 0 : i64, scratch_operands = 0 : i64, tpu.core_type = #tpu.core_type<tc>, window_params = [{transform_indices = @transform_0, window_bounds = array<i64: 256, 128>}, {pipeline_mode = #tpu.pipeline_mode<synchronous>, transform_indices = @transform_1, window_bounds = array<i64: 360, 256>}, {pipeline_mode = #tpu.pipeline_mode<synchronous>, transform_indices = @transform_2, window_bounds = array<i64: 3, 128, 240>}, {pipeline_mode = #tpu.pipeline_mode<synchronous>, transform_indices = @transform_3, window_bounds = array<i64: 1, 240>}, {pipeline_mode = #tpu.pipeline_mode<synchronous>, transform_indices = @transform_4, window_bounds = array<i64: 168, 120>}, {pipeline_mode = #tpu.pipeline_mode<synchronous>, transform_indices = @transform_5, window_bounds = array<i64: 3, 240, 224>}, {pipeline_mode = #tpu.pipeline_mode<synchronous>, transform_indices = @transform_6, window_bounds = array<i64: 1, 224>}, {pipeline_mode = #tpu.pipeline_mode<synchronous>, transform_indices = @transform_7, window_bounds = array<i64: 72, 56>}, {pipeline_mode = #tpu.pipeline_mode<synchronous>, transform_indices = @transform_8, window_bounds = array<i64: 3, 224, 96>}, {pipeline_mode = #tpu.pipeline_mode<synchronous>, transform_indices = @transform_9, window_bounds = array<i64: 1, 96>}, {pipeline_mode = #tpu.pipeline_mode<synchronous>, transform_indices = @transform_10, window_bounds = array<i64: 24, 24>}, {pipeline_mode = #tpu.pipeline_mode<synchronous>, transform_indices = @transform_11, window_bounds = array<i64: 3, 96, 4>}, {pipeline_mode = #tpu.pipeline_mode<synchronous>, transform_indices = @transform_12, window_bounds = array<i64: 1, 4>}, {transform_indices = @transform_13, window_bounds = array<i64: 8, 4>}]} {
    %c0 = arith.constant 0 : index
    %c0_0 = arith.constant 0 : index
    %0 = vector.load %arg1[%c0, %c0_0] : memref<256x128xf32, #tpu.memory_space<vmem>>, vector<256x128xf32>
    %c0_1 = arith.constant 0 : index
    %c0_2 = arith.constant 0 : index
    %1 = vector.load %arg2[%c0_1, %c0_2] : memref<360x256xf32, #tpu.memory_space<vmem>>, vector<360x256xf32>
    %cst = arith.constant dense<0.000000e+00> : vector<360x128xf32>
    %2 = tpu.matmul %1, %0, %cst {dimension_numbers = #tpu.dot_dimension_numbers<[1], [0], [0], [1], [0, 0, 1, 1], [], []>} : vector<360x256xf32>, vector<256x128xf32>, vector<360x128xf32> -> vector<360x128xf32>
    %3 = vector.extract_strided_slice %2 {offsets = [0, 0], sizes = [120, 128], strides = [1, 1]} : vector<360x128xf32> to vector<120x128xf32>
    %c0_3 = arith.constant 0 : index
    %c0_4 = arith.constant 0 : index
    %c0_5 = arith.constant 0 : index
    %4 = vector.load %arg3[%c0_3, %c0_4, %c0_5] : memref<3x128x240xf32, #tpu.memory_space<vmem>>, vector<1x128x240xf32>
    %5 = vector.shape_cast %4 : vector<1x128x240xf32> to vector<128x240xf32>
    %cst_6 = arith.constant dense<0.000000e+00> : vector<120x240xf32>
    %6 = tpu.matmul %3, %5, %cst_6 {dimension_numbers = #tpu.dot_dimension_numbers<[1], [0], [0], [1], [0, 0, 1, 1], [], []>} : vector<120x128xf32>, vector<128x240xf32>, vector<120x240xf32> -> vector<120x240xf32>
    %7 = vector.extract_strided_slice %2 {offsets = [120, 0], sizes = [120, 128], strides = [1, 1]} : vector<360x128xf32> to vector<120x128xf32>
    %c1 = arith.constant 1 : index
    %c0_7 = arith.constant 0 : index
    %c0_8 = arith.constant 0 : index
    %8 = vector.load %arg3[%c1, %c0_7, %c0_8] : memref<3x128x240xf32, #tpu.memory_space<vmem>>, vector<1x128x240xf32>
    %9 = vector.shape_cast %8 : vector<1x128x240xf32> to vector<128x240xf32>
    %cst_9 = arith.constant dense<0.000000e+00> : vector<120x240xf32>
    %10 = tpu.matmul %7, %9, %cst_9 {dimension_numbers = #tpu.dot_dimension_numbers<[1], [0], [0], [1], [0, 0, 1, 1], [], []>} : vector<120x128xf32>, vector<128x240xf32>, vector<120x240xf32> -> vector<120x240xf32>
    %11 = vector.extract_strided_slice %2 {offsets = [240, 0], sizes = [120, 128], strides = [1, 1]} : vector<360x128xf32> to vector<120x128xf32>
    %c2 = arith.constant 2 : index
    %c0_10 = arith.constant 0 : index
    %c0_11 = arith.constant 0 : index
    %12 = vector.load %arg3[%c2, %c0_10, %c0_11] : memref<3x128x240xf32, #tpu.memory_space<vmem>>, vector<1x128x240xf32>
    %13 = vector.shape_cast %12 : vector<1x128x240xf32> to vector<128x240xf32>
    %cst_12 = arith.constant dense<0.000000e+00> : vector<120x240xf32>
    %14 = tpu.matmul %11, %13, %cst_12 {dimension_numbers = #tpu.dot_dimension_numbers<[1], [0], [0], [1], [0, 0, 1, 1], [], []>} : vector<120x128xf32>, vector<128x240xf32>, vector<120x240xf32> -> vector<120x240xf32>
    %c0_13 = arith.constant 0 : index
    %c0_14 = arith.constant 0 : index
    %15 = vector.load %arg4[%c0_13, %c0_14] : memref<1x240xf32, #tpu.memory_space<vmem>>, vector<1x240xf32>
    %16 = vector.broadcast %15 : vector<1x240xf32> to vector<120x240xf32>
    %17 = arith.addf %10, %16 : vector<120x240xf32>
    %18 = arith.addf %6, %14 : vector<120x240xf32>
    %19 = arith.addf %18, %17 : vector<120x240xf32>
    %cst_15 = arith.constant 0.000000e+00 : f32
    %20 = vector.broadcast %cst_15 : f32 to vector<120x240xf32>
    %21 = arith.maximumf %19, %20 : vector<120x240xf32>
    %c0_16 = arith.constant 0 : index
    %c0_17 = arith.constant 0 : index
    %22 = vector.load %arg5[%c0_16, %c0_17] : memref<168x120xf32, #tpu.memory_space<vmem>>, vector<168x120xf32>
    %cst_18 = arith.constant dense<0.000000e+00> : vector<168x240xf32>
    %23 = tpu.matmul %22, %21, %cst_18 {dimension_numbers = #tpu.dot_dimension_numbers<[1], [0], [0], [1], [0, 0, 1, 1], [], []>} : vector<168x120xf32>, vector<120x240xf32>, vector<168x240xf32> -> vector<168x240xf32>
    %24 = vector.extract_strided_slice %23 {offsets = [0, 0], sizes = [56, 240], strides = [1, 1]} : vector<168x240xf32> to vector<56x240xf32>
    %c0_19 = arith.constant 0 : index
    %c0_20 = arith.constant 0 : index
    %c0_21 = arith.constant 0 : index
    %25 = vector.load %arg6[%c0_19, %c0_20, %c0_21] : memref<3x240x224xf32, #tpu.memory_space<vmem>>, vector<1x240x224xf32>
    %26 = vector.shape_cast %25 : vector<1x240x224xf32> to vector<240x224xf32>
    %cst_22 = arith.constant dense<0.000000e+00> : vector<56x224xf32>
    %27 = tpu.matmul %24, %26, %cst_22 {dimension_numbers = #tpu.dot_dimension_numbers<[1], [0], [0], [1], [0, 0, 1, 1], [], []>} : vector<56x240xf32>, vector<240x224xf32>, vector<56x224xf32> -> vector<56x224xf32>
    %28 = vector.extract_strided_slice %23 {offsets = [56, 0], sizes = [56, 240], strides = [1, 1]} : vector<168x240xf32> to vector<56x240xf32>
    %c1_23 = arith.constant 1 : index
    %c0_24 = arith.constant 0 : index
    %c0_25 = arith.constant 0 : index
    %29 = vector.load %arg6[%c1_23, %c0_24, %c0_25] : memref<3x240x224xf32, #tpu.memory_space<vmem>>, vector<1x240x224xf32>
    %30 = vector.shape_cast %29 : vector<1x240x224xf32> to vector<240x224xf32>
    %cst_26 = arith.constant dense<0.000000e+00> : vector<56x224xf32>
    %31 = tpu.matmul %28, %30, %cst_26 {dimension_numbers = #tpu.dot_dimension_numbers<[1], [0], [0], [1], [0, 0, 1, 1], [], []>} : vector<56x240xf32>, vector<240x224xf32>, vector<56x224xf32> -> vector<56x224xf32>
    %32 = vector.extract_strided_slice %23 {offsets = [112, 0], sizes = [56, 240], strides = [1, 1]} : vector<168x240xf32> to vector<56x240xf32>
    %c2_27 = arith.constant 2 : index
    %c0_28 = arith.constant 0 : index
    %c0_29 = arith.constant 0 : index
    %33 = vector.load %arg6[%c2_27, %c0_28, %c0_29] : memref<3x240x224xf32, #tpu.memory_space<vmem>>, vector<1x240x224xf32>
    %34 = vector.shape_cast %33 : vector<1x240x224xf32> to vector<240x224xf32>
    %cst_30 = arith.constant dense<0.000000e+00> : vector<56x224xf32>
    %35 = tpu.matmul %32, %34, %cst_30 {dimension_numbers = #tpu.dot_dimension_numbers<[1], [0], [0], [1], [0, 0, 1, 1], [], []>} : vector<56x240xf32>, vector<240x224xf32>, vector<56x224xf32> -> vector<56x224xf32>
    %c0_31 = arith.constant 0 : index
    %c0_32 = arith.constant 0 : index
    %36 = vector.load %arg7[%c0_31, %c0_32] : memref<1x224xf32, #tpu.memory_space<vmem>>, vector<1x224xf32>
    %37 = vector.broadcast %36 : vector<1x224xf32> to vector<56x224xf32>
    %38 = arith.addf %31, %37 : vector<56x224xf32>
    %39 = arith.addf %27, %35 : vector<56x224xf32>
    %40 = arith.addf %39, %38 : vector<56x224xf32>
    %cst_33 = arith.constant 0.000000e+00 : f32
    %41 = vector.broadcast %cst_33 : f32 to vector<56x224xf32>
    %42 = arith.maximumf %40, %41 : vector<56x224xf32>
    %c0_34 = arith.constant 0 : index
    %c0_35 = arith.constant 0 : index
    %43 = vector.load %arg8[%c0_34, %c0_35] : memref<72x56xf32, #tpu.memory_space<vmem>>, vector<72x56xf32>
    %cst_36 = arith.constant dense<0.000000e+00> : vector<72x224xf32>
    %44 = tpu.matmul %43, %42, %cst_36 {dimension_numbers = #tpu.dot_dimension_numbers<[1], [0], [0], [1], [0, 0, 1, 1], [], []>} : vector<72x56xf32>, vector<56x224xf32>, vector<72x224xf32> -> vector<72x224xf32>
    %45 = vector.extract_strided_slice %44 {offsets = [0, 0], sizes = [24, 224], strides = [1, 1]} : vector<72x224xf32> to vector<24x224xf32>
    %c0_37 = arith.constant 0 : index
    %c0_38 = arith.constant 0 : index
    %c0_39 = arith.constant 0 : index
    %46 = vector.load %arg9[%c0_37, %c0_38, %c0_39] : memref<3x224x96xf32, #tpu.memory_space<vmem>>, vector<1x224x96xf32>
    %47 = vector.shape_cast %46 : vector<1x224x96xf32> to vector<224x96xf32>
    %cst_40 = arith.constant dense<0.000000e+00> : vector<24x96xf32>
    %48 = tpu.matmul %45, %47, %cst_40 {dimension_numbers = #tpu.dot_dimension_numbers<[1], [0], [0], [1], [0, 0, 1, 1], [], []>} : vector<24x224xf32>, vector<224x96xf32>, vector<24x96xf32> -> vector<24x96xf32>
    %49 = vector.extract_strided_slice %44 {offsets = [24, 0], sizes = [24, 224], strides = [1, 1]} : vector<72x224xf32> to vector<24x224xf32>
    %c1_41 = arith.constant 1 : index
    %c0_42 = arith.constant 0 : index
    %c0_43 = arith.constant 0 : index
    %50 = vector.load %arg9[%c1_41, %c0_42, %c0_43] : memref<3x224x96xf32, #tpu.memory_space<vmem>>, vector<1x224x96xf32>
    %51 = vector.shape_cast %50 : vector<1x224x96xf32> to vector<224x96xf32>
    %cst_44 = arith.constant dense<0.000000e+00> : vector<24x96xf32>
    %52 = tpu.matmul %49, %51, %cst_44 {dimension_numbers = #tpu.dot_dimension_numbers<[1], [0], [0], [1], [0, 0, 1, 1], [], []>} : vector<24x224xf32>, vector<224x96xf32>, vector<24x96xf32> -> vector<24x96xf32>
    %53 = vector.extract_strided_slice %44 {offsets = [48, 0], sizes = [24, 224], strides = [1, 1]} : vector<72x224xf32> to vector<24x224xf32>
    %c2_45 = arith.constant 2 : index
    %c0_46 = arith.constant 0 : index
    %c0_47 = arith.constant 0 : index
    %54 = vector.load %arg9[%c2_45, %c0_46, %c0_47] : memref<3x224x96xf32, #tpu.memory_space<vmem>>, vector<1x224x96xf32>
    %55 = vector.shape_cast %54 : vector<1x224x96xf32> to vector<224x96xf32>
    %cst_48 = arith.constant dense<0.000000e+00> : vector<24x96xf32>
    %56 = tpu.matmul %53, %55, %cst_48 {dimension_numbers = #tpu.dot_dimension_numbers<[1], [0], [0], [1], [0, 0, 1, 1], [], []>} : vector<24x224xf32>, vector<224x96xf32>, vector<24x96xf32> -> vector<24x96xf32>
    %c0_49 = arith.constant 0 : index
    %c0_50 = arith.constant 0 : index
    %57 = vector.load %arg10[%c0_49, %c0_50] : memref<1x96xf32, #tpu.memory_space<vmem>>, vector<1x96xf32>
    %58 = vector.broadcast %57 : vector<1x96xf32> to vector<24x96xf32>
    %59 = arith.addf %52, %58 : vector<24x96xf32>
    %60 = arith.addf %48, %56 : vector<24x96xf32>
    %61 = arith.addf %60, %59 : vector<24x96xf32>
    %cst_51 = arith.constant 0.000000e+00 : f32
    %62 = vector.broadcast %cst_51 : f32 to vector<24x96xf32>
    %63 = arith.maximumf %61, %62 : vector<24x96xf32>
    %c0_52 = arith.constant 0 : index
    %c0_53 = arith.constant 0 : index
    %64 = vector.load %arg11[%c0_52, %c0_53] : memref<24x24xf32, #tpu.memory_space<vmem>>, vector<24x24xf32>
    %cst_54 = arith.constant dense<0.000000e+00> : vector<24x96xf32>
    %65 = tpu.matmul %64, %63, %cst_54 {dimension_numbers = #tpu.dot_dimension_numbers<[1], [0], [0], [1], [0, 0, 1, 1], [], []>} : vector<24x24xf32>, vector<24x96xf32>, vector<24x96xf32> -> vector<24x96xf32>
    %66 = vector.extract_strided_slice %65 {offsets = [0, 0], sizes = [8, 96], strides = [1, 1]} : vector<24x96xf32> to vector<8x96xf32>
    %c0_55 = arith.constant 0 : index
    %c0_56 = arith.constant 0 : index
    %c0_57 = arith.constant 0 : index
    %67 = vector.load %arg12[%c0_55, %c0_56, %c0_57] : memref<3x96x4xf32, #tpu.memory_space<vmem>>, vector<1x96x4xf32>
    %68 = vector.shape_cast %67 : vector<1x96x4xf32> to vector<96x4xf32>
    %cst_58 = arith.constant dense<0.000000e+00> : vector<8x4xf32>
    %69 = tpu.matmul %66, %68, %cst_58 {dimension_numbers = #tpu.dot_dimension_numbers<[1], [0], [0], [1], [0, 0, 1, 1], [], []>} : vector<8x96xf32>, vector<96x4xf32>, vector<8x4xf32> -> vector<8x4xf32>
    %70 = vector.extract_strided_slice %65 {offsets = [8, 0], sizes = [8, 96], strides = [1, 1]} : vector<24x96xf32> to vector<8x96xf32>
    %c1_59 = arith.constant 1 : index
    %c0_60 = arith.constant 0 : index
    %c0_61 = arith.constant 0 : index
    %71 = vector.load %arg12[%c1_59, %c0_60, %c0_61] : memref<3x96x4xf32, #tpu.memory_space<vmem>>, vector<1x96x4xf32>
    %72 = vector.shape_cast %71 : vector<1x96x4xf32> to vector<96x4xf32>
    %cst_62 = arith.constant dense<0.000000e+00> : vector<8x4xf32>
    %73 = tpu.matmul %70, %72, %cst_62 {dimension_numbers = #tpu.dot_dimension_numbers<[1], [0], [0], [1], [0, 0, 1, 1], [], []>} : vector<8x96xf32>, vector<96x4xf32>, vector<8x4xf32> -> vector<8x4xf32>
    %74 = vector.extract_strided_slice %65 {offsets = [16, 0], sizes = [8, 96], strides = [1, 1]} : vector<24x96xf32> to vector<8x96xf32>
    %c2_63 = arith.constant 2 : index
    %c0_64 = arith.constant 0 : index
    %c0_65 = arith.constant 0 : index
    %75 = vector.load %arg12[%c2_63, %c0_64, %c0_65] : memref<3x96x4xf32, #tpu.memory_space<vmem>>, vector<1x96x4xf32>
    %76 = vector.shape_cast %75 : vector<1x96x4xf32> to vector<96x4xf32>
    %cst_66 = arith.constant dense<0.000000e+00> : vector<8x4xf32>
    %77 = tpu.matmul %74, %76, %cst_66 {dimension_numbers = #tpu.dot_dimension_numbers<[1], [0], [0], [1], [0, 0, 1, 1], [], []>} : vector<8x96xf32>, vector<96x4xf32>, vector<8x4xf32> -> vector<8x4xf32>
    %c0_67 = arith.constant 0 : index
    %c0_68 = arith.constant 0 : index
    %78 = vector.load %arg13[%c0_67, %c0_68] : memref<1x4xf32, #tpu.memory_space<vmem>>, vector<1x4xf32>
    %79 = vector.broadcast %78 : vector<1x4xf32> to vector<8x4xf32>
    %80 = arith.addf %73, %79 : vector<8x4xf32>
    %81 = arith.addf %69, %77 : vector<8x4xf32>
    %82 = arith.addf %81, %80 : vector<8x4xf32>
    %c0_69 = arith.constant 0 : index
    %c0_70 = arith.constant 0 : index
    %83 = vector.load %arg14[%c0_69, %c0_70] : memref<8x4xf32, #tpu.memory_space<vmem>>, vector<8x4xf32>
    tpu.vector_store %arg14[%c0_69, %c0_70], %82 {strides = array<i32>} : memref<8x4xf32, #tpu.memory_space<vmem>>, vector<8x4xf32>,
    return
  }
  func.func @transform_0(%arg0: i32) -> (i32, i32) {
    %c0_i32 = arith.constant 0 : i32
    %c0_i32_0 = arith.constant 0 : i32
    return %arg0, %c0_i32 : i32, i32
  }
  func.func @transform_1(%arg0: i32) -> (i32, i32) {
    %c0_i32 = arith.constant 0 : i32
    %c0_i32_0 = arith.constant 0 : i32
    %c0_i32_1 = arith.constant 0 : i32
    return %c0_i32, %c0_i32_0 : i32, i32
  }
  func.func @transform_2(%arg0: i32) -> (i32, i32, i32) {
    %c0_i32 = arith.constant 0 : i32
    %c0_i32_0 = arith.constant 0 : i32
    %c0_i32_1 = arith.constant 0 : i32
    %c0_i32_2 = arith.constant 0 : i32
    return %c0_i32, %c0_i32_0, %c0_i32_1 : i32, i32, i32
  }
  func.func @transform_3(%arg0: i32) -> (i32, i32) {
    %c0_i32 = arith.constant 0 : i32
    %c0_i32_0 = arith.constant 0 : i32
    %c0_i32_1 = arith.constant 0 : i32
    return %c0_i32, %c0_i32_0 : i32, i32
  }
  func.func @transform_4(%arg0: i32) -> (i32, i32) {
    %c0_i32 = arith.constant 0 : i32
    %c0_i32_0 = arith.constant 0 : i32
    %c0_i32_1 = arith.constant 0 : i32
    return %c0_i32, %c0_i32_0 : i32, i32
  }
  func.func @transform_5(%arg0: i32) -> (i32, i32, i32) {
    %c0_i32 = arith.constant 0 : i32
    %c0_i32_0 = arith.constant 0 : i32
    %c0_i32_1 = arith.constant 0 : i32
    %c0_i32_2 = arith.constant 0 : i32
    return %c0_i32, %c0_i32_0, %c0_i32_1 : i32, i32, i32
  }
  func.func @transform_6(%arg0: i32) -> (i32, i32) {
    %c0_i32 = arith.constant 0 : i32
    %c0_i32_0 = arith.constant 0 : i32
    %c0_i32_1 = arith.constant 0 : i32
    return %c0_i32, %c0_i32_0 : i32, i32
  }
  func.func @transform_7(%arg0: i32) -> (i32, i32) {
    %c0_i32 = arith.constant 0 : i32
    %c0_i32_0 = arith.constant 0 : i32
    %c0_i32_1 = arith.constant 0 : i32
    return %c0_i32, %c0_i32_0 : i32, i32
  }
  func.func @transform_8(%arg0: i32) -> (i32, i32, i32) {
    %c0_i32 = arith.constant 0 : i32
    %c0_i32_0 = arith.constant 0 : i32
    %c0_i32_1 = arith.constant 0 : i32
    %c0_i32_2 = arith.constant 0 : i32
    return %c0_i32, %c0_i32_0, %c0_i32_1 : i32, i32, i32
  }
  func.func @transform_9(%arg0: i32) -> (i32, i32) {
    %c0_i32 = arith.constant 0 : i32
    %c0_i32_0 = arith.constant 0 : i32
    %c0_i32_1 = arith.constant 0 : i32
    return %c0_i32, %c0_i32_0 : i32, i32
  }
  func.func @transform_10(%arg0: i32) -> (i32, i32) {
    %c0_i32 = arith.constant 0 : i32
    %c0_i32_0 = arith.constant 0 : i32
    %c0_i32_1 = arith.constant 0 : i32
    return %c0_i32, %c0_i32_0 : i32, i32
  }
  func.func @transform_11(%arg0: i32) -> (i32, i32, i32) {
    %c0_i32 = arith.constant 0 : i32
    %c0_i32_0 = arith.constant 0 : i32
    %c0_i32_1 = arith.constant 0 : i32
    %c0_i32_2 = arith.constant 0 : i32
    return %c0_i32, %c0_i32_0, %c0_i32_1 : i32, i32, i32
  }
  func.func @transform_12(%arg0: i32) -> (i32, i32) {
    %c0_i32 = arith.constant 0 : i32
    %c0_i32_0 = arith.constant 0 : i32
    %c0_i32_1 = arith.constant 0 : i32
    return %c0_i32, %c0_i32_0 : i32, i32
  }
  func.func @transform_13(%arg0: i32) -> (i32, i32) {
    %c0_i32 = arith.constant 0 : i32
    %c0_i32_0 = arith.constant 0 : i32
    return %arg0, %c0_i32 : i32, i32
  }
}

</mosaic_0001>

<llo_original>
// kernel: _lambda_.1
$region0: #{_lambda_.1}
  #allocation0 [shape = 'u32[]', space=smem, size = 0x4, offset = 0x4, fixed_abs, tag = 'smem constant byte address 0x4 - core index']
  #allocation1 [shape = 'u32[144,128]{1,0:T(1,128)}', space=vmem, size = 0x12000, scoped, tag = 'internal scratch']
  %s0 = inlined_call_operand.vmem [shape: f32[512,128], index: 0, kind: input, shape index: {}]
  %s1 = inlined_call_operand.vmem [shape: f32[360,256], index: 1, kind: input, shape index: {}]
  %s2 = inlined_call_operand.vmem [shape: f32[3,128,240], index: 2, kind: input, shape index: {}]
  %s3 = inlined_call_operand.vmem [shape: f32[1,240], index: 3, kind: input, shape index: {}]
  %s4 = inlined_call_operand.vmem [shape: f32[168,120], index: 4, kind: input, shape index: {}]
  %s5 = inlined_call_operand.vmem [shape: f32[3,240,224], index: 5, kind: input, shape index: {}]
  %s6 = inlined_call_operand.vmem [shape: f32[1,224], index: 6, kind: input, shape index: {}]
  %s7 = inlined_call_operand.vmem [shape: f32[72,56], index: 7, kind: input, shape index: {}]
  %s8 = inlined_call_operand.vmem [shape: f32[3,224,96], index: 8, kind: input, shape index: {}]
  %s9 = inlined_call_operand.vmem [shape: f32[1,96], index: 9, kind: input, shape index: {}]
  %s10 = inlined_call_operand.vmem [shape: f32[24,24], index: 10, kind: input, shape index: {}]
  %s11 = inlined_call_operand.vmem [shape: f32[3,96,4], index: 11, kind: input, shape index: {}]
  %s12 = inlined_call_operand.vmem [shape: f32[1,4], index: 12, kind: input, shape index: {}]
  %s13 = inlined_call_operand.vmem [shape: f32[16,4], index: 13, kind: output, shape index: {}]
  %s14 = sld [smem:[#allocation0]]
  $region85: #{_lambda_.1} parent=0
    _
  %s16 = ssub.s32 1, %s14
  %s17 = scalar_select 0, %s16, %s14
  loop: start=0, step=1, limit=4
  $region2: #{_lambda_.1} parent=0 // loop_pre_header
    _
  $region3: #{_lambda_.1} parent=0 // loop_header
    %s19 = sphi 0, %s23
    %p20 = scmp.ge.s32.totalorder %s19, 4
    %s29 = sphi 0, %s31
    %s32 = sphi 0, %s29
    %s33 = sphi 0, %s32
    %s49 = sphi 0, %s33
    %s53 = sphi 0, %s53
    %s55 = sphi 0, %s53
    %s56 = sphi 0, %s55
    %s70 = sphi 0, %s56
    %s74 = sphi 0, %s74
    %s76 = sphi 0, %s74
    %s77 = sphi 0, %s76
    %s91 = sphi 0, %s77
    %s95 = sphi 0, %s95
    %s97 = sphi 0, %s95
    %s98 = sphi 0, %s97
    %s112 = sphi 0, %s98
    %s116 = sphi 0, %s116
    %s118 = sphi 0, %s116
    %s119 = sphi 0, %s118
    %s133 = sphi 0, %s119
    %s137 = sphi 0, %s137
    %s139 = sphi 0, %s137
    %s140 = sphi 0, %s139
    %s154 = sphi 0, %s140
    %s158 = sphi 0, %s158
    %s160 = sphi 0, %s158
    %s161 = sphi 0, %s160
    %s175 = sphi 0, %s161
    %s179 = sphi 0, %s179
    %s181 = sphi 0, %s179
    %s182 = sphi 0, %s181
    %s196 = sphi 0, %s182
    %s200 = sphi 0, %s200
    %s202 = sphi 0, %s200
    %s203 = sphi 0, %s202
    %s217 = sphi 0, %s203
    %s221 = sphi 0, %s221
    %s223 = sphi 0, %s221
    %s224 = sphi 0, %s223
    %s238 = sphi 0, %s224
    %s242 = sphi 0, %s242
    %s244 = sphi 0, %s242
    %s245 = sphi 0, %s244
    %s259 = sphi 0, %s245
    %s263 = sphi 0, %s263
    %s265 = sphi 0, %s263
    %s266 = sphi 0, %s265
    %s280 = sphi 0, %s266
    %s284 = sphi 0, %s284
    %s286 = sphi 0, %s284
    %s287 = sphi 0, %s286
    %s301 = sphi 0, %s287
    %s307 = sphi 0, %s309
    %s310 = sphi 0, %s307
    %s311 = sphi 0, %s310
    %s327 = sphi 0, %s311
  $region4: #{_lambda_.1} parent=0 // loop_header_branch
    %22 = sbr.rel (%p20) target = $region8
  $region5: #{_lambda_.1} parent=0 // loop_body
    %s24 = ssub.s32 %s19, 1
    %s25 = ssub.s32 %s19, 2
    %s26 = sadd.s32 %s19, 1
    %s27 = ssub.s32 %s19, %s26
    %p28 = scmp.eq.s32.totalorder %s27, 0
    %s30 = sadd.s32 %s29, 1
    %s31 = scalar_select %p28, %s29, %s30
    %p34 = pneg %p28
    %p35 = scmp.eq.s32.totalorder %s19, 1
    %p36 = por %p34, %p35
    %p37 = scmp.ne.s32.totalorder %s29, %s32
    %p38 = scmp.eq.s32.totalorder %s19, 0
    %p39 = por %p37, %p38
    %p40 = scmp.ne.s32.totalorder %s29, %s32
    %p41 = scmp.eq.s32.totalorder %s24, 1
    %p42 = por %p40, %p41
    %p43 = scmp.ne.s32.totalorder %s32, %s33
    %p44 = scmp.eq.s32.totalorder %s24, 0
    %p45 = por %p43, %p44
    %p46 = scmp.ne.s32.totalorder %s32, %s33
    %p47 = scmp.eq.s32.totalorder %s25, 1
    %p48 = por %p46, %p47
    %p50 = scmp.ne.s32.totalorder %s33, %s49
    %p51 = scmp.eq.s32.totalorder %s25, 0
    %p52 = por %p50, %p51
    %s54 = sadd.s32 %s53, 1
    %p57 = scmp.eq.s32.totalorder %s19, 1
    %p58 = scmp.ne.s32.totalorder %s53, %s55
    %p59 = scmp.eq.s32.totalorder %s19, 0
    %p60 = por %p58, %p59
    %p61 = scmp.ne.s32.totalorder %s53, %s55
    %p62 = scmp.eq.s32.totalorder %s24, 1
    %p63 = por %p61, %p62
    %p64 = scmp.ne.s32.totalorder %s55, %s56
    %p65 = scmp.eq.s32.totalorder %s24, 0
    %p66 = por %p64, %p65
    %p67 = scmp.ne.s32.totalorder %s55, %s56
    %p68 = scmp.eq.s32.totalorder %s25, 1
    %p69 = por %p67, %p68
    %p71 = scmp.ne.s32.totalorder %s56, %s70
    %p72 = scmp.eq.s32.totalorder %s25, 0
    %p73 = por %p71, %p72
    %s75 = sadd.s32 %s74, 1
    %p78 = scmp.eq.s32.totalorder %s19, 1
    %p79 = scmp.ne.s32.totalorder %s74, %s76
    %p80 = scmp.eq.s32.totalorder %s19, 0
    %p81 = por %p79, %p80
    %p82 = scmp.ne.s32.totalorder %s74, %s76
    %p83 = scmp.eq.s32.totalorder %s24, 1
    %p84 = por %p82, %p83
    %p85 = scmp.ne.s32.totalorder %s76, %s77
    %p86 = scmp.eq.s32.totalorder %s24, 0
    %p87 = por %p85, %p86
    %p88 = scmp.ne.s32.totalorder %s76, %s77
    %p89 = scmp.eq.s32.totalorder %s25, 1
    %p90 = por %p88, %p89
    %p92 = scmp.ne.s32.totalorder %s77, %s91
    %p93 = scmp.eq.s32.totalorder %s25, 0
    %p94 = por %p92, %p93
    %s96 = sadd.s32 %s95, 1
    %p99 = scmp.eq.s32.totalorder %s19, 1
    %p100 = scmp.ne.s32.totalorder %s95, %s97
    %p101 = scmp.eq.s32.totalorder %s19, 0
    %p102 = por %p100, %p101
    %p103 = scmp.ne.s32.totalorder %s95, %s97
    %p104 = scmp.eq.s32.totalorder %s24, 1
    %p105 = por %p103, %p104
    %p106 = scmp.ne.s32.totalorder %s97, %s98
    %p107 = scmp.eq.s32.totalorder %s24, 0
    %p108 = por %p106, %p107
    %p109 = scmp.ne.s32.totalorder %s97, %s98
    %p110 = scmp.eq.s32.totalorder %s25, 1
    %p111 = por %p109, %p110
    %p113 = scmp.ne.s32.totalorder %s98, %s112
    %p114 = scmp.eq.s32.totalorder %s25, 0
    %p115 = por %p113, %p114
    %s117 = sadd.s32 %s116, 1
    %p120 = scmp.eq.s32.totalorder %s19, 1
    %p121 = scmp.ne.s32.totalorder %s116, %s118
    %p122 = scmp.eq.s32.totalorder %s19, 0
    %p123 = por %p121, %p122
    %p124 = scmp.ne.s32.totalorder %s116, %s118
    %p125 = scmp.eq.s32.totalorder %s24, 1
    %p126 = por %p124, %p125
    %p127 = scmp.ne.s32.totalorder %s118, %s119
    %p128 = scmp.eq.s32.totalorder %s24, 0
    %p129 = por %p127, %p128
    %p130 = scmp.ne.s32.totalorder %s118, %s119
    %p131 = scmp.eq.s32.totalorder %s25, 1
    %p132 = por %p130, %p131
    %p134 = scmp.ne.s32.totalorder %s119, %s133
    %p135 = scmp.eq.s32.totalorder %s25, 0
    %p136 = por %p134, %p135
    %s138 = sadd.s32 %s137, 1
    %p141 = scmp.eq.s32.totalorder %s19, 1
    %p142 = scmp.ne.s32.totalorder %s137, %s139
    %p143 = scmp.eq.s32.totalorder %s19, 0
    %p144 = por %p142, %p143
    %p145 = scmp.ne.s32.totalorder %s137, %s139
    %p146 = scmp.eq.s32.totalorder %s24, 1
    %p147 = por %p145, %p146
    %p148 = scmp.ne.s32.totalorder %s139, %s140
    %p149 = scmp.eq.s32.totalorder %s24, 0
    %p150 = por %p148, %p149
    %p151 = scmp.ne.s32.totalorder %s139, %s140
    %p152 = scmp.eq.s32.totalorder %s25, 1
    %p153 = por %p151, %p152
    %p155 = scmp.ne.s32.totalorder %s140, %s154
    %p156 = scmp.eq.s32.totalorder %s25, 0
    %p157 = por %p155, %p156
    %s159 = sadd.s32 %s158, 1
    %p162 = scmp.eq.s32.totalorder %s19, 1
    %p163 = scmp.ne.s32.totalorder %s158, %s160
    %p164 = scmp.eq.s32.totalorder %s19, 0
    %p165 = por %p163, %p164
    %p166 = scmp.ne.s32.totalorder %s158, %s160
    %p167 = scmp.eq.s32.totalorder %s24, 1
    %p168 = por %p166, %p167
    %p169 = scmp.ne.s32.totalorder %s160, %s161
    %p170 = scmp.eq.s32.totalorder %s24, 0
    %p171 = por %p169, %p170
    %p172 = scmp.ne.s32.totalorder %s160, %s161
    %p173 = scmp.eq.s32.totalorder %s25, 1
    %p174 = por %p172, %p173
    %p176 = scmp.ne.s32.totalorder %s161, %s175
    %p177 = scmp.eq.s32.totalorder %s25, 0
    %p178 = por %p176, %p177
    %s180 = sadd.s32 %s179, 1
    %p183 = scmp.eq.s32.totalorder %s19, 1
    %p184 = scmp.ne.s32.totalorder %s179, %s181
    %p185 = scmp.eq.s32.totalorder %s19, 0
    %p186 = por %p184, %p185
    %p187 = scmp.ne.s32.totalorder %s179, %s181
    %p188 = scmp.eq.s32.totalorder %s24, 1
    %p189 = por %p187, %p188
    %p190 = scmp.ne.s32.totalorder %s181, %s182
    %p191 = scmp.eq.s32.totalorder %s24, 0
    %p192 = por %p190, %p191
    %p193 = scmp.ne.s32.totalorder %s181, %s182
    %p194 = scmp.eq.s32.totalorder %s25, 1
    %p195 = por %p193, %p194
    %p197 = scmp.ne.s32.totalorder %s182, %s196
    %p198 = scmp.eq.s32.totalorder %s25, 0
    %p199 = por %p197, %p198
    %s201 = sadd.s32 %s200, 1
    %p204 = scmp.eq.s32.totalorder %s19, 1
    %p205 = scmp.ne.s32.totalorder %s200, %s202
    %p206 = scmp.eq.s32.totalorder %s19, 0
    %p207 = por %p205, %p206
    %p208 = scmp.ne.s32.totalorder %s200, %s202
    %p209 = scmp.eq.s32.totalorder %s24, 1
    %p210 = por %p208, %p209
    %p211 = scmp.ne.s32.totalorder %s202, %s203
    %p212 = scmp.eq.s32.totalorder %s24, 0
    %p213 = por %p211, %p212
    %p214 = scmp.ne.s32.totalorder %s202, %s203
    %p215 = scmp.eq.s32.totalorder %s25, 1
    %p216 = por %p214, %p215
    %p218 = scmp.ne.s32.totalorder %s203, %s217
    %p219 = scmp.eq.s32.totalorder %s25, 0
    %p220 = por %p218, %p219
    %s222 = sadd.s32 %s221, 1
    %p225 = scmp.eq.s32.totalorder %s19, 1
    %p226 = scmp.ne.s32.totalorder %s221, %s223
    %p227 = scmp.eq.s32.totalorder %s19, 0
    %p228 = por %p226, %p227
    %p229 = scmp.ne.s32.totalorder %s221, %s223
    %p230 = scmp.eq.s32.totalorder %s24, 1
    %p231 = por %p229, %p230
    %p232 = scmp.ne.s32.totalorder %s223, %s224
    %p233 = scmp.eq.s32.totalorder %s24, 0
    %p234 = por %p232, %p233
    %p235 = scmp.ne.s32.totalorder %s223, %s224
    %p236 = scmp.eq.s32.totalorder %s25, 1
    %p237 = por %p235, %p236
    %p239 = scmp.ne.s32.totalorder %s224, %s238
    %p240 = scmp.eq.s32.totalorder %s25, 0
    %p241 = por %p239, %p240
    %s243 = sadd.s32 %s242, 1
    %p246 = scmp.eq.s32.totalorder %s19, 1
    %p247 = scmp.ne.s32.totalorder %s242, %s244
    %p248 = scmp.eq.s32.totalorder %s19, 0
    %p249 = por %p247, %p248
    %p250 = scmp.ne.s32.totalorder %s242, %s244
    %p251 = scmp.eq.s32.totalorder %s24, 1
    %p252 = por %p250, %p251
    %p253 = scmp.ne.s32.totalorder %s244, %s245
    %p254 = scmp.eq.s32.totalorder %s24, 0
    %p255 = por %p253, %p254
    %p256 = scmp.ne.s32.totalorder %s244, %s245
    %p257 = scmp.eq.s32.totalorder %s25, 1
    %p258 = por %p256, %p257
    %p260 = scmp.ne.s32.totalorder %s245, %s259
    %p261 = scmp.eq.s32.totalorder %s25, 0
    %p262 = por %p260, %p261
    %s264 = sadd.s32 %s263, 1
    %p267 = scmp.eq.s32.totalorder %s19, 1
    %p268 = scmp.ne.s32.totalorder %s263, %s265
    %p269 = scmp.eq.s32.totalorder %s19, 0
    %p270 = por %p268, %p269
    %p271 = scmp.ne.s32.totalorder %s263, %s265
    %p272 = scmp.eq.s32.totalorder %s24, 1
    %p273 = por %p271, %p272
    %p274 = scmp.ne.s32.totalorder %s265, %s266
    %p275 = scmp.eq.s32.totalorder %s24, 0
    %p276 = por %p274, %p275
    %p277 = scmp.ne.s32.totalorder %s265, %s266
    %p278 = scmp.eq.s32.totalorder %s25, 1
    %p279 = por %p277, %p278
    %p281 = scmp.ne.s32.totalorder %s266, %s280
    %p282 = scmp.eq.s32.totalorder %s25, 0
    %p283 = por %p281, %p282
    %s285 = sadd.s32 %s284, 1
    %p288 = scmp.eq.s32.totalorder %s19, 1
    %p289 = scmp.ne.s32.totalorder %s284, %s286
    %p290 = scmp.eq.s32.totalorder %s19, 0
    %p291 = por %p289, %p290
    %p292 = scmp.ne.s32.totalorder %s284, %s286
    %p293 = scmp.eq.s32.totalorder %s24, 1
    %p294 = por %p292, %p293
    %p295 = scmp.ne.s32.totalorder %s286, %s287
    %p296 = scmp.eq.s32.totalorder %s24, 0
    %p297 = por %p295, %p296
    %p298 = scmp.ne.s32.totalorder %s286, %s287
    %p299 = scmp.eq.s32.totalorder %s25, 1
    %p300 = por %p298, %p299
    %p302 = scmp.ne.s32.totalorder %s287, %s301
    %p303 = scmp.eq.s32.totalorder %s25, 0
    %p304 = por %p302, %p303
    %s305 = ssub.s32 %s19, %s26
    %p306 = scmp.eq.s32.totalorder %s305, 0
    %s308 = sadd.s32 %s307, 1
    %s309 = scalar_select %p306, %s307, %s308
    %p312 = pneg %p306
    %p313 = scmp.eq.s32.totalorder %s19, 1
    %p314 = por %p312, %p313
    %p315 = scmp.ne.s32.totalorder %s307, %s310
    %p316 = scmp.eq.s32.totalorder %s19, 0
    %p317 = por %p315, %p316
    %p318 = scmp.ne.s32.totalorder %s307, %s310
    %p319 = scmp.eq.s32.totalorder %s24, 1
    %p320 = por %p318, %p319
    %p321 = scmp.ne.s32.totalorder %s310, %s311
    %p322 = scmp.eq.s32.totalorder %s24, 0
    %p323 = por %p321, %p322
    %p324 = scmp.ne.s32.totalorder %s310, %s311
    %p325 = scmp.eq.s32.totalorder %s25, 1
    %p326 = por %p324, %p325
    %p328 = scmp.ne.s32.totalorder %s311, %s327
    %p329 = scmp.eq.s32.totalorder %s25, 0
    %p330 = por %p328, %p329
    %p331 = scmp.le.s32.totalorder 1, %s19
    %p332 = scmp.lt.s32.totalorder %s19, 3
    %p333 = pnand %p331, %p332
    %p334 = pneg %p333
    // Predicated region
    $region9: #{_lambda_.1} parent=5 // pred_check
      _
    $region10: #{_lambda_.1} parent=5 // pred_check_branch
      %336 = sbr.rel (%p333) target = $region12
    $region11: #{_lambda_.1} parent=5 // pred_region
      %s337 = ssub.s32 %s19, 1
      // Predicated region
      $region13: #{_lambda_.1} parent=11 // pred_check
        %p338 = pneg %p66
      $region14: #{_lambda_.1} parent=11 // pred_check_branch
        %340 = sbr.rel (%p338) target = $region16
      $region15: #{_lambda_.1} parent=11 // pred_region
        _
      $region16: #{_lambda_.1} parent=11 // pred_fallthru
        _
      // Predicated region
      $region17: #{_lambda_.1} parent=11 // pred_check
        %p341 = pneg %p87
      $region18: #{_lambda_.1} parent=11 // pred_check_branch
        %343 = sbr.rel (%p341) target = $region20
      $region19: #{_lambda_.1} parent=11 // pred_region
        _
      $region20: #{_lambda_.1} parent=11 // pred_fallthru
        _
      // Predicated region
      $region21: #{_lambda_.1} parent=11 // pred_check
        %p344 = pneg %p108
      $region22: #{_lambda_.1} parent=11 // pred_check_branch
        %346 = sbr.rel (%p344) target = $region24
      $region23: #{_lambda_.1} parent=11 // pred_region
        _
      $region24: #{_lambda_.1} parent=11 // pred_fallthru
        _
      // Predicated region
      $region25: #{_lambda_.1} parent=11 // pred_check
        %p347 = pneg %p129
      $region26: #{_lambda_.1} parent=11 // pred_check_branch
        %349 = sbr.rel (%p347) target = $region28
      $region27: #{_lambda_.1} parent=11 // pred_region
        _
      $region28: #{_lambda_.1} parent=11 // pred_fallthru
        _
      // Predicated region
      $region29: #{_lambda_.1} parent=11 // pred_check
        %p350 = pneg %p150
      $region30: #{_lambda_.1} parent=11 // pred_check_branch
        %352 = sbr.rel (%p350) target = $region32
      $region31: #{_lambda_.1} parent=11 // pred_region
        _
      $region32: #{_lambda_.1} parent=11 // pred_fallthru
        _
      // Predicated region
      $region33: #{_lambda_.1} parent=11 // pred_check
        %p353 = pneg %p171
      $region34: #{_lambda_.1} parent=11 // pred_check_branch
        %355 = sbr.rel (%p353) target = $region36
      $region35: #{_lambda_.1} parent=11 // pred_region
        _
      $region36: #{_lambda_.1} parent=11 // pred_fallthru
        _
      // Predicated region
      $region37: #{_lambda_.1} parent=11 // pred_check
        %p356 = pneg %p192
      $region38: #{_lambda_.1} parent=11 // pred_check_branch
        %358 = sbr.rel (%p356) target = $region40
      $region39: #{_lambda_.1} parent=11 // pred_region
        _
      $region40: #{_lambda_.1} parent=11 // pred_fallthru
        _
      // Predicated region
      $region41: #{_lambda_.1} parent=11 // pred_check
        %p359 = pneg %p213
      $region42: #{_lambda_.1} parent=11 // pred_check_branch
        %361 = sbr.rel (%p359) target = $region44
      $region43: #{_lambda_.1} parent=11 // pred_region
        _
      $region44: #{_lambda_.1} parent=11 // pred_fallthru
        _
      // Predicated region
      $region45: #{_lambda_.1} parent=11 // pred_check
        %p362 = pneg %p234
      $region46: #{_lambda_.1} parent=11 // pred_check_branch
        %364 = sbr.rel (%p362) target = $region48
      $region47: #{_lambda_.1} parent=11 // pred_region
        _
      $region48: #{_lambda_.1} parent=11 // pred_fallthru
        _
      // Predicated region
      $region49: #{_lambda_.1} parent=11 // pred_check
        %p365 = pneg %p255
      $region50: #{_lambda_.1} parent=11 // pred_check_branch
        %367 = sbr.rel (%p365) target = $region52
      $region51: #{_lambda_.1} parent=11 // pred_region
        _
      $region52: #{_lambda_.1} parent=11 // pred_fallthru
        _
      // Predicated region
      $region53: #{_lambda_.1} parent=11 // pred_check
        %p368 = pneg %p276
      $region54: #{_lambda_.1} parent=11 // pred_check_branch
        %370 = sbr.rel (%p368) target = $region56
      $region55: #{_lambda_.1} parent=11 // pred_region
        _
      $region56: #{_lambda_.1} parent=11 // pred_fallthru
        _
      // Predicated region
      $region57: #{_lambda_.1} parent=11 // pred_check
        %p371 = pneg %p297
      $region58: #{_lambda_.1} parent=11 // pred_check_branch
        %373 = sbr.rel (%p371) target = $region60
      $region59: #{_lambda_.1} parent=11 // pred_region
        _
      $region60: #{_lambda_.1} parent=11 // pred_fallthru
        _
    $region12: #{_lambda_.1} parent=5 // pred_fallthru
      _
    %p374 = scmp.lt.s32.totalorder %s19, 2
    // Predicated region
    $region61: #{_lambda_.1} parent=5 // pred_check
      %p375 = pneg %p374
    $region62: #{_lambda_.1} parent=5 // pred_check_branch
      %377 = sbr.rel (%p375) target = $region64
    $region63: #{_lambda_.1} parent=5 // pred_region
      // Predicated region
      $region65: #{_lambda_.1} parent=63 // pred_check
        %p378 = pneg %p39
      $region66: #{_lambda_.1} parent=63 // pred_check_branch
        %380 = sbr.rel (%p378) target = $region68
      $region67: #{_lambda_.1} parent=63 // pred_region
        %s381 = smul.u32 32, %s19
        %p382 = scmp.lt.s32.totalorder %s381, 63
        %s383 = scalar_select %p382, %s381, 63
        %s384 = smul.addr %s383, 8
        %s385 = scalar_lea.vmem %s0, %s384
        %s386 = smul.u32 32, %s19
      $region68: #{_lambda_.1} parent=63 // pred_fallthru
        _
    $region64: #{_lambda_.1} parent=5 // pred_fallthru
      _
    %p387 = scmp.le.s32.totalorder 1, %s19
    %p388 = scmp.lt.s32.totalorder %s19, 3
    %p389 = pnand %p387, %p388
    %p390 = pneg %p389
    // Predicated region
    $region69: #{_lambda_.1} parent=5 // pred_check
      _
    $region70: #{_lambda_.1} parent=5 // pred_check_branch
      %392 = sbr.rel (%p389) target = $region72
    $region71: #{_lambda_.1} parent=5 // pred_region
      %s393 = ssub.s32 %s19, 1
      %s394 = smul.u32 32, %s24
      %p395 = scmp.lt.s32.totalorder %s394, 63
      %s396 = scalar_select %p395, %s394, 63
      %s397 = smul.addr %s396, 8
      %s398 = scalar_lea.vmem %s0, %s397
      %p399 = pneg %p45
      %p400 = pneg %p42
      %p401 = pneg %p66
      %p402 = pneg %p63
      %p403 = pneg %p87
      %p404 = pneg %p84
      %p405 = pneg %p108
      %p406 = pneg %p105
      %p407 = pneg %p129
      %p408 = pneg %p126
      %p409 = pneg %p150
      %p410 = pneg %p147
      %p411 = pneg %p171
      %p412 = pneg %p168
      %p413 = pneg %p192
      %p414 = pneg %p189
      %p415 = pneg %p213
      %p416 = pneg %p210
      %p417 = pneg %p234
      %p418 = pneg %p231
      %p419 = pneg %p255
      %p420 = pneg %p252
      %p421 = pneg %p276
      %p422 = pneg %p273
      %p423 = pneg %p297
      %p424 = pneg %p294
      %p425 = pneg %p323
      %p426 = pneg %p320
      %p427 = scmp.lt.s32.totalorder %s24, 1
      %s428 = scalar_select %p427, %s24, 1
      %s429 = smul.addr %s428, 8
      %s430 = scalar_lea.vmem %s13, %s429
      %s431 = smul.u32 32, %s24
      %p432 = scmp.lt.s32.totalorder %s431, 63
      %s433 = scalar_select %p432, %s431, 63
      %s434 = smul.addr %s433, 8
      %s435 = scalar_lea.vmem %s0, %s434
      %s436 = smul.u32 32, %s24
      %p437 = scmp.lt.s32.totalorder %s24, 1
      %s438 = scalar_select %p437, %s24, 1
      %s439 = smul.addr %s438, 8
      %s440 = scalar_lea.vmem %s13, %s439
      %v441 = vld [vmem:[%s435] sm:$0xff]
      %v442 = vld [vmem:[%s435 + $0x8] sm:$0xff]
      %v443 = vld [vmem:[%s435 + $0x10] sm:$0xff]
      %v444 = vld [vmem:[%s435 + $0x18] sm:$0xff]
      %v445 = vld [vmem:[%s435 + $0x20] sm:$0xff]
      %v446 = vld [vmem:[%s435 + $0x28] sm:$0xff]
      %v447 = vld [vmem:[%s435 + $0x30] sm:$0xff]
      %v448 = vld [vmem:[%s435 + $0x38] sm:$0xff]
      %v449 = vld [vmem:[%s435 + $0x40] sm:$0xff]
      %v450 = vld [vmem:[%s435 + $0x48] sm:$0xff]
      %v451 = vld [vmem:[%s435 + $0x50] sm:$0xff]
      %v452 = vld [vmem:[%s435 + $0x58] sm:$0xff]
      %v453 = vld [vmem:[%s435 + $0x60] sm:$0xff]
      %v454 = vld [vmem:[%s435 + $0x68] sm:$0xff]
      %v455 = vld [vmem:[%s435 + $0x70] sm:$0xff]
      %v456 = vld [vmem:[%s435 + $0x78] sm:$0xff]
      %v457 = vld [vmem:[%s435 + $0x80] sm:$0xff]
      %v458 = vld [vmem:[%s435 + $0x88] sm:$0xff]
      %v459 = vld [vmem:[%s435 + $0x90] sm:$0xff]
      %v460 = vld [vmem:[%s435 + $0x98] sm:$0xff]
      %v461 = vld [vmem:[%s435 + $0xa0] sm:$0xff]
      %v462 = vld [vmem:[%s435 + $0xa8] sm:$0xff]
      %v463 = vld [vmem:[%s435 + $0xb0] sm:$0xff]
      %v464 = vld [vmem:[%s435 + $0xb8] sm:$0xff]
      %v465 = vld [vmem:[%s435 + $0xc0] sm:$0xff]
      %v466 = vld [vmem:[%s435 + $0xc8] sm:$0xff]
      %v467 = vld [vmem:[%s435 + $0xd0] sm:$0xff]
      %v468 = vld [vmem:[%s435 + $0xd8] sm:$0xff]
      %v469 = vld [vmem:[%s435 + $0xe0] sm:$0xff]
      %v470 = vld [vmem:[%s435 + $0xe8] sm:$0xff]
      %v471 = vld [vmem:[%s435 + $0xf0] sm:$0xff]
      %v472 = vld [vmem:[%s435 + $0xf8] sm:$0xff]
      %v473 = vld [vmem:[%s1] sm:$0xff]
      %v474 = vld [vmem:[%s1 + $0x8] sm:$0xff]
      %v475 = vld [vmem:[%s1 + $0x10] sm:$0xff]
      %v476 = vld [vmem:[%s1 + $0x18] sm:$0xff]
      %v477 = vld [vmem:[%s1 + $0x20] sm:$0xff]
      %v478 = vld [vmem:[%s1 + $0x28] sm:$0xff]
      %v479 = vld [vmem:[%s1 + $0x30] sm:$0xff]
      %v480 = vld [vmem:[%s1 + $0x38] sm:$0xff]
      %v481 = vld [vmem:[%s1 + $0x40] sm:$0xff]
      %v482 = vld [vmem:[%s1 + $0x48] sm:$0xff]
      %v483 = vld [vmem:[%s1 + $0x50] sm:$0xff]
      %v484 = vld [vmem:[%s1 + $0x58] sm:$0xff]
      %v485 = vld [vmem:[%s1 + $0x60] sm:$0xff]
      %v486 = vld [vmem:[%s1 + $0x68] sm:$0xff]
      %v487 = vld [vmem:[%s1 + $0x70] sm:$0xff]
      %v488 = vld [vmem:[%s1 + $0x78] sm:$0xff]
      %v489 = vld [vmem:[%s1 + $0x80] sm:$0xff]
      %v490 = vld [vmem:[%s1 + $0x88] sm:$0xff]
      %v491 = vld [vmem:[%s1 + $0x90] sm:$0xff]
      %v492 = vld [vmem:[%s1 + $0x98] sm:$0xff]
      %v493 = vld [vmem:[%s1 + $0xa0] sm:$0xff]
      %v494 = vld [vmem:[%s1 + $0xa8] sm:$0xff]
      %v495 = vld [vmem:[%s1 + $0xb0] sm:$0xff]
      %v496 = vld [vmem:[%s1 + $0xb8] sm:$0xff]
      %v497 = vld [vmem:[%s1 + $0xc0] sm:$0xff]
      %v498 = vld [vmem:[%s1 + $0xc8] sm:$0xff]
      %v499 = vld [vmem:[%s1 + $0xd0] sm:$0xff]
      %v500 = vld [vmem:[%s1 + $0xd8] sm:$0xff]
      %v501 = vld [vmem:[%s1 + $0xe0] sm:$0xff]
      %v502 = vld [vmem:[%s1 + $0xe8] sm:$0xff]
      %v503 = vld [vmem:[%s1 + $0xf0] sm:$0xff]
      %v504 = vld [vmem:[%s1 + $0xf8] sm:$0xff]
      %v505 = vld [vmem:[%s1 + $0x100] sm:$0xff]
      %v506 = vld [vmem:[%s1 + $0x108] sm:$0xff]
      %v507 = vld [vmem:[%s1 + $0x110] sm:$0xff]
      %v508 = vld [vmem:[%s1 + $0x118] sm:$0xff]
      %v509 = vld [vmem:[%s1 + $0x120] sm:$0xff]
      %v510 = vld [vmem:[%s1 + $0x128] sm:$0xff]
      %v511 = vld [vmem:[%s1 + $0x130] sm:$0xff]
      %v512 = vld [vmem:[%s1 + $0x138] sm:$0xff]
      %v513 = vld [vmem:[%s1 + $0x140] sm:$0xff]
      %v514 = vld [vmem:[%s1 + $0x148] sm:$0xff]
      %v515 = vld [vmem:[%s1 + $0x150] sm:$0xff]
      %v516 = vld [vmem:[%s1 + $0x158] sm:$0xff]
      %v517 = vld [vmem:[%s1 + $0x160] sm:$0xff]
      %v518 = vld [vmem:[%s1 + $0x168] sm:$0xff]
      %v519 = vld [vmem:[%s1 + $0x170] sm:$0xff]
      %v520 = vld [vmem:[%s1 + $0x178] sm:$0xff]
      %v521 = vld [vmem:[%s1 + $0x180] sm:$0xff]
      %v522 = vld [vmem:[%s1 + $0x188] sm:$0xff]
      %v523 = vld [vmem:[%s1 + $0x190] sm:$0xff]
      %v524 = vld [vmem:[%s1 + $0x198] sm:$0xff]
      %v525 = vld [vmem:[%s1 + $0x1a0] sm:$0xff]
      %v526 = vld [vmem:[%s1 + $0x1a8] sm:$0xff]
      %v527 = vld [vmem:[%s1 + $0x1b0] sm:$0xff]
      %v528 = vld [vmem:[%s1 + $0x1b8] sm:$0xff]
      %v529 = vld [vmem:[%s1 + $0x1c0] sm:$0xff]
      %v530 = vld [vmem:[%s1 + $0x1c8] sm:$0xff]
      %v531 = vld [vmem:[%s1 + $0x1d0] sm:$0xff]
      %v532 = vld [vmem:[%s1 + $0x1d8] sm:$0xff]
      %v533 = vld [vmem:[%s1 + $0x1e0] sm:$0xff]
      %v534 = vld [vmem:[%s1 + $0x1e8] sm:$0xff]
      %v535 = vld [vmem:[%s1 + $0x1f0] sm:$0xff]
      %v536 = vld [vmem:[%s1 + $0x1f8] sm:$0xff]
      %v537 = vld [vmem:[%s1 + $0x200] sm:$0xff]
      %v538 = vld [vmem:[%s1 + $0x208] sm:$0xff]
      %v539 = vld [vmem:[%s1 + $0x210] sm:$0xff]
      %v540 = vld [vmem:[%s1 + $0x218] sm:$0xff]
      %v541 = vld [vmem:[%s1 + $0x220] sm:$0xff]
      %v542 = vld [vmem:[%s1 + $0x228] sm:$0xff]
      %v543 = vld [vmem:[%s1 + $0x230] sm:$0xff]
      %v544 = vld [vmem:[%s1 + $0x238] sm:$0xff]
      %v545 = vld [vmem:[%s1 + $0x240] sm:$0xff]
      %v546 = vld [vmem:[%s1 + $0x248] sm:$0xff]
      %v547 = vld [vmem:[%s1 + $0x250] sm:$0xff]
      %v548 = vld [vmem:[%s1 + $0x258] sm:$0xff]
      %v549 = vld [vmem:[%s1 + $0x260] sm:$0xff]
      %v550 = vld [vmem:[%s1 + $0x268] sm:$0xff]
      %v551 = vld [vmem:[%s1 + $0x270] sm:$0xff]
      %v552 = vld [vmem:[%s1 + $0x278] sm:$0xff]
      %v553 = vld [vmem:[%s1 + $0x280] sm:$0xff]
      %v554 = vld [vmem:[%s1 + $0x288] sm:$0xff]
      %v555 = vld [vmem:[%s1 + $0x290] sm:$0xff]
      %v556 = vld [vmem:[%s1 + $0x298] sm:$0xff]
      %v557 = vld [vmem:[%s1 + $0x2a0] sm:$0xff]
      %v558 = vld [vmem:[%s1 + $0x2a8] sm:$0xff]
      %v559 = vld [vmem:[%s1 + $0x2b0] sm:$0xff]
      %v560 = vld [vmem:[%s1 + $0x2b8] sm:$0xff]
      %v561 = vld [vmem:[%s1 + $0x2c0] sm:$0xff]
      %v562 = vld [vmem:[%s1 + $0x2c8] sm:$0xff]
      %563 = vmatprep.subr.mxu0 0.0
      %564 = vmatpush1.msra.mxu0 %v441
      %565 = vmatprep.subr.mxu0 0.0
      %566 = vmatpush1.msra.mxu0 %v442
      %567 = vmatprep.subr.mxu0 0.0
      %568 = vmatpush1.msra.mxu0 %v443
      %569 = vmatprep.subr.mxu0 0.0
      %570 = vmatpush1.msra.mxu0 %v444
      %571 = vmatprep.subr.mxu0 0.0
      %572 = vmatpush1.msra.mxu0 %v445
      %573 = vmatprep.subr.mxu0 0.0
      %574 = vmatpush1.msra.mxu0 %v446
      %575 = vmatprep.subr.mxu0 0.0
      %576 = vmatpush1.msra.mxu0 %v447
      %577 = vmatprep.subr.mxu0 0.0
      %578 = vmatpush1.msra.mxu0 %v448
      %579 = vmatprep.subr.mxu0 0.0
      %580 = vmatpush1.msra.mxu0 %v449
      %581 = vmatprep.subr.mxu0 0.0
      %582 = vmatpush1.msra.mxu0 %v450
      %583 = vmatprep.subr.mxu0 0.0
      %584 = vmatpush1.msra.mxu0 %v451
      %585 = vmatprep.subr.mxu0 0.0
      %586 = vmatpush1.msra.mxu0 %v452
      %587 = vmatprep.subr.mxu0 0.0
      %588 = vmatpush1.msra.mxu0 %v453
      %589 = vmatprep.subr.mxu0 0.0
      %590 = vmatpush1.msra.mxu0 %v454
      %591 = vmatprep.subr.mxu0 0.0
      %592 = vmatpush1.msra.mxu0 %v455
      %593 = vmatprep.subr.mxu0 0.0
      %594 = vmatpush1.msra.mxu0 %v456
      %595 = vmatprep.subr.mxu0 0.0
      %596 = vmatpush1.msra.mxu0 %v457
      %597 = vmatprep.subr.mxu0 0.0
      %598 = vmatpush1.msra.mxu0 %v458
      %599 = vmatprep.subr.mxu0 0.0
      %600 = vmatpush1.msra.mxu0 %v459
      %601 = vmatprep.subr.mxu0 0.0
      %602 = vmatpush1.msra.mxu0 %v460
      %603 = vmatprep.subr.mxu0 0.0
      %604 = vmatpush1.msra.mxu0 %v461
      %605 = vmatprep.subr.mxu0 0.0
      %606 = vmatpush1.msra.mxu0 %v462
      %607 = vmatprep.subr.mxu0 0.0
      %608 = vmatpush1.msra.mxu0 %v463
      %609 = vmatprep.subr.mxu0 0.0
      %610 = vmatpush1.msra.mxu0 %v464
      %611 = vmatprep.subr.mxu0 0.0
      %612 = vmatpush1.msra.mxu0 %v465
      %613 = vmatprep.subr.mxu0 0.0
      %614 = vmatpush1.msra.mxu0 %v466
      %615 = vmatprep.subr.mxu0 0.0
      %616 = vmatpush1.msra.mxu0 %v467
      %617 = vmatprep.subr.mxu0 0.0
      %618 = vmatpush1.msra.mxu0 %v468
      %619 = vmatprep.subr.mxu0 0.0
      %620 = vmatpush1.msra.mxu0 %v469
      %621 = vmatprep.subr.mxu0 0.0
      %622 = vmatpush1.msra.mxu0 %v470
      %623 = vmatprep.subr.mxu0 0.0
      %624 = vmatpush1.msra.mxu0 %v471
      %625 = vmatprep.subr.mxu0 0.0
      %626 = vmatpush1.msra.mxu0 %v472
      %627 = vmatprep.mubr.f32.mxu0 %v474
      %628 = vmatmul.mubr.f32.gmra.mrb[0].mxu0 %v473
      %v629 = vpop.f32.mrb[0].mxu0
      %v630 = vadd.f32 0.0, %v629
      %v631 = vpop.f32.mrb[0].mxu0
      %632 = vmatprep.mubr.f32.mxu0 %v476
      %633 = vmatmul.mubr.f32.gmra.mrb[0].mxu0 %v475
      %v634 = vpop.f32.mrb[0].mxu0
      %v635 = vadd.f32 0.0, %v634
      %v636 = vpop.f32.mrb[0].mxu0
      %637 = vmatprep.mubr.f32.mxu0 %v478
      %638 = vmatmul.mubr.f32.gmra.mrb[0].mxu0 %v477
      %v639 = vpop.f32.mrb[0].mxu0
      %v640 = vadd.f32 0.0, %v639
      %v641 = vpop.f32.mrb[0].mxu0
      %642 = vmatprep.mubr.f32.mxu0 %v480
      %643 = vmatmul.mubr.f32.gmra.mrb[0].mxu0 %v479
      %v644 = vpop.f32.mrb[0].mxu0
      %v645 = vadd.f32 0.0, %v644
      %v646 = vpop.f32.mrb[0].mxu0
      %647 = vmatprep.mubr.f32.mxu0 %v482
      %648 = vmatmul.mubr.f32.gmra.mrb[0].mxu0 %v481
      %v649 = vpop.f32.mrb[0].mxu0
      %v650 = vadd.f32 0.0, %v649
      %v651 = vpop.f32.mrb[0].mxu0
      %652 = vmatprep.mubr.f32.mxu0 %v484
      %653 = vmatmul.mubr.f32.gmra.mrb[0].mxu0 %v483
      %v654 = vpop.f32.mrb[0].mxu0
      %v655 = vadd.f32 0.0, %v654
      %v656 = vpop.f32.mrb[0].mxu0
      %657 = vmatprep.mubr.f32.mxu0 %v486
      %658 = vmatmul.mubr.f32.gmra.mrb[0].mxu0 %v485
      %v659 = vpop.f32.mrb[0].mxu0
      %v660 = vadd.f32 0.0, %v659
      %v661 = vpop.f32.mrb[0].mxu0
      %662 = vmatprep.mubr.f32.mxu0 %v488
      %663 = vmatmul.mubr.f32.gmra.mrb[0].mxu0 %v487
      %v664 = vpop.f32.mrb[0].mxu0
      %v665 = vadd.f32 0.0, %v664
      %v666 = vpop.f32.mrb[0].mxu0
      %667 = vmatprep.mubr.f32.mxu0 %v490
      %668 = vmatmul.mubr.f32.gmra.mrb[0].mxu0 %v489
      %v669 = vpop.f32.mrb[0].mxu0
      %v670 = vadd.f32 0.0, %v669
      %v671 = vpop.f32.mrb[0].mxu0
      %672 = vmatprep.mubr.f32.mxu0 %v492
      %673 = vmatmul.mubr.f32.gmra.mrb[0].mxu0 %v491
      %v674 = vpop.f32.mrb[0].mxu0
      %v675 = vadd.f32 0.0, %v674
      %v676 = vpop.f32.mrb[0].mxu0
      %677 = vmatprep.mubr.f32.mxu0 %v494
      %678 = vmatmul.mubr.f32.gmra.mrb[0].mxu0 %v493
      %v679 = vpop.f32.mrb[0].mxu0
      %v680 = vadd.f32 0.0, %v679
      %v681 = vpop.f32.mrb[0].mxu0
      %682 = vmatprep.mubr.f32.mxu0 %v496
      %683 = vmatmul.mubr.f32.gmra.mrb[0].mxu0 %v495
      %v684 = vpop.f32.mrb[0].mxu0
      %v685 = vadd.f32 0.0, %v684
      %v686 = vpop.f32.mrb[0].mxu0
      %687 = vmatprep.mubr.f32.mxu0 %v498
      %688 = vmatmul.mubr.f32.gmra.mrb[0].mxu0 %v497
      %v689 = vpop.f32.mrb[0].mxu0
      %v690 = vadd.f32 0.0, %v689
      %v691 = vpop.f32.mrb[0].mxu0
      %692 = vmatprep.mubr.f32.mxu0 %v500
      %693 = vmatmul.mubr.f32.gmra.mrb[0].mxu0 %v499
      %v694 = vpop.f32.mrb[0].mxu0
      %v695 = vadd.f32 0.0, %v694
      %v696 = vpop.f32.mrb[0].mxu0
      %697 = vmatprep.mubr.f32.mxu0 %v502
      %698 = vmatmul.mubr.f32.gmra.mrb[0].mxu0 %v501
      %v699 = vpop.f32.mrb[0].mxu0
      %v700 = vadd.f32 0.0, %v699
      %v701 = vpop.f32.mrb[0].mxu0
      %702 = vmatprep.mubr.f32.mxu0 %v504
      %703 = vmatmul.mubr.f32.gmra.mrb[0].mxu0 %v503
      %v704 = vpop.f32.mrb[0].mxu0
      %v705 = vadd.f32 0.0, %v704
      %v706 = vpop.f32.mrb[0].mxu0
      %707 = vmatprep.mubr.f32.mxu0 %v506
      %708 = vmatmul.mubr.f32.gmra.mrb[0].mxu0 %v505
      %v709 = vpop.f32.mrb[0].mxu0
      %v710 = vadd.f32 0.0, %v709
      %v711 = vpop.f32.mrb[0].mxu0
      %712 = vmatprep.mubr.f32.mxu0 %v508
      %713 = vmatmul.mubr.f32.gmra.mrb[0].mxu0 %v507
      %v714 = vpop.f32.mrb[0].mxu0
      %v715 = vadd.f32 0.0, %v714
      %v716 = vpop.f32.mrb[0].mxu0
      %717 = vmatprep.mubr.f32.mxu0 %v510
      %718 = vmatmul.mubr.f32.gmra.mrb[0].mxu0 %v509
      %v719 = vpop.f32.mrb[0].mxu0
      %v720 = vadd.f32 0.0, %v719
      %v721 = vpop.f32.mrb[0].mxu0
      %722 = vmatprep.mubr.f32.mxu0 %v512
      %723 = vmatmul.mubr.f32.gmra.mrb[0].mxu0 %v511
      %v724 = vpop.f32.mrb[0].mxu0
      %v725 = vadd.f32 0.0, %v724
      %v726 = vpop.f32.mrb[0].mxu0
      %727 = vmatprep.mubr.f32.mxu0 %v514
      %728 = vmatmul.mubr.f32.gmra.mrb[0].mxu0 %v513
      %v729 = vpop.f32.mrb[0].mxu0
      %v730 = vadd.f32 0.0, %v729
      %v731 = vpop.f32.mrb[0].mxu0
      %732 = vmatprep.mubr.f32.mxu0 %v516
      %733 = vmatmul.mubr.f32.gmra.mrb[0].mxu0 %v515
      %v734 = vpop.f32.mrb[0].mxu0
      %v735 = vadd.f32 0.0, %v734
      %v736 = vpop.f32.mrb[0].mxu0
      %737 = vmatprep.mubr.f32.mxu0 %v518
      %738 = vmatmul.mubr.f32.gmra.mrb[0].mxu0 %v517
      %v739 = vpop.f32.mrb[0].mxu0
      %v740 = vadd.f32 0.0, %v739
      %v741 = vpop.f32.mrb[0].mxu0
      %742 = vmatprep.mubr.f32.mxu0 %v520
      %743 = vmatmul.mubr.f32.gmra.mrb[0].mxu0 %v519
      %v744 = vpop.f32.mrb[0].mxu0
      %v745 = vadd.f32 0.0, %v744
      %v746 = vpop.f32.mrb[0].mxu0
      %747 = vmatprep.mubr.f32.mxu0 %v522
      %748 = vmatmul.mubr.f32.gmra.mrb[0].mxu0 %v521
      %v749 = vpop.f32.mrb[0].mxu0
      %v750 = vadd.f32 0.0, %v749
      %v751 = vpop.f32.mrb[0].mxu0
      %752 = vmatprep.mubr.f32.mxu0 %v524
      %753 = vmatmul.mubr.f32.gmra.mrb[0].mxu0 %v523
      %v754 = vpop.f32.mrb[0].mxu0
      %v755 = vadd.f32 0.0, %v754
      %v756 = vpop.f32.mrb[0].mxu0
      %757 = vmatprep.mubr.f32.mxu0 %v526
      %758 = vmatmul.mubr.f32.gmra.mrb[0].mxu0 %v525
      %v759 = vpop.f32.mrb[0].mxu0
      %v760 = vadd.f32 0.0, %v759
      %v761 = vpop.f32.mrb[0].mxu0
      %762 = vmatprep.mubr.f32.mxu0 %v528
      %763 = vmatmul.mubr.f32.gmra.mrb[0].mxu0 %v527
      %v764 = vpop.f32.mrb[0].mxu0
      %v765 = vadd.f32 0.0, %v764
      %v766 = vpop.f32.mrb[0].mxu0
      %767 = vmatprep.mubr.f32.mxu0 %v530
      %768 = vmatmul.mubr.f32.gmra.mrb[0].mxu0 %v529
      %v769 = vpop.f32.mrb[0].mxu0
      %v770 = vadd.f32 0.0, %v769
      %v771 = vpop.f32.mrb[0].mxu0
      %772 = vmatprep.mubr.f32.mxu0 %v532
      %773 = vmatmul.mubr.f32.gmra.mrb[0].mxu0 %v531
      %v774 = vpop.f32.mrb[0].mxu0
      %v775 = vadd.f32 0.0, %v774
      %v776 = vpop.f32.mrb[0].mxu0
      %777 = vmatprep.mubr.f32.mxu0 %v534
      %778 = vmatmul.mubr.f32.gmra.mrb[0].mxu0 %v533
      %v779 = vpop.f32.mrb[0].mxu0
      %v780 = vadd.f32 0.0, %v779
      %v781 = vpop.f32.mrb[0].mxu0
      %782 = vmatprep.mubr.f32.mxu0 %v536
      %783 = vmatmul.mubr.f32.gmra.mrb[0].mxu0 %v535
      %v784 = vpop.f32.mrb[0].mxu0
      %v785 = vadd.f32 0.0, %v784
      %v786 = vpop.f32.mrb[0].mxu0
      %787 = vmatprep.mubr.f32.mxu0 %v538
      %788 = vmatmul.mubr.f32.gmra.mrb[0].mxu0 %v537
      %v789 = vpop.f32.mrb[0].mxu0
      %v790 = vadd.f32 0.0, %v789
      %v791 = vpop.f32.mrb[0].mxu0
      %792 = vmatprep.mubr.f32.mxu0 %v540
      %793 = vmatmul.mubr.f32.gmra.mrb[0].mxu0 %v539
      %v794 = vpop.f32.mrb[0].mxu0
      %v795 = vadd.f32 0.0, %v794
      %v796 = vpop.f32.mrb[0].mxu0
      %797 = vmatprep.mubr.f32.mxu0 %v542
      %798 = vmatmul.mubr.f32.gmra.mrb[0].mxu0 %v541
      %v799 = vpop.f32.mrb[0].mxu0
      %v800 = vadd.f32 0.0, %v799
      %v801 = vpop.f32.mrb[0].mxu0
      %802 = vmatprep.mubr.f32.mxu0 %v544
      %803 = vmatmul.mubr.f32.gmra.mrb[0].mxu0 %v543
      %v804 = vpop.f32.mrb[0].mxu0
      %v805 = vadd.f32 0.0, %v804
      %v806 = vpop.f32.mrb[0].mxu0
      %807 = vmatprep.mubr.f32.mxu0 %v546
      %808 = vmatmul.mubr.f32.gmra.mrb[0].mxu0 %v545
      %v809 = vpop.f32.mrb[0].mxu0
      %v810 = vadd.f32 0.0, %v809
      %v811 = vpop.f32.mrb[0].mxu0
      %812 = vmatprep.mubr.f32.mxu0 %v548
      %813 = vmatmul.mubr.f32.gmra.mrb[0].mxu0 %v547
      %v814 = vpop.f32.mrb[0].mxu0
      %v815 = vadd.f32 0.0, %v814
      %v816 = vpop.f32.mrb[0].mxu0
      %817 = vmatprep.mubr.f32.mxu0 %v550
      %818 = vmatmul.mubr.f32.gmra.mrb[0].mxu0 %v549
      %v819 = vpop.f32.mrb[0].mxu0
      %v820 = vadd.f32 0.0, %v819
      %v821 = vpop.f32.mrb[0].mxu0
      %822 = vmatprep.mubr.f32.mxu0 %v552
      %823 = vmatmul.mubr.f32.gmra.mrb[0].mxu0 %v551
      %v824 = vpop.f32.mrb[0].mxu0
      %v825 = vadd.f32 0.0, %v824
      %v826 = vpop.f32.mrb[0].mxu0
      %827 = vmatprep.mubr.f32.mxu0 %v554
      %828 = vmatmul.mubr.f32.gmra.mrb[0].mxu0 %v553
      %v829 = vpop.f32.mrb[0].mxu0
      %v830 = vadd.f32 0.0, %v829
      %v831 = vpop.f32.mrb[0].mxu0
      %832 = vmatprep.mubr.f32.mxu0 %v556
      %833 = vmatmul.mubr.f32.gmra.mrb[0].mxu0 %v555
      %v834 = vpop.f32.mrb[0].mxu0
      %v835 = vadd.f32 0.0, %v834
      %v836 = vpop.f32.mrb[0].mxu0
      %837 = vmatprep.mubr.f32.mxu0 %v558
      %838 = vmatmul.mubr.f32.gmra.mrb[0].mxu0 %v557
      %v839 = vpop.f32.mrb[0].mxu0
      %v840 = vadd.f32 0.0, %v839
      %v841 = vpop.f32.mrb[0].mxu0
      %842 = vmatprep.mubr.f32.mxu0 %v560
      %843 = vmatmul.mubr.f32.gmra.mrb[0].mxu0 %v559
      %v844 = vpop.f32.mrb[0].mxu0
      %v845 = vadd.f32 0.0, %v844
      %v846 = vpop.f32.mrb[0].mxu0
      %847 = vmatprep.mubr.f32.mxu0 %v562
      %848 = vmatmul.mubr.f32.gmra.mrb[0].mxu0 %v561
      %v849 = vpop.f32.mrb[0].mxu0
      %v850 = vadd.f32 0.0, %v849
      %v851 = vpop.f32.mrb[0].mxu0
      %852 = vdwg.mxu0
      %v853 = vld [vmem:[%s2] sm:$0xff]
      %v854 = vld [vmem:[%s2 + $0x8] sm:$0xff]
      %v855 = vld [vmem:[%s2 + $0x10] sm:$0xff]
      %v856 = vld [vmem:[%s2 + $0x18] sm:$0xff]
      %v857 = vld [vmem:[%s2 + $0x20] sm:$0xff]
      %v858 = vld [vmem:[%s2 + $0x28] sm:$0xff]
      %v859 = vld [vmem:[%s2 + $0x30] sm:$0xff]
      %v860 = vld [vmem:[%s2 + $0x38] sm:$0xff]
      %v861 = vld [vmem:[%s2 + $0x40] sm:$0xff]
      %v862 = vld [vmem:[%s2 + $0x48] sm:$0xff]
      %v863 = vld [vmem:[%s2 + $0x50] sm:$0xff]
      %v864 = vld [vmem:[%s2 + $0x58] sm:$0xff]
      %v865 = vld [vmem:[%s2 + $0x60] sm:$0xff]
      %v866 = vld [vmem:[%s2 + $0x68] sm:$0xff]
      %v867 = vld [vmem:[%s2 + $0x70] sm:$0xff]
      %v868 = vld [vmem:[%s2 + $0x78] sm:$0xff]
      %v869 = vld [vmem:[%s2 + $0x80] sm:$0xff]
      %v870 = vld [vmem:[%s2 + $0x88] sm:$0xff]
      %v871 = vld [vmem:[%s2 + $0x90] sm:$0xff]
      %v872 = vld [vmem:[%s2 + $0x98] sm:$0xff]
      %v873 = vld [vmem:[%s2 + $0xa0] sm:$0xff]
      %v874 = vld [vmem:[%s2 + $0xa8] sm:$0xff]
      %v875 = vld [vmem:[%s2 + $0xb0] sm:$0xff]
      %v876 = vld [vmem:[%s2 + $0xb8] sm:$0xff]
      %v877 = vld [vmem:[%s2 + $0xc0] sm:$0xff]
      %v878 = vld [vmem:[%s2 + $0xc8] sm:$0xff]
      %v879 = vld [vmem:[%s2 + $0xd0] sm:$0xff]
      %v880 = vld [vmem:[%s2 + $0xd8] sm:$0xff]
      %v881 = vld [vmem:[%s2 + $0xe0] sm:$0xff]
      %v882 = vld [vmem:[%s2 + $0xe8] sm:$0xff]
      %v883 = vld [vmem:[%s2 + $0xf0] sm:$0xff]
      %v884 = vld [vmem:[%s2 + $0xf8] sm:$0xff]
      %s885 = scalar_lea.vmem %s2, 256
      %v886 = vld [vmem:[%s885] sm:$0xff]
      %v887 = vld [vmem:[%s885 + $0x8] sm:$0xff]
      %v888 = vld [vmem:[%s885 + $0x10] sm:$0xff]
      %v889 = vld [vmem:[%s885 + $0x18] sm:$0xff]
      %v890 = vld [vmem:[%s885 + $0x20] sm:$0xff]
      %v891 = vld [vmem:[%s885 + $0x28] sm:$0xff]
      %v892 = vld [vmem:[%s885 + $0x30] sm:$0xff]
      %v893 = vld [vmem:[%s885 + $0x38] sm:$0xff]
      %v894 = vld [vmem:[%s885 + $0x40] sm:$0xff]
      %v895 = vld [vmem:[%s885 + $0x48] sm:$0xff]
      %v896 = vld [vmem:[%s885 + $0x50] sm:$0xff]
      %v897 = vld [vmem:[%s885 + $0x58] sm:$0xff]
      %v898 = vld [vmem:[%s885 + $0x60] sm:$0xff]
      %v899 = vld [vmem:[%s885 + $0x68] sm:$0xff]
      %v900 = vld [vmem:[%s885 + $0x70] sm:$0xff]
      %v901 = vld [vmem:[%s885 + $0x78] sm:$0xff]
      %v902 = vld [vmem:[%s885 + $0x80] sm:$0xff]
      %v903 = vld [vmem:[%s885 + $0x88] sm:$0xff]
      %v904 = vld [vmem:[%s885 + $0x90] sm:$0xff]
      %v905 = vld [vmem:[%s885 + $0x98] sm:$0xff]
      %v906 = vld [vmem:[%s885 + $0xa0] sm:$0xff]
      %v907 = vld [vmem:[%s885 + $0xa8] sm:$0xff]
      %v908 = vld [vmem:[%s885 + $0xb0] sm:$0xff]
      %v909 = vld [vmem:[%s885 + $0xb8] sm:$0xff]
      %v910 = vld [vmem:[%s885 + $0xc0] sm:$0xff]
      %v911 = vld [vmem:[%s885 + $0xc8] sm:$0xff]
      %v912 = vld [vmem:[%s885 + $0xd0] sm:$0xff]
      %v913 = vld [vmem:[%s885 + $0xd8] sm:$0xff]
      %v914 = vld [vmem:[%s885 + $0xe0] sm:$0xff]
      %v915 = vld [vmem:[%s885 + $0xe8] sm:$0xff]
      %v916 = vld [vmem:[%s885 + $0xf0] sm:$0xff]
      %v917 = vld [vmem:[%s885 + $0xf8] sm:$0xff]
      %s918 = scalar_lea.vmem %s2, 512
      %v919 = vld [vmem:[%s918] sm:$0xff]
      %v920 = vld [vmem:[%s918 + $0x8] sm:$0xff]
      %v921 = vld [vmem:[%s918 + $0x10] sm:$0xff]
      %v922 = vld [vmem:[%s918 + $0x18] sm:$0xff]
      %v923 = vld [vmem:[%s918 + $0x20] sm:$0xff]
      %v924 = vld [vmem:[%s918 + $0x28] sm:$0xff]
      %v925 = vld [vmem:[%s918 + $0x30] sm:$0xff]
      %v926 = vld [vmem:[%s918 + $0x38] sm:$0xff]
      %v927 = vld [vmem:[%s918 + $0x40] sm:$0xff]
      %v928 = vld [vmem:[%s918 + $0x48] sm:$0xff]
      %v929 = vld [vmem:[%s918 + $0x50] sm:$0xff]
      %v930 = vld [vmem:[%s918 + $0x58] sm:$0xff]
      %v931 = vld [vmem:[%s918 + $0x60] sm:$0xff]
      %v932 = vld [vmem:[%s918 + $0x68] sm:$0xff]
      %v933 = vld [vmem:[%s918 + $0x70] sm:$0xff]
      %v934 = vld [vmem:[%s918 + $0x78] sm:$0xff]
      %v935 = vld [vmem:[%s918 + $0x80] sm:$0xff]
      %v936 = vld [vmem:[%s918 + $0x88] sm:$0xff]
      %v937 = vld [vmem:[%s918 + $0x90] sm:$0xff]
      %v938 = vld [vmem:[%s918 + $0x98] sm:$0xff]
      %v939 = vld [vmem:[%s918 + $0xa0] sm:$0xff]
      %v940 = vld [vmem:[%s918 + $0xa8] sm:$0xff]
      %v941 = vld [vmem:[%s918 + $0xb0] sm:$0xff]
      %v942 = vld [vmem:[%s918 + $0xb8] sm:$0xff]
      %v943 = vld [vmem:[%s918 + $0xc0] sm:$0xff]
      %v944 = vld [vmem:[%s918 + $0xc8] sm:$0xff]
      %v945 = vld [vmem:[%s918 + $0xd0] sm:$0xff]
      %v946 = vld [vmem:[%s918 + $0xd8] sm:$0xff]
      %v947 = vld [vmem:[%s918 + $0xe0] sm:$0xff]
      %v948 = vld [vmem:[%s918 + $0xe8] sm:$0xff]
      %v949 = vld [vmem:[%s918 + $0xf0] sm:$0xff]
      %v950 = vld [vmem:[%s918 + $0xf8] sm:$0xff]
      %951 = vmatprep.subr.mxu0 %v920
      %952 = vmatpush1.msra.mxu0 %v919
      %953 = vmatprep.subr.mxu0 %v922
      %954 = vmatpush1.msra.mxu0 %v921
      %955 = vmatprep.subr.mxu0 %v924
      %956 = vmatpush1.msra.mxu0 %v923
      %957 = vmatprep.subr.mxu0 %v926
      %958 = vmatpush1.msra.mxu0 %v925
      %959 = vmatprep.subr.mxu0 %v928
      %960 = vmatpush1.msra.mxu0 %v927
      %961 = vmatprep.subr.mxu0 %v930
      %962 = vmatpush1.msra.mxu0 %v929
      %963 = vmatprep.subr.mxu0 %v932
      %964 = vmatpush1.msra.mxu0 %v931
      %965 = vmatprep.subr.mxu0 %v934
      %966 = vmatpush1.msra.mxu0 %v933
      %967 = vmatprep.subr.mxu0 %v936
      %968 = vmatpush1.msra.mxu0 %v935
      %969 = vmatprep.subr.mxu0 %v938
      %970 = vmatpush1.msra.mxu0 %v937
      %971 = vmatprep.subr.mxu0 %v940
      %972 = vmatpush1.msra.mxu0 %v939
      %973 = vmatprep.subr.mxu0 %v942
      %974 = vmatpush1.msra.mxu0 %v941
      %975 = vmatprep.subr.mxu0 %v944
      %976 = vmatpush1.msra.mxu0 %v943
      %977 = vmatprep.subr.mxu0 %v946
      %978 = vmatpush1.msra.mxu0 %v945
      %979 = vmatprep.subr.mxu0 %v948
      %980 = vmatpush1.msra.mxu0 %v947
      %981 = vmatprep.subr.mxu0 %v950
      %982 = vmatpush1.msra.mxu0 %v949
      %983 = vmatprep.subr.mxu0 0.0
      %984 = vmatpush1.msra.mxu0 0.0
      %985 = vmatprep.subr.mxu0 0.0
      %986 = vmatpush1.msra.mxu0 0.0
      %987 = vmatprep.subr.mxu0 0.0
      %988 = vmatpush1.msra.mxu0 0.0
      %989 = vmatprep.subr.mxu0 0.0
      %990 = vmatpush1.msra.mxu0 0.0
      %991 = vmatprep.subr.mxu0 0.0
      %992 = vmatpush1.msra.mxu0 0.0
      %993 = vmatprep.subr.mxu0 0.0
      %994 = vmatpush1.msra.mxu0 0.0
      %995 = vmatprep.subr.mxu0 0.0
      %996 = vmatpush1.msra.mxu0 0.0
      %997 = vmatprep.subr.mxu0 0.0
      %998 = vmatpush1.msra.mxu0 0.0
      %999 = vmatprep.subr.mxu0 0.0
      %1000 = vmatpush1.msra.mxu0 0.0
      %1001 = vmatprep.subr.mxu0 0.0
      %1002 = vmatpush1.msra.mxu0 0.0
      %1003 = vmatprep.subr.mxu0 0.0
      %1004 = vmatpush1.msra.mxu0 0.0
      %1005 = vmatprep.subr.mxu0 0.0
      %1006 = vmatpush1.msra.mxu0 0.0
      %1007 = vmatprep.subr.mxu0 0.0
      %1008 = vmatpush1.msra.mxu0 0.0
      %1009 = vmatprep.subr.mxu0 0.0
      %1010 = vmatpush1.msra.mxu0 0.0
      %1011 = vmatprep.subr.mxu0 0.0
      %1012 = vmatpush1.msra.mxu0 0.0
      %1013 = vmatprep.subr.mxu0 0.0
      %1014 = vmatpush1.msra.mxu0 0.0
      %1015 = vmatprep.mubr.f32.mxu0 0.0
      %1016 = vmatmul.mubr.f32.gmra.mrb[0].mxu0 %v780
      %v1017 = vpop.f32.mrb[0].mxu0
      %v1018 = vadd.f32 0.0, %v1017
      %v1019 = vpop.f32.mrb[0].mxu0
      %v1020 = vadd.f32 0.0, %v1019
      %1021 = vmatprep.mubr.f32.mxu0 0.0
      %1022 = vmatmul.mubr.f32.gmra.mrb[0].mxu0 %v785
      %v1023 = vpop.f32.mrb[0].mxu0
      %v1024 = vadd.f32 0.0, %v1023
      %v1025 = vpop.f32.mrb[0].mxu0
      %v1026 = vadd.f32 0.0, %v1025
      %1027 = vmatprep.mubr.f32.mxu0 0.0
      %1028 = vmatmul.mubr.f32.gmra.mrb[0].mxu0 %v790
      %v1029 = vpop.f32.mrb[0].mxu0
      %v1030 = vadd.f32 0.0, %v1029
      %v1031 = vpop.f32.mrb[0].mxu0
      %v1032 = vadd.f32 0.0, %v1031
      %1033 = vmatprep.mubr.f32.mxu0 0.0
      %1034 = vmatmul.mubr.f32.gmra.mrb[0].mxu0 %v795
      %v1035 = vpop.f32.mrb[0].mxu0
      %v1036 = vadd.f32 0.0, %v1035
      %v1037 = vpop.f32.mrb[0].mxu0
      %v1038 = vadd.f32 0.0, %v1037
      %1039 = vmatprep.mubr.f32.mxu0 0.0
      %1040 = vmatmul.mubr.f32.gmra.mrb[0].mxu0 %v800
      %v1041 = vpop.f32.mrb[0].mxu0
      %v1042 = vadd.f32 0.0, %v1041
      %v1043 = vpop.f32.mrb[0].mxu0
      %v1044 = vadd.f32 0.0, %v1043
      %1045 = vmatprep.mubr.f32.mxu0 0.0
      %1046 = vmatmul.mubr.f32.gmra.mrb[0].mxu0 %v805
      %v1047 = vpop.f32.mrb[0].mxu0
      %v1048 = vadd.f32 0.0, %v1047
      %v1049 = vpop.f32.mrb[0].mxu0
      %v1050 = vadd.f32 0.0, %v1049
      %1051 = vmatprep.mubr.f32.mxu0 0.0
      %1052 = vmatmul.mubr.f32.gmra.mrb[0].mxu0 %v810
      %v1053 = vpop.f32.mrb[0].mxu0
      %v1054 = vadd.f32 0.0, %v1053
      %v1055 = vpop.f32.mrb[0].mxu0
      %v1056 = vadd.f32 0.0, %v1055
      %1057 = vmatprep.mubr.f32.mxu0 0.0
      %1058 = vmatmul.mubr.f32.gmra.mrb[0].mxu0 %v815
      %v1059 = vpop.f32.mrb[0].mxu0
      %v1060 = vadd.f32 0.0, %v1059
      %v1061 = vpop.f32.mrb[0].mxu0
      %v1062 = vadd.f32 0.0, %v1061
      %1063 = vmatprep.mubr.f32.mxu0 0.0
      %1064 = vmatmul.mubr.f32.gmra.mrb[0].mxu0 %v820
      %v1065 = vpop.f32.mrb[0].mxu0
      %v1066 = vadd.f32 0.0, %v1065
      %v1067 = vpop.f32.mrb[0].mxu0
      %v1068 = vadd.f32 0.0, %v1067
      %1069 = vmatprep.mubr.f32.mxu0 0.0
      %1070 = vmatmul.mubr.f32.gmra.mrb[0].mxu0 %v825
      %v1071 = vpop.f32.mrb[0].mxu0
      %v1072 = vadd.f32 0.0, %v1071
      %v1073 = vpop.f32.mrb[0].mxu0
      %v1074 = vadd.f32 0.0, %v1073
      %1075 = vmatprep.mubr.f32.mxu0 0.0
      %1076 = vmatmul.mubr.f32.gmra.mrb[0].mxu0 %v830
      %v1077 = vpop.f32.mrb[0].mxu0
      %v1078 = vadd.f32 0.0, %v1077
      %v1079 = vpop.f32.mrb[0].mxu0
      %v1080 = vadd.f32 0.0, %v1079
      %1081 = vmatprep.mubr.f32.mxu0 0.0
      %1082 = vmatmul.mubr.f32.gmra.mrb[0].mxu0 %v835
      %v1083 = vpop.f32.mrb[0].mxu0
      %v1084 = vadd.f32 0.0, %v1083
      %v1085 = vpop.f32.mrb[0].mxu0
      %v1086 = vadd.f32 0.0, %v1085
      %1087 = vmatprep.mubr.f32.mxu0 0.0
      %1088 = vmatmul.mubr.f32.gmra.mrb[0].mxu0 %v840
      %v1089 = vpop.f32.mrb[0].mxu0
      %v1090 = vadd.f32 0.0, %v1089
      %v1091 = vpop.f32.mrb[0].mxu0
      %v1092 = vadd.f32 0.0, %v1091
      %1093 = vmatprep.mubr.f32.mxu0 0.0
      %1094 = vmatmul.mubr.f32.gmra.mrb[0].mxu0 %v845
      %v1095 = vpop.f32.mrb[0].mxu0
      %v1096 = vadd.f32 0.0, %v1095
      %v1097 = vpop.f32.mrb[0].mxu0
      %v1098 = vadd.f32 0.0, %v1097
      %1099 = vmatprep.mubr.f32.mxu0 0.0
      %1100 = vmatmul.mubr.f32.gmra.mrb[0].mxu0 %v850
      %v1101 = vpop.f32.mrb[0].mxu0
      %v1102 = vadd.f32 0.0, %v1101
      %v1103 = vpop.f32.mrb[0].mxu0
      %v1104 = vadd.f32 0.0, %v1103
      %1105 = vdwg.mxu0
      %v1106 = vld [vmem:[%s3] sm:$0x3]
      %v1108 = vlaneseq
      %v1109 = vshrl.u32 %v1108, 7
      %v1110 = vsub.s32 0, %v1109
      %v1111 = vrot.slane %v1106, %v1110
      %v1112 = vlaneseq
      %v1113 = vshrl.u32 %v1112, 7
      %v1114 = vsub.s32 1, %v1113
      %v1115 = vrot.slane %v1106, %v1114
      %1118 = vmatprep.subr.mxu0 %v887
      %1119 = vmatpush1.msra.mxu0 %v886
      %1120 = vmatprep.subr.mxu0 %v889
      %1121 = vmatpush1.msra.mxu0 %v888
      %1122 = vmatprep.subr.mxu0 %v891
      %1123 = vmatpush1.msra.mxu0 %v890
      %1124 = vmatprep.subr.mxu0 %v893
      %1125 = vmatpush1.msra.mxu0 %v892
      %1126 = vmatprep.subr.mxu0 %v895
      %1127 = vmatpush1.msra.mxu0 %v894
      %1128 = vmatprep.subr.mxu0 %v897
      %1129 = vmatpush1.msra.mxu0 %v896
      %1130 = vmatprep.subr.mxu0 %v899
      %1131 = vmatpush1.msra.mxu0 %v898
      %1132 = vmatprep.subr.mxu0 %v901
      %1133 = vmatpush1.msra.mxu0 %v900
      %1134 = vmatprep.subr.mxu0 %v903
      %1135 = vmatpush1.msra.mxu0 %v902
      %1136 = vmatprep.subr.mxu0 %v905
      %1137 = vmatpush1.msra.mxu0 %v904
      %1138 = vmatprep.subr.mxu0 %v907
      %1139 = vmatpush1.msra.mxu0 %v906
      %1140 = vmatprep.subr.mxu0 %v909
      %1141 = vmatpush1.msra.mxu0 %v908
      %1142 = vmatprep.subr.mxu0 %v911
      %1143 = vmatpush1.msra.mxu0 %v910
      %1144 = vmatprep.subr.mxu0 %v913
      %1145 = vmatpush1.msra.mxu0 %v912
      %1146 = vmatprep.subr.mxu0 %v915
      %1147 = vmatpush1.msra.mxu0 %v914
      %1148 = vmatprep.subr.mxu0 %v917
      %1149 = vmatpush1.msra.mxu0 %v916
      %1150 = vmatprep.subr.mxu0 0.0
      %1151 = vmatpush1.msra.mxu0 0.0
      %1152 = vmatprep.subr.mxu0 0.0
      %1153 = vmatpush1.msra.mxu0 0.0
      %1154 = vmatprep.subr.mxu0 0.0
      %1155 = vmatpush1.msra.mxu0 0.0
      %1156 = vmatprep.subr.mxu0 0.0
      %1157 = vmatpush1.msra.mxu0 0.0
      %1158 = vmatprep.subr.mxu0 0.0
      %1159 = vmatpush1.msra.mxu0 0.0
      %1160 = vmatprep.subr.mxu0 0.0
      %1161 = vmatpush1.msra.mxu0 0.0
      %1162 = vmatprep.subr.mxu0 0.0
      %1163 = vmatpush1.msra.mxu0 0.0
      %1164 = vmatprep.subr.mxu0 0.0
      %1165 = vmatpush1.msra.mxu0 0.0
      %1166 = vmatprep.subr.mxu0 0.0
      %1167 = vmatpush1.msra.mxu0 0.0
      %1168 = vmatprep.subr.mxu0 0.0
      %1169 = vmatpush1.msra.mxu0 0.0
      %1170 = vmatprep.subr.mxu0 0.0
      %1171 = vmatpush1.msra.mxu0 0.0
      %1172 = vmatprep.subr.mxu0 0.0
      %1173 = vmatpush1.msra.mxu0 0.0
      %1174 = vmatprep.subr.mxu0 0.0
      %1175 = vmatpush1.msra.mxu0 0.0
      %1176 = vmatprep.subr.mxu0 0.0
      %1177 = vmatpush1.msra.mxu0 0.0
      %1178 = vmatprep.subr.mxu0 0.0
      %1179 = vmatpush1.msra.mxu0 0.0
      %1180 = vmatprep.subr.mxu0 0.0
      %1181 = vmatpush1.msra.mxu0 0.0
      %1182 = vmatprep.mubr.f32.mxu0 0.0
      %1183 = vmatmul.mubr.f32.gmra.mrb[0].mxu0 %v705
      %v1184 = vpop.f32.mrb[0].mxu0
      %v1185 = vadd.f32 %v1111, %v1184
      %v1186 = vpop.f32.mrb[0].mxu0
      %v1187 = vadd.f32 %v1115, %v1186
      %1188 = vmatprep.mubr.f32.mxu0 0.0
      %1189 = vmatmul.mubr.f32.gmra.mrb[0].mxu0 %v710
      %v1190 = vpop.f32.mrb[0].mxu0
      %v1191 = vadd.f32 %v1111, %v1190
      %v1192 = vpop.f32.mrb[0].mxu0
      %v1193 = vadd.f32 %v1115, %v1192
      %1194 = vmatprep.mubr.f32.mxu0 0.0
      %1195 = vmatmul.mubr.f32.gmra.mrb[0].mxu0 %v715
      %v1196 = vpop.f32.mrb[0].mxu0
      %v1197 = vadd.f32 %v1111, %v1196
      %v1198 = vpop.f32.mrb[0].mxu0
      %v1199 = vadd.f32 %v1115, %v1198
      %1200 = vmatprep.mubr.f32.mxu0 0.0
      %1201 = vmatmul.mubr.f32.gmra.mrb[0].mxu0 %v720
      %v1202 = vpop.f32.mrb[0].mxu0
      %v1203 = vadd.f32 %v1111, %v1202
      %v1204 = vpop.f32.mrb[0].mxu0
      %v1205 = vadd.f32 %v1115, %v1204
      %1206 = vmatprep.mubr.f32.mxu0 0.0
      %1207 = vmatmul.mubr.f32.gmra.mrb[0].mxu0 %v725
      %v1208 = vpop.f32.mrb[0].mxu0
      %v1209 = vadd.f32 %v1111, %v1208
      %v1210 = vpop.f32.mrb[0].mxu0
      %v1211 = vadd.f32 %v1115, %v1210
      %1212 = vmatprep.mubr.f32.mxu0 0.0
      %1213 = vmatmul.mubr.f32.gmra.mrb[0].mxu0 %v730
      %v1214 = vpop.f32.mrb[0].mxu0
      %v1215 = vadd.f32 %v1111, %v1214
      %v1216 = vpop.f32.mrb[0].mxu0
      %v1217 = vadd.f32 %v1115, %v1216
      %1218 = vmatprep.mubr.f32.mxu0 0.0
      %1219 = vmatmul.mubr.f32.gmra.mrb[0].mxu0 %v735
      %v1220 = vpop.f32.mrb[0].mxu0
      %v1221 = vadd.f32 %v1111, %v1220
      %v1222 = vpop.f32.mrb[0].mxu0
      %v1223 = vadd.f32 %v1115, %v1222
      %1224 = vmatprep.mubr.f32.mxu0 0.0
      %1225 = vmatmul.mubr.f32.gmra.mrb[0].mxu0 %v740
      %v1226 = vpop.f32.mrb[0].mxu0
      %v1227 = vadd.f32 %v1111, %v1226
      %v1228 = vpop.f32.mrb[0].mxu0
      %v1229 = vadd.f32 %v1115, %v1228
      %1230 = vmatprep.mubr.f32.mxu0 0.0
      %1231 = vmatmul.mubr.f32.gmra.mrb[0].mxu0 %v745
      %v1232 = vpop.f32.mrb[0].mxu0
      %v1233 = vadd.f32 %v1111, %v1232
      %v1234 = vpop.f32.mrb[0].mxu0
      %v1235 = vadd.f32 %v1115, %v1234
      %1236 = vmatprep.mubr.f32.mxu0 0.0
      %1237 = vmatmul.mubr.f32.gmra.mrb[0].mxu0 %v750
      %v1238 = vpop.f32.mrb[0].mxu0
      %v1239 = vadd.f32 %v1111, %v1238
      %v1240 = vpop.f32.mrb[0].mxu0
      %v1241 = vadd.f32 %v1115, %v1240
      %1242 = vmatprep.mubr.f32.mxu0 0.0
      %1243 = vmatmul.mubr.f32.gmra.mrb[0].mxu0 %v755
      %v1244 = vpop.f32.mrb[0].mxu0
      %v1245 = vadd.f32 %v1111, %v1244
      %v1246 = vpop.f32.mrb[0].mxu0
      %v1247 = vadd.f32 %v1115, %v1246
      %1248 = vmatprep.mubr.f32.mxu0 0.0
      %1249 = vmatmul.mubr.f32.gmra.mrb[0].mxu0 %v760
      %v1250 = vpop.f32.mrb[0].mxu0
      %v1251 = vadd.f32 %v1111, %v1250
      %v1252 = vpop.f32.mrb[0].mxu0
      %v1253 = vadd.f32 %v1115, %v1252
      %1254 = vmatprep.mubr.f32.mxu0 0.0
      %1255 = vmatmul.mubr.f32.gmra.mrb[0].mxu0 %v765
      %v1256 = vpop.f32.mrb[0].mxu0
      %v1257 = vadd.f32 %v1111, %v1256
      %v1258 = vpop.f32.mrb[0].mxu0
      %v1259 = vadd.f32 %v1115, %v1258
      %1260 = vmatprep.mubr.f32.mxu0 0.0
      %1261 = vmatmul.mubr.f32.gmra.mrb[0].mxu0 %v770
      %v1262 = vpop.f32.mrb[0].mxu0
      %v1263 = vadd.f32 %v1111, %v1262
      %v1264 = vpop.f32.mrb[0].mxu0
      %v1265 = vadd.f32 %v1115, %v1264
      %1266 = vmatprep.mubr.f32.mxu0 0.0
      %1267 = vmatmul.mubr.f32.gmra.mrb[0].mxu0 %v775
      %v1268 = vpop.f32.mrb[0].mxu0
      %v1269 = vadd.f32 %v1111, %v1268
      %v1270 = vpop.f32.mrb[0].mxu0
      %v1271 = vadd.f32 %v1115, %v1270
      %1272 = vdwg.mxu0
      %1273 = vmatprep.subr.mxu0 %v854
      %1274 = vmatpush1.msra.mxu0 %v853
      %1275 = vmatprep.subr.mxu0 %v856
      %1276 = vmatpush1.msra.mxu0 %v855
      %1277 = vmatprep.subr.mxu0 %v858
      %1278 = vmatpush1.msra.mxu0 %v857
      %1279 = vmatprep.subr.mxu0 %v860
      %1280 = vmatpush1.msra.mxu0 %v859
      %1281 = vmatprep.subr.mxu0 %v862
      %1282 = vmatpush1.msra.mxu0 %v861
      %1283 = vmatprep.subr.mxu0 %v864
      %1284 = vmatpush1.msra.mxu0 %v863
      %1285 = vmatprep.subr.mxu0 %v866
      %1286 = vmatpush1.msra.mxu0 %v865
      %1287 = vmatprep.subr.mxu0 %v868
      %1288 = vmatpush1.msra.mxu0 %v867
      %1289 = vmatprep.subr.mxu0 %v870
      %1290 = vmatpush1.msra.mxu0 %v869
      %1291 = vmatprep.subr.mxu0 %v872
      %1292 = vmatpush1.msra.mxu0 %v871
      %1293 = vmatprep.subr.mxu0 %v874
      %1294 = vmatpush1.msra.mxu0 %v873
      %1295 = vmatprep.subr.mxu0 %v876
      %1296 = vmatpush1.msra.mxu0 %v875
      %1297 = vmatprep.subr.mxu0 %v878
      %1298 = vmatpush1.msra.mxu0 %v877
      %1299 = vmatprep.subr.mxu0 %v880
      %1300 = vmatpush1.msra.mxu0 %v879
      %1301 = vmatprep.subr.mxu0 %v882
      %1302 = vmatpush1.msra.mxu0 %v881
      %1303 = vmatprep.subr.mxu0 %v884
      %1304 = vmatpush1.msra.mxu0 %v883
      %1305 = vmatprep.subr.mxu0 0.0
      %1306 = vmatpush1.msra.mxu0 0.0
      %1307 = vmatprep.subr.mxu0 0.0
      %1308 = vmatpush1.msra.mxu0 0.0
      %1309 = vmatprep.subr.mxu0 0.0
      %1310 = vmatpush1.msra.mxu0 0.0
      %1311 = vmatprep.subr.mxu0 0.0
      %1312 = vmatpush1.msra.mxu0 0.0
      %1313 = vmatprep.subr.mxu0 0.0
      %1314 = vmatpush1.msra.mxu0 0.0
      %1315 = vmatprep.subr.mxu0 0.0
      %1316 = vmatpush1.msra.mxu0 0.0
      %1317 = vmatprep.subr.mxu0 0.0
      %1318 = vmatpush1.msra.mxu0 0.0
      %1319 = vmatprep.subr.mxu0 0.0
      %1320 = vmatpush1.msra.mxu0 0.0
      %1321 = vmatprep.subr.mxu0 0.0
      %1322 = vmatpush1.msra.mxu0 0.0
      %1323 = vmatprep.subr.mxu0 0.0
      %1324 = vmatpush1.msra.mxu0 0.0
      %1325 = vmatprep.subr.mxu0 0.0
      %1326 = vmatpush1.msra.mxu0 0.0
      %1327 = vmatprep.subr.mxu0 0.0
      %1328 = vmatpush1.msra.mxu0 0.0
      %1329 = vmatprep.subr.mxu0 0.0
      %1330 = vmatpush1.msra.mxu0 0.0
      %1331 = vmatprep.subr.mxu0 0.0
      %1332 = vmatpush1.msra.mxu0 0.0
      %1333 = vmatprep.subr.mxu0 0.0
      %1334 = vmatpush1.msra.mxu0 0.0
      %1335 = vmatprep.subr.mxu0 0.0
      %1336 = vmatpush1.msra.mxu0 0.0
      %1337 = vmatprep.mubr.f32.mxu0 0.0
      %1338 = vmatmul.mubr.f32.gmra.mrb[0].mxu0 %v630
      %v1339 = vpop.f32.mrb[0].mxu0
      %v1340 = vadd.f32 %v1018, %v1339
      %v1341 = vpop.f32.mrb[0].mxu0
      %v1342 = vadd.f32 %v1020, %v1341
      %1343 = vmatprep.mubr.f32.mxu0 0.0
      %1344 = vmatmul.mubr.f32.gmra.mrb[0].mxu0 %v635
      %v1345 = vpop.f32.mrb[0].mxu0
      %v1346 = vadd.f32 %v1024, %v1345
      %v1347 = vpop.f32.mrb[0].mxu0
      %v1348 = vadd.f32 %v1026, %v1347
      %1349 = vmatprep.mubr.f32.mxu0 0.0
      %1350 = vmatmul.mubr.f32.gmra.mrb[0].mxu0 %v640
      %v1351 = vpop.f32.mrb[0].mxu0
      %v1352 = vadd.f32 %v1030, %v1351
      %v1353 = vpop.f32.mrb[0].mxu0
      %v1354 = vadd.f32 %v1032, %v1353
      %1355 = vmatprep.mubr.f32.mxu0 0.0
      %1356 = vmatmul.mubr.f32.gmra.mrb[0].mxu0 %v645
      %v1357 = vpop.f32.mrb[0].mxu0
      %v1358 = vadd.f32 %v1036, %v1357
      %v1359 = vpop.f32.mrb[0].mxu0
      %v1360 = vadd.f32 %v1038, %v1359
      %1361 = vmatprep.mubr.f32.mxu0 0.0
      %1362 = vmatmul.mubr.f32.gmra.mrb[0].mxu0 %v650
      %v1363 = vpop.f32.mrb[0].mxu0
      %v1364 = vadd.f32 %v1042, %v1363
      %v1365 = vpop.f32.mrb[0].mxu0
      %v1366 = vadd.f32 %v1044, %v1365
      %1367 = vmatprep.mubr.f32.mxu0 0.0
      %1368 = vmatmul.mubr.f32.gmra.mrb[0].mxu0 %v655
      %v1369 = vpop.f32.mrb[0].mxu0
      %v1370 = vadd.f32 %v1048, %v1369
      %v1371 = vpop.f32.mrb[0].mxu0
      %v1372 = vadd.f32 %v1050, %v1371
      %1373 = vmatprep.mubr.f32.mxu0 0.0
      %1374 = vmatmul.mubr.f32.gmra.mrb[0].mxu0 %v660
      %v1375 = vpop.f32.mrb[0].mxu0
      %v1376 = vadd.f32 %v1054, %v1375
      %v1377 = vpop.f32.mrb[0].mxu0
      %v1378 = vadd.f32 %v1056, %v1377
      %1379 = vmatprep.mubr.f32.mxu0 0.0
      %1380 = vmatmul.mubr.f32.gmra.mrb[0].mxu0 %v665
      %v1381 = vpop.f32.mrb[0].mxu0
      %v1382 = vadd.f32 %v1060, %v1381
      %v1383 = vpop.f32.mrb[0].mxu0
      %v1384 = vadd.f32 %v1062, %v1383
      %1385 = vmatprep.mubr.f32.mxu0 0.0
      %1386 = vmatmul.mubr.f32.gmra.mrb[0].mxu0 %v670
      %v1387 = vpop.f32.mrb[0].mxu0
      %v1388 = vadd.f32 %v1066, %v1387
      %v1389 = vpop.f32.mrb[0].mxu0
      %v1390 = vadd.f32 %v1068, %v1389
      %1391 = vmatprep.mubr.f32.mxu0 0.0
      %1392 = vmatmul.mubr.f32.gmra.mrb[0].mxu0 %v675
      %v1393 = vpop.f32.mrb[0].mxu0
      %v1394 = vadd.f32 %v1072, %v1393
      %v1395 = vpop.f32.mrb[0].mxu0
      %v1396 = vadd.f32 %v1074, %v1395
      %1397 = vmatprep.mubr.f32.mxu0 0.0
      %1398 = vmatmul.mubr.f32.gmra.mrb[0].mxu0 %v680
      %v1399 = vpop.f32.mrb[0].mxu0
      %v1400 = vadd.f32 %v1078, %v1399
      %v1401 = vpop.f32.mrb[0].mxu0
      %v1402 = vadd.f32 %v1080, %v1401
      %1403 = vmatprep.mubr.f32.mxu0 0.0
      %1404 = vmatmul.mubr.f32.gmra.mrb[0].mxu0 %v685
      %v1405 = vpop.f32.mrb[0].mxu0
      %v1406 = vadd.f32 %v1084, %v1405
      %v1407 = vpop.f32.mrb[0].mxu0
      %v1408 = vadd.f32 %v1086, %v1407
      %1409 = vmatprep.mubr.f32.mxu0 0.0
      %1410 = vmatmul.mubr.f32.gmra.mrb[0].mxu0 %v690
      %v1411 = vpop.f32.mrb[0].mxu0
      %v1412 = vadd.f32 %v1090, %v1411
      %v1413 = vpop.f32.mrb[0].mxu0
      %v1414 = vadd.f32 %v1092, %v1413
      %1415 = vmatprep.mubr.f32.mxu0 0.0
      %1416 = vmatmul.mubr.f32.gmra.mrb[0].mxu0 %v695
      %v1417 = vpop.f32.mrb[0].mxu0
      %v1418 = vadd.f32 %v1096, %v1417
      %v1419 = vpop.f32.mrb[0].mxu0
      %v1420 = vadd.f32 %v1098, %v1419
      %1421 = vmatprep.mubr.f32.mxu0 0.0
      %1422 = vmatmul.mubr.f32.gmra.mrb[0].mxu0 %v700
      %v1423 = vpop.f32.mrb[0].mxu0
      %v1424 = vadd.f32 %v1102, %v1423
      %v1425 = vpop.f32.mrb[0].mxu0
      %v1426 = vadd.f32 %v1104, %v1425
      %1427 = vdwg.mxu0
      %v1428 = vadd.f32 %v1340, %v1185
      %v1429 = vadd.f32 %v1342, %v1187
      %v1430 = vadd.f32 %v1346, %v1191
      %v1431 = vadd.f32 %v1348, %v1193
      %v1432 = vadd.f32 %v1352, %v1197
      %v1433 = vadd.f32 %v1354, %v1199
      %v1434 = vadd.f32 %v1358, %v1203
      %v1435 = vadd.f32 %v1360, %v1205
      %v1436 = vadd.f32 %v1364, %v1209
      %v1437 = vadd.f32 %v1366, %v1211
      %v1438 = vadd.f32 %v1370, %v1215
      %v1439 = vadd.f32 %v1372, %v1217
      %v1440 = vadd.f32 %v1376, %v1221
      %v1441 = vadd.f32 %v1378, %v1223
      %v1442 = vadd.f32 %v1382, %v1227
      %v1443 = vadd.f32 %v1384, %v1229
      %v1444 = vadd.f32 %v1388, %v1233
      %v1445 = vadd.f32 %v1390, %v1235
      %v1446 = vadd.f32 %v1394, %v1239
      %v1447 = vadd.f32 %v1396, %v1241
      %v1448 = vadd.f32 %v1400, %v1245
      %v1449 = vadd.f32 %v1402, %v1247
      %v1450 = vadd.f32 %v1406, %v1251
      %v1451 = vadd.f32 %v1408, %v1253
      %v1452 = vadd.f32 %v1412, %v1257
      %v1453 = vadd.f32 %v1414, %v1259
      %v1454 = vadd.f32 %v1418, %v1263
      %v1455 = vadd.f32 %v1420, %v1265
      %v1456 = vadd.f32 %v1424, %v1269
      %v1457 = vadd.f32 %v1426, %v1271
      %v1458 = vmax.f32 %v1428, 0.0
      %v1459 = vmax.f32 %v1429, 0.0
      %v1460 = vmax.f32 %v1430, 0.0
      %v1461 = vmax.f32 %v1431, 0.0
      %v1462 = vmax.f32 %v1432, 0.0
      %v1463 = vmax.f32 %v1433, 0.0
      %v1464 = vmax.f32 %v1434, 0.0
      %v1465 = vmax.f32 %v1435, 0.0
      %v1466 = vmax.f32 %v1436, 0.0
      %v1467 = vmax.f32 %v1437, 0.0
      %v1468 = vmax.f32 %v1438, 0.0
      %v1469 = vmax.f32 %v1439, 0.0
      %v1470 = vmax.f32 %v1440, 0.0
      %v1471 = vmax.f32 %v1441, 0.0
      %v1472 = vmax.f32 %v1442, 0.0
      %v1473 = vmax.f32 %v1443, 0.0
      %v1474 = vmax.f32 %v1444, 0.0
      %v1475 = vmax.f32 %v1445, 0.0
      %v1476 = vmax.f32 %v1446, 0.0
      %v1477 = vmax.f32 %v1447, 0.0
      %v1478 = vmax.f32 %v1448, 0.0
      %v1479 = vmax.f32 %v1449, 0.0
      %v1480 = vmax.f32 %v1450, 0.0
      %v1481 = vmax.f32 %v1451, 0.0
      %v1482 = vmax.f32 %v1452, 0.0
      %v1483 = vmax.f32 %v1453, 0.0
      %v1484 = vmax.f32 %v1454, 0.0
      %v1485 = vmax.f32 %v1455, 0.0
      %v1486 = vmax.f32 %v1456, 0.0
      %v1487 = vmax.f32 %v1457, 0.0
      %v1488 = vld [vmem:[%s4] sm:$0xff]
      %v1489 = vld [vmem:[%s4 + $0x8] sm:$0xff]
      %v1490 = vld [vmem:[%s4 + $0x10] sm:$0xff]
      %v1491 = vld [vmem:[%s4 + $0x18] sm:$0xff]
      %v1492 = vld [vmem:[%s4 + $0x20] sm:$0xff]
      %v1493 = vld [vmem:[%s4 + $0x28] sm:$0xff]
      %v1494 = vld [vmem:[%s4 + $0x30] sm:$0xff]
      %v1495 = vld [vmem:[%s4 + $0x38] sm:$0xff]
      %v1496 = vld [vmem:[%s4 + $0x40] sm:$0xff]
      %v1497 = vld [vmem:[%s4 + $0x48] sm:$0xff]
      %v1498 = vld [vmem:[%s4 + $0x50] sm:$0xff]
      %v1499 = vld [vmem:[%s4 + $0x58] sm:$0xff]
      %v1500 = vld [vmem:[%s4 + $0x60] sm:$0xff]
      %v1501 = vld [vmem:[%s4 + $0x68] sm:$0xff]
      %v1502 = vld [vmem:[%s4 + $0x70] sm:$0xff]
      %v1503 = vld [vmem:[%s4 + $0x78] sm:$0xff]
      %v1504 = vld [vmem:[%s4 + $0x80] sm:$0xff]
      %v1505 = vld [vmem:[%s4 + $0x88] sm:$0xff]
      %v1506 = vld [vmem:[%s4 + $0x90] sm:$0xff]
      %v1507 = vld [vmem:[%s4 + $0x98] sm:$0xff]
      %v1508 = vld [vmem:[%s4 + $0xa0] sm:$0xff]
      %vm1509 = vcmask 982016
      %v1511 = vsel %vm1509, %v1488, 0
      %v1514 = vsel %vm1509, %v1489, 0
      %v1517 = vsel %vm1509, %v1490, 0
      %v1520 = vsel %vm1509, %v1491, 0
      %v1523 = vsel %vm1509, %v1492, 0
      %v1526 = vsel %vm1509, %v1493, 0
      %v1529 = vsel %vm1509, %v1494, 0
      %v1532 = vsel %vm1509, %v1495, 0
      %v1535 = vsel %vm1509, %v1496, 0
      %v1538 = vsel %vm1509, %v1497, 0
      %v1541 = vsel %vm1509, %v1498, 0
      %v1544 = vsel %vm1509, %v1499, 0
      %v1547 = vsel %vm1509, %v1500, 0
      %v1550 = vsel %vm1509, %v1501, 0
      %v1553 = vsel %vm1509, %v1502, 0
      %v1556 = vsel %vm1509, %v1503, 0
      %v1559 = vsel %vm1509, %v1504, 0
      %v1562 = vsel %vm1509, %v1505, 0
      %v1565 = vsel %vm1509, %v1506, 0
      %v1568 = vsel %vm1509, %v1507, 0
      %v1571 = vsel %vm1509, %v1508, 0
      %1573 = vmatprep.subr.mxu0 %v1459
      %1574 = vmatpush1.msra.mxu0 %v1458
      %1575 = vmatprep.subr.mxu0 %v1461
      %1576 = vmatpush1.msra.mxu0 %v1460
      %1577 = vmatprep.subr.mxu0 %v1463
      %1578 = vmatpush1.msra.mxu0 %v1462
      %1579 = vmatprep.subr.mxu0 %v1465
      %1580 = vmatpush1.msra.mxu0 %v1464
      %1581 = vmatprep.subr.mxu0 %v1467
      %1582 = vmatpush1.msra.mxu0 %v1466
      %1583 = vmatprep.subr.mxu0 %v1469
      %1584 = vmatpush1.msra.mxu0 %v1468
      %1585 = vmatprep.subr.mxu0 %v1471
      %1586 = vmatpush1.msra.mxu0 %v1470
      %1587 = vmatprep.subr.mxu0 %v1473
      %1588 = vmatpush1.msra.mxu0 %v1472
      %1589 = vmatprep.subr.mxu0 %v1475
      %1590 = vmatpush1.msra.mxu0 %v1474
      %1591 = vmatprep.subr.mxu0 %v1477
      %1592 = vmatpush1.msra.mxu0 %v1476
      %1593 = vmatprep.subr.mxu0 %v1479
      %1594 = vmatpush1.msra.mxu0 %v1478
      %1595 = vmatprep.subr.mxu0 %v1481
      %1596 = vmatpush1.msra.mxu0 %v1480
      %1597 = vmatprep.subr.mxu0 %v1483
      %1598 = vmatpush1.msra.mxu0 %v1482
      %1599 = vmatprep.subr.mxu0 %v1485
      %1600 = vmatpush1.msra.mxu0 %v1484
      %1601 = vmatprep.subr.mxu0 %v1487
      %1602 = vmatpush1.msra.mxu0 %v1486
      %1603 = vmatprep.subr.mxu0 0.0
      %1604 = vmatpush1.msra.mxu0 0.0
      %1605 = vmatprep.subr.mxu0 0.0
      %1606 = vmatpush1.msra.mxu0 0.0
      %1607 = vmatprep.subr.mxu0 0.0
      %1608 = vmatpush1.msra.mxu0 0.0
      %1609 = vmatprep.subr.mxu0 0.0
      %1610 = vmatpush1.msra.mxu0 0.0
      %1611 = vmatprep.subr.mxu0 0.0
      %1612 = vmatpush1.msra.mxu0 0.0
      %1613 = vmatprep.subr.mxu0 0.0
      %1614 = vmatpush1.msra.mxu0 0.0
      %1615 = vmatprep.subr.mxu0 0.0
      %1616 = vmatpush1.msra.mxu0 0.0
      %1617 = vmatprep.subr.mxu0 0.0
      %1618 = vmatpush1.msra.mxu0 0.0
      %1619 = vmatprep.subr.mxu0 0.0
      %1620 = vmatpush1.msra.mxu0 0.0
      %1621 = vmatprep.subr.mxu0 0.0
      %1622 = vmatpush1.msra.mxu0 0.0
      %1623 = vmatprep.subr.mxu0 0.0
      %1624 = vmatpush1.msra.mxu0 0.0
      %1625 = vmatprep.subr.mxu0 0.0
      %1626 = vmatpush1.msra.mxu0 0.0
      %1627 = vmatprep.subr.mxu0 0.0
      %1628 = vmatpush1.msra.mxu0 0.0
      %1629 = vmatprep.subr.mxu0 0.0
      %1630 = vmatpush1.msra.mxu0 0.0
      %1631 = vmatprep.subr.mxu0 0.0
      %1632 = vmatpush1.msra.mxu0 0.0
      %1633 = vmatprep.subr.mxu0 0.0
      %1634 = vmatpush1.msra.mxu0 0.0
      %1635 = vmatprep.subr.mxu0 0.0
      %1636 = vmatpush1.msra.mxu0 0.0
      %1637 = vmatprep.mubr.f32.mxu0 0.0
      %1638 = vmatmul.mubr.f32.gmra.mrb[0].mxu0 %v1511
      %v1639 = vpop.f32.mrb[0].mxu0
      %v1640 = vadd.f32 0.0, %v1639
      %v1641 = vpop.f32.mrb[0].mxu0
      %v1642 = vadd.f32 0.0, %v1641
      %1643 = vmatprep.mubr.f32.mxu0 0.0
      %1644 = vmatmul.mubr.f32.gmra.mrb[0].mxu0 %v1514
      %v1645 = vpop.f32.mrb[0].mxu0
      %v1646 = vadd.f32 0.0, %v1645
      %v1647 = vpop.f32.mrb[0].mxu0
      %v1648 = vadd.f32 0.0, %v1647
      %1649 = vmatprep.mubr.f32.mxu0 0.0
      %1650 = vmatmul.mubr.f32.gmra.mrb[0].mxu0 %v1517
      %v1651 = vpop.f32.mrb[0].mxu0
      %v1652 = vadd.f32 0.0, %v1651
      %v1653 = vpop.f32.mrb[0].mxu0
      %v1654 = vadd.f32 0.0, %v1653
      %1655 = vmatprep.mubr.f32.mxu0 0.0
      %1656 = vmatmul.mubr.f32.gmra.mrb[0].mxu0 %v1520
      %v1657 = vpop.f32.mrb[0].mxu0
      %v1658 = vadd.f32 0.0, %v1657
      %v1659 = vpop.f32.mrb[0].mxu0
      %v1660 = vadd.f32 0.0, %v1659
      %1661 = vmatprep.mubr.f32.mxu0 0.0
      %1662 = vmatmul.mubr.f32.gmra.mrb[0].mxu0 %v1523
      %v1663 = vpop.f32.mrb[0].mxu0
      %v1664 = vadd.f32 0.0, %v1663
      %v1665 = vpop.f32.mrb[0].mxu0
      %v1666 = vadd.f32 0.0, %v1665
      %1667 = vmatprep.mubr.f32.mxu0 0.0
      %1668 = vmatmul.mubr.f32.gmra.mrb[0].mxu0 %v1526
      %v1669 = vpop.f32.mrb[0].mxu0
      %v1670 = vadd.f32 0.0, %v1669
      %v1671 = vpop.f32.mrb[0].mxu0
      %v1672 = vadd.f32 0.0, %v1671
      %1673 = vmatprep.mubr.f32.mxu0 0.0
      %1674 = vmatmul.mubr.f32.gmra.mrb[0].mxu0 %v1529
      %v1675 = vpop.f32.mrb[0].mxu0
      %v1676 = vadd.f32 0.0, %v1675
      %v1677 = vpop.f32.mrb[0].mxu0
      %v1678 = vadd.f32 0.0, %v1677
      %1679 = vmatprep.mubr.f32.mxu0 0.0
      %1680 = vmatmul.mubr.f32.gmra.mrb[0].mxu0 %v1532
      %v1681 = vpop.f32.mrb[0].mxu0
      %v1682 = vadd.f32 0.0, %v1681
      %v1683 = vpop.f32.mrb[0].mxu0
      %v1684 = vadd.f32 0.0, %v1683
      %1685 = vmatprep.mubr.f32.mxu0 0.0
      %1686 = vmatmul.mubr.f32.gmra.mrb[0].mxu0 %v1535
      %v1687 = vpop.f32.mrb[0].mxu0
      %v1688 = vadd.f32 0.0, %v1687
      %v1689 = vpop.f32.mrb[0].mxu0
      %v1690 = vadd.f32 0.0, %v1689
      %1691 = vmatprep.mubr.f32.mxu0 0.0
      %1692 = vmatmul.mubr.f32.gmra.mrb[0].mxu0 %v1538
      %v1693 = vpop.f32.mrb[0].mxu0
      %v1694 = vadd.f32 0.0, %v1693
      %v1695 = vpop.f32.mrb[0].mxu0
      %v1696 = vadd.f32 0.0, %v1695
      %1697 = vmatprep.mubr.f32.mxu0 0.0
      %1698 = vmatmul.mubr.f32.gmra.mrb[0].mxu0 %v1541
      %v1699 = vpop.f32.mrb[0].mxu0
      %v1700 = vadd.f32 0.0, %v1699
      %v1701 = vpop.f32.mrb[0].mxu0
      %v1702 = vadd.f32 0.0, %v1701
      %1703 = vmatprep.mubr.f32.mxu0 0.0
      %1704 = vmatmul.mubr.f32.gmra.mrb[0].mxu0 %v1544
      %v1705 = vpop.f32.mrb[0].mxu0
      %v1706 = vadd.f32 0.0, %v1705
      %v1707 = vpop.f32.mrb[0].mxu0
      %v1708 = vadd.f32 0.0, %v1707
      %1709 = vmatprep.mubr.f32.mxu0 0.0
      %1710 = vmatmul.mubr.f32.gmra.mrb[0].mxu0 %v1547
      %v1711 = vpop.f32.mrb[0].mxu0
      %v1712 = vadd.f32 0.0, %v1711
      %v1713 = vpop.f32.mrb[0].mxu0
      %v1714 = vadd.f32 0.0, %v1713
      %1715 = vmatprep.mubr.f32.mxu0 0.0
      %1716 = vmatmul.mubr.f32.gmra.mrb[0].mxu0 %v1550
      %v1717 = vpop.f32.mrb[0].mxu0
      %v1718 = vadd.f32 0.0, %v1717
      %v1719 = vpop.f32.mrb[0].mxu0
      %v1720 = vadd.f32 0.0, %v1719
      %1721 = vmatprep.mubr.f32.mxu0 0.0
      %1722 = vmatmul.mubr.f32.gmra.mrb[0].mxu0 %v1553
      %v1723 = vpop.f32.mrb[0].mxu0
      %v1724 = vadd.f32 0.0, %v1723
      %v1725 = vpop.f32.mrb[0].mxu0
      %v1726 = vadd.f32 0.0, %v1725
      %1727 = vmatprep.mubr.f32.mxu0 0.0
      %1728 = vmatmul.mubr.f32.gmra.mrb[0].mxu0 %v1556
      %v1729 = vpop.f32.mrb[0].mxu0
      %v1730 = vadd.f32 0.0, %v1729
      %v1731 = vpop.f32.mrb[0].mxu0
      %v1732 = vadd.f32 0.0, %v1731
      %1733 = vmatprep.mubr.f32.mxu0 0.0
      %1734 = vmatmul.mubr.f32.gmra.mrb[0].mxu0 %v1559
      %v1735 = vpop.f32.mrb[0].mxu0
      %v1736 = vadd.f32 0.0, %v1735
      %v1737 = vpop.f32.mrb[0].mxu0
      %v1738 = vadd.f32 0.0, %v1737
      %1739 = vmatprep.mubr.f32.mxu0 0.0
      %1740 = vmatmul.mubr.f32.gmra.mrb[0].mxu0 %v1562
      %v1741 = vpop.f32.mrb[0].mxu0
      %v1742 = vadd.f32 0.0, %v1741
      %v1743 = vpop.f32.mrb[0].mxu0
      %v1744 = vadd.f32 0.0, %v1743
      %1745 = vmatprep.mubr.f32.mxu0 0.0
      %1746 = vmatmul.mubr.f32.gmra.mrb[0].mxu0 %v1565
      %v1747 = vpop.f32.mrb[0].mxu0
      %v1748 = vadd.f32 0.0, %v1747
      %v1749 = vpop.f32.mrb[0].mxu0
      %v1750 = vadd.f32 0.0, %v1749
      %1751 = vmatprep.mubr.f32.mxu0 0.0
      %1752 = vmatmul.mubr.f32.gmra.mrb[0].mxu0 %v1568
      %v1753 = vpop.f32.mrb[0].mxu0
      %v1754 = vadd.f32 0.0, %v1753
      %v1755 = vpop.f32.mrb[0].mxu0
      %v1756 = vadd.f32 0.0, %v1755
      %1757 = vmatprep.mubr.f32.mxu0 0.0
      %1758 = vmatmul.mubr.f32.gmra.mrb[0].mxu0 %v1571
      %v1759 = vpop.f32.mrb[0].mxu0
      %v1760 = vadd.f32 0.0, %v1759
      %v1761 = vpop.f32.mrb[0].mxu0
      %v1762 = vadd.f32 0.0, %v1761
      %1763 = vdwg.mxu0
      %v1764 = vld [vmem:[%s5] sm:$0xff]
      %v1765 = vld [vmem:[%s5 + $0x8] sm:$0xff]
      %v1766 = vld [vmem:[%s5 + $0x10] sm:$0xff]
      %v1767 = vld [vmem:[%s5 + $0x18] sm:$0xff]
      %v1768 = vld [vmem:[%s5 + $0x20] sm:$0xff]
      %v1769 = vld [vmem:[%s5 + $0x28] sm:$0xff]
      %v1770 = vld [vmem:[%s5 + $0x30] sm:$0xff]
      %v1771 = vld [vmem:[%s5 + $0x38] sm:$0xff]
      %v1772 = vld [vmem:[%s5 + $0x40] sm:$0xff]
      %v1773 = vld [vmem:[%s5 + $0x48] sm:$0xff]
      %v1774 = vld [vmem:[%s5 + $0x50] sm:$0xff]
      %v1775 = vld [vmem:[%s5 + $0x58] sm:$0xff]
      %v1776 = vld [vmem:[%s5 + $0x60] sm:$0xff]
      %v1777 = vld [vmem:[%s5 + $0x68] sm:$0xff]
      %v1778 = vld [vmem:[%s5 + $0x70] sm:$0xff]
      %v1779 = vld [vmem:[%s5 + $0x78] sm:$0xff]
      %v1780 = vld [vmem:[%s5 + $0x80] sm:$0xff]
      %v1781 = vld [vmem:[%s5 + $0x88] sm:$0xff]
      %v1782 = vld [vmem:[%s5 + $0x90] sm:$0xff]
      %v1783 = vld [vmem:[%s5 + $0x98] sm:$0xff]
      %v1784 = vld [vmem:[%s5 + $0xa0] sm:$0xff]
      %v1785 = vld [vmem:[%s5 + $0xa8] sm:$0xff]
      %v1786 = vld [vmem:[%s5 + $0xb0] sm:$0xff]
      %v1787 = vld [vmem:[%s5 + $0xb8] sm:$0xff]
      %v1788 = vld [vmem:[%s5 + $0xc0] sm:$0xff]
      %v1789 = vld [vmem:[%s5 + $0xc8] sm:$0xff]
      %v1790 = vld [vmem:[%s5 + $0xd0] sm:$0xff]
      %v1791 = vld [vmem:[%s5 + $0xd8] sm:$0xff]
      %v1792 = vld [vmem:[%s5 + $0xe0] sm:$0xff]
      %v1793 = vld [vmem:[%s5 + $0xe8] sm:$0xff]
      %v1794 = vld [vmem:[%s5 + $0xf0] sm:$0xff]
      %v1795 = vld [vmem:[%s5 + $0xf8] sm:$0xff]
      %v1796 = vld [vmem:[%s5 + $0x100] sm:$0xff]
      %v1797 = vld [vmem:[%s5 + $0x108] sm:$0xff]
      %v1798 = vld [vmem:[%s5 + $0x110] sm:$0xff]
      %v1799 = vld [vmem:[%s5 + $0x118] sm:$0xff]
      %v1800 = vld [vmem:[%s5 + $0x120] sm:$0xff]
      %v1801 = vld [vmem:[%s5 + $0x128] sm:$0xff]
      %v1802 = vld [vmem:[%s5 + $0x130] sm:$0xff]
      %v1803 = vld [vmem:[%s5 + $0x138] sm:$0xff]
      %v1804 = vld [vmem:[%s5 + $0x140] sm:$0xff]
      %v1805 = vld [vmem:[%s5 + $0x148] sm:$0xff]
      %v1806 = vld [vmem:[%s5 + $0x150] sm:$0xff]
      %v1807 = vld [vmem:[%s5 + $0x158] sm:$0xff]
      %v1808 = vld [vmem:[%s5 + $0x160] sm:$0xff]
      %v1809 = vld [vmem:[%s5 + $0x168] sm:$0xff]
      %v1810 = vld [vmem:[%s5 + $0x170] sm:$0xff]
      %v1811 = vld [vmem:[%s5 + $0x178] sm:$0xff]
      %v1812 = vld [vmem:[%s5 + $0x180] sm:$0xff]
      %v1813 = vld [vmem:[%s5 + $0x188] sm:$0xff]
      %v1814 = vld [vmem:[%s5 + $0x190] sm:$0xff]
      %v1815 = vld [vmem:[%s5 + $0x198] sm:$0xff]
      %v1816 = vld [vmem:[%s5 + $0x1a0] sm:$0xff]
      %v1817 = vld [vmem:[%s5 + $0x1a8] sm:$0xff]
      %v1818 = vld [vmem:[%s5 + $0x1b0] sm:$0xff]
      %v1819 = vld [vmem:[%s5 + $0x1b8] sm:$0xff]
      %v1820 = vld [vmem:[%s5 + $0x1c0] sm:$0xff]
      %v1821 = vld [vmem:[%s5 + $0x1c8] sm:$0xff]
      %v1822 = vld [vmem:[%s5 + $0x1d0] sm:$0xff]
      %v1823 = vld [vmem:[%s5 + $0x1d8] sm:$0xff]
      %s1824 = scalar_lea.vmem %s5, 480
      %v1825 = vld [vmem:[%s1824] sm:$0xff]
      %v1826 = vld [vmem:[%s1824 + $0x8] sm:$0xff]
      %v1827 = vld [vmem:[%s1824 + $0x10] sm:$0xff]
      %v1828 = vld [vmem:[%s1824 + $0x18] sm:$0xff]
      %v1829 = vld [vmem:[%s1824 + $0x20] sm:$0xff]
      %v1830 = vld [vmem:[%s1824 + $0x28] sm:$0xff]
      %v1831 = vld [vmem:[%s1824 + $0x30] sm:$0xff]
      %v1832 = vld [vmem:[%s1824 + $0x38] sm:$0xff]
      %v1833 = vld [vmem:[%s1824 + $0x40] sm:$0xff]
      %v1834 = vld [vmem:[%s1824 + $0x48] sm:$0xff]
      %v1835 = vld [vmem:[%s1824 + $0x50] sm:$0xff]
      %v1836 = vld [vmem:[%s1824 + $0x58] sm:$0xff]
      %v1837 = vld [vmem:[%s1824 + $0x60] sm:$0xff]
      %v1838 = vld [vmem:[%s1824 + $0x68] sm:$0xff]
      %v1839 = vld [vmem:[%s1824 + $0x70] sm:$0xff]
      %v1840 = vld [vmem:[%s1824 + $0x78] sm:$0xff]
      %v1841 = vld [vmem:[%s1824 + $0x80] sm:$0xff]
      %v1842 = vld [vmem:[%s1824 + $0x88] sm:$0xff]
      %v1843 = vld [vmem:[%s1824 + $0x90] sm:$0xff]
      %v1844 = vld [vmem:[%s1824 + $0x98] sm:$0xff]
      %v1845 = vld [vmem:[%s1824 + $0xa0] sm:$0xff]
      %v1846 = vld [vmem:[%s1824 + $0xa8] sm:$0xff]
      %v1847 = vld [vmem:[%s1824 + $0xb0] sm:$0xff]
      %v1848 = vld [vmem:[%s1824 + $0xb8] sm:$0xff]
      %v1849 = vld [vmem:[%s1824 + $0xc0] sm:$0xff]
      %v1850 = vld [vmem:[%s1824 + $0xc8] sm:$0xff]
      %v1851 = vld [vmem:[%s1824 + $0xd0] sm:$0xff]
      %v1852 = vld [vmem:[%s1824 + $0xd8] sm:$0xff]
      %v1853 = vld [vmem:[%s1824 + $0xe0] sm:$0xff]
      %v1854 = vld [vmem:[%s1824 + $0xe8] sm:$0xff]
      %v1855 = vld [vmem:[%s1824 + $0xf0] sm:$0xff]
      %v1856 = vld [vmem:[%s1824 + $0xf8] sm:$0xff]
      %v1857 = vld [vmem:[%s1824 + $0x100] sm:$0xff]
      %v1858 = vld [vmem:[%s1824 + $0x108] sm:$0xff]
      %v1859 = vld [vmem:[%s1824 + $0x110] sm:$0xff]
      %v1860 = vld [vmem:[%s1824 + $0x118] sm:$0xff]
      %v1861 = vld [vmem:[%s1824 + $0x120] sm:$0xff]
      %v1862 = vld [vmem:[%s1824 + $0x128] sm:$0xff]
      %v1863 = vld [vmem:[%s1824 + $0x130] sm:$0xff]
      %v1864 = vld [vmem:[%s1824 + $0x138] sm:$0xff]
      %v1865 = vld [vmem:[%s1824 + $0x140] sm:$0xff]
      %v1866 = vld [vmem:[%s1824 + $0x148] sm:$0xff]
      %v1867 = vld [vmem:[%s1824 + $0x150] sm:$0xff]
      %v1868 = vld [vmem:[%s1824 + $0x158] sm:$0xff]
      %v1869 = vld [vmem:[%s1824 + $0x160] sm:$0xff]
      %v1870 = vld [vmem:[%s1824 + $0x168] sm:$0xff]
      %v1871 = vld [vmem:[%s1824 + $0x170] sm:$0xff]
      %v1872 = vld [vmem:[%s1824 + $0x178] sm:$0xff]
      %v1873 = vld [vmem:[%s1824 + $0x180] sm:$0xff]
      %v1874 = vld [vmem:[%s1824 + $0x188] sm:$0xff]
      %v1875 = vld [vmem:[%s1824 + $0x190] sm:$0xff]
      %v1876 = vld [vmem:[%s1824 + $0x198] sm:$0xff]
      %v1877 = vld [vmem:[%s1824 + $0x1a0] sm:$0xff]
      %v1878 = vld [vmem:[%s1824 + $0x1a8] sm:$0xff]
      %v1879 = vld [vmem:[%s1824 + $0x1b0] sm:$0xff]
      %v1880 = vld [vmem:[%s1824 + $0x1b8] sm:$0xff]
      %v1881 = vld [vmem:[%s1824 + $0x1c0] sm:$0xff]
      %v1882 = vld [vmem:[%s1824 + $0x1c8] sm:$0xff]
      %v1883 = vld [vmem:[%s1824 + $0x1d0] sm:$0xff]
      %v1884 = vld [vmem:[%s1824 + $0x1d8] sm:$0xff]
      %s1885 = scalar_lea.vmem %s5, 960
      %v1886 = vld [vmem:[%s1885] sm:$0xff]
      %v1887 = vld [vmem:[%s1885 + $0x8] sm:$0xff]
      %v1888 = vld [vmem:[%s1885 + $0x10] sm:$0xff]
      %v1889 = vld [vmem:[%s1885 + $0x18] sm:$0xff]
      %v1890 = vld [vmem:[%s1885 + $0x20] sm:$0xff]
      %v1891 = vld [vmem:[%s1885 + $0x28] sm:$0xff]
      %v1892 = vld [vmem:[%s1885 + $0x30] sm:$0xff]
      %v1893 = vld [vmem:[%s1885 + $0x38] sm:$0xff]
      %v1894 = vld [vmem:[%s1885 + $0x40] sm:$0xff]
      %v1895 = vld [vmem:[%s1885 + $0x48] sm:$0xff]
      %v1896 = vld [vmem:[%s1885 + $0x50] sm:$0xff]
      %v1897 = vld [vmem:[%s1885 + $0x58] sm:$0xff]
      %v1898 = vld [vmem:[%s1885 + $0x60] sm:$0xff]
      %v1899 = vld [vmem:[%s1885 + $0x68] sm:$0xff]
      %v1900 = vld [vmem:[%s1885 + $0x70] sm:$0xff]
      %v1901 = vld [vmem:[%s1885 + $0x78] sm:$0xff]
      %v1902 = vld [vmem:[%s1885 + $0x80] sm:$0xff]
      %v1903 = vld [vmem:[%s1885 + $0x88] sm:$0xff]
      %v1904 = vld [vmem:[%s1885 + $0x90] sm:$0xff]
      %v1905 = vld [vmem:[%s1885 + $0x98] sm:$0xff]
      %v1906 = vld [vmem:[%s1885 + $0xa0] sm:$0xff]
      %v1907 = vld [vmem:[%s1885 + $0xa8] sm:$0xff]
      %v1908 = vld [vmem:[%s1885 + $0xb0] sm:$0xff]
      %v1909 = vld [vmem:[%s1885 + $0xb8] sm:$0xff]
      %v1910 = vld [vmem:[%s1885 + $0xc0] sm:$0xff]
      %v1911 = vld [vmem:[%s1885 + $0xc8] sm:$0xff]
      %v1912 = vld [vmem:[%s1885 + $0xd0] sm:$0xff]
      %v1913 = vld [vmem:[%s1885 + $0xd8] sm:$0xff]
      %v1914 = vld [vmem:[%s1885 + $0xe0] sm:$0xff]
      %v1915 = vld [vmem:[%s1885 + $0xe8] sm:$0xff]
      %v1916 = vld [vmem:[%s1885 + $0xf0] sm:$0xff]
      %v1917 = vld [vmem:[%s1885 + $0xf8] sm:$0xff]
      %v1918 = vld [vmem:[%s1885 + $0x100] sm:$0xff]
      %v1919 = vld [vmem:[%s1885 + $0x108] sm:$0xff]
      %v1920 = vld [vmem:[%s1885 + $0x110] sm:$0xff]
      %v1921 = vld [vmem:[%s1885 + $0x118] sm:$0xff]
      %v1922 = vld [vmem:[%s1885 + $0x120] sm:$0xff]
      %v1923 = vld [vmem:[%s1885 + $0x128] sm:$0xff]
      %v1924 = vld [vmem:[%s1885 + $0x130] sm:$0xff]
      %v1925 = vld [vmem:[%s1885 + $0x138] sm:$0xff]
      %v1926 = vld [vmem:[%s1885 + $0x140] sm:$0xff]
      %v1927 = vld [vmem:[%s1885 + $0x148] sm:$0xff]
      %v1928 = vld [vmem:[%s1885 + $0x150] sm:$0xff]
      %v1929 = vld [vmem:[%s1885 + $0x158] sm:$0xff]
      %v1930 = vld [vmem:[%s1885 + $0x160] sm:$0xff]
      %v1931 = vld [vmem:[%s1885 + $0x168] sm:$0xff]
      %v1932 = vld [vmem:[%s1885 + $0x170] sm:$0xff]
      %v1933 = vld [vmem:[%s1885 + $0x178] sm:$0xff]
      %v1934 = vld [vmem:[%s1885 + $0x180] sm:$0xff]
      %v1935 = vld [vmem:[%s1885 + $0x188] sm:$0xff]
      %v1936 = vld [vmem:[%s1885 + $0x190] sm:$0xff]
      %v1937 = vld [vmem:[%s1885 + $0x198] sm:$0xff]
      %v1938 = vld [vmem:[%s1885 + $0x1a0] sm:$0xff]
      %v1939 = vld [vmem:[%s1885 + $0x1a8] sm:$0xff]
      %v1940 = vld [vmem:[%s1885 + $0x1b0] sm:$0xff]
      %v1941 = vld [vmem:[%s1885 + $0x1b8] sm:$0xff]
      %v1942 = vld [vmem:[%s1885 + $0x1c0] sm:$0xff]
      %v1943 = vld [vmem:[%s1885 + $0x1c8] sm:$0xff]
      %v1944 = vld [vmem:[%s1885 + $0x1d0] sm:$0xff]
      %v1945 = vld [vmem:[%s1885 + $0x1d8] sm:$0xff]
      %vm1946 = vcmask 916480
      %v1948 = vsel %vm1946, %v1726, 0
      %v1951 = vsel %vm1946, %v1732, 0
      %v1954 = vsel %vm1946, %v1738, 0
      %v1957 = vsel %vm1946, %v1744, 0
      %v1960 = vsel %vm1946, %v1750, 0
      %v1963 = vsel %vm1946, %v1756, 0
      %v1966 = vsel %vm1946, %v1762, 0
      %1968 = vmatprep.subr.mxu0 %v1887
      %1969 = vmatpush1.msra.mxu0 %v1886
      %1970 = vmatprep.subr.mxu0 %v1889
      %1971 = vmatpush1.msra.mxu0 %v1888
      %1972 = vmatprep.subr.mxu0 %v1891
      %1973 = vmatpush1.msra.mxu0 %v1890
      %1974 = vmatprep.subr.mxu0 %v1893
      %1975 = vmatpush1.msra.mxu0 %v1892
      %1976 = vmatprep.subr.mxu0 %v1895
      %1977 = vmatpush1.msra.mxu0 %v1894
      %1978 = vmatprep.subr.mxu0 %v1897
      %1979 = vmatpush1.msra.mxu0 %v1896
      %1980 = vmatprep.subr.mxu0 %v1899
      %1981 = vmatpush1.msra.mxu0 %v1898
      %1982 = vmatprep.subr.mxu0 %v1901
      %1983 = vmatpush1.msra.mxu0 %v1900
      %1984 = vmatprep.subr.mxu0 %v1903
      %1985 = vmatpush1.msra.mxu0 %v1902
      %1986 = vmatprep.subr.mxu0 %v1905
      %1987 = vmatpush1.msra.mxu0 %v1904
      %1988 = vmatprep.subr.mxu0 %v1907
      %1989 = vmatpush1.msra.mxu0 %v1906
      %1990 = vmatprep.subr.mxu0 %v1909
      %1991 = vmatpush1.msra.mxu0 %v1908
      %1992 = vmatprep.subr.mxu0 %v1911
      %1993 = vmatpush1.msra.mxu0 %v1910
      %1994 = vmatprep.subr.mxu0 %v1913
      %1995 = vmatpush1.msra.mxu0 %v1912
      %1996 = vmatprep.subr.mxu0 %v1915
      %1997 = vmatpush1.msra.mxu0 %v1914
      %1998 = vmatprep.subr.mxu0 %v1917
      %1999 = vmatpush1.msra.mxu0 %v1916
      %2000 = vmatprep.subr.mxu0 %v1919
      %2001 = vmatpush1.msra.mxu0 %v1918
      %2002 = vmatprep.subr.mxu0 %v1921
      %2003 = vmatpush1.msra.mxu0 %v1920
      %2004 = vmatprep.subr.mxu0 %v1923
      %2005 = vmatpush1.msra.mxu0 %v1922
      %2006 = vmatprep.subr.mxu0 %v1925
      %2007 = vmatpush1.msra.mxu0 %v1924
      %2008 = vmatprep.subr.mxu0 %v1927
      %2009 = vmatpush1.msra.mxu0 %v1926
      %2010 = vmatprep.subr.mxu0 %v1929
      %2011 = vmatpush1.msra.mxu0 %v1928
      %2012 = vmatprep.subr.mxu0 %v1931
      %2013 = vmatpush1.msra.mxu0 %v1930
      %2014 = vmatprep.subr.mxu0 %v1933
      %2015 = vmatpush1.msra.mxu0 %v1932
      %2016 = vmatprep.subr.mxu0 %v1935
      %2017 = vmatpush1.msra.mxu0 %v1934
      %2018 = vmatprep.subr.mxu0 %v1937
      %2019 = vmatpush1.msra.mxu0 %v1936
      %2020 = vmatprep.subr.mxu0 %v1939
      %2021 = vmatpush1.msra.mxu0 %v1938
      %2022 = vmatprep.subr.mxu0 %v1941
      %2023 = vmatpush1.msra.mxu0 %v1940
      %2024 = vmatprep.subr.mxu0 %v1943
      %2025 = vmatpush1.msra.mxu0 %v1942
      %2026 = vmatprep.subr.mxu0 %v1945
      %2027 = vmatpush1.msra.mxu0 %v1944
      %2028 = vmatprep.subr.mxu0 0.0
      %2029 = vmatpush1.msra.mxu0 0.0
      %2030 = vmatprep.subr.mxu0 0.0
      %2031 = vmatpush1.msra.mxu0 0.0
      %2032 = vmatprep.mubr.f32.mxu0 %v1948
      %2033 = vmatmul.mubr.f32.gmra.mrb[0].mxu0 %v1724
      %v2034 = vpop.f32.mrb[0].mxu0
      %v2035 = vadd.f32 0.0, %v2034
      %v2036 = vpop.f32.mrb[0].mxu0
      %v2037 = vadd.f32 0.0, %v2036
      %2038 = vmatprep.mubr.f32.mxu0 %v1951
      %2039 = vmatmul.mubr.f32.gmra.mrb[0].mxu0 %v1730
      %v2040 = vpop.f32.mrb[0].mxu0
      %v2041 = vadd.f32 0.0, %v2040
      %v2042 = vpop.f32.mrb[0].mxu0
      %v2043 = vadd.f32 0.0, %v2042
      %2044 = vmatprep.mubr.f32.mxu0 %v1954
      %2045 = vmatmul.mubr.f32.gmra.mrb[0].mxu0 %v1736
      %v2046 = vpop.f32.mrb[0].mxu0
      %v2047 = vadd.f32 0.0, %v2046
      %v2048 = vpop.f32.mrb[0].mxu0
      %v2049 = vadd.f32 0.0, %v2048
      %2050 = vmatprep.mubr.f32.mxu0 %v1957
      %2051 = vmatmul.mubr.f32.gmra.mrb[0].mxu0 %v1742
      %v2052 = vpop.f32.mrb[0].mxu0
      %v2053 = vadd.f32 0.0, %v2052
      %v2054 = vpop.f32.mrb[0].mxu0
      %v2055 = vadd.f32 0.0, %v2054
      %2056 = vmatprep.mubr.f32.mxu0 %v1960
      %2057 = vmatmul.mubr.f32.gmra.mrb[0].mxu0 %v1748
      %v2058 = vpop.f32.mrb[0].mxu0
      %v2059 = vadd.f32 0.0, %v2058
      %v2060 = vpop.f32.mrb[0].mxu0
      %v2061 = vadd.f32 0.0, %v2060
      %2062 = vmatprep.mubr.f32.mxu0 %v1963
      %2063 = vmatmul.mubr.f32.gmra.mrb[0].mxu0 %v1754
      %v2064 = vpop.f32.mrb[0].mxu0
      %v2065 = vadd.f32 0.0, %v2064
      %v2066 = vpop.f32.mrb[0].mxu0
      %v2067 = vadd.f32 0.0, %v2066
      %2068 = vmatprep.mubr.f32.mxu0 %v1966
      %2069 = vmatmul.mubr.f32.gmra.mrb[0].mxu0 %v1760
      %v2070 = vpop.f32.mrb[0].mxu0
      %v2071 = vadd.f32 0.0, %v2070
      %v2072 = vpop.f32.mrb[0].mxu0
      %v2073 = vadd.f32 0.0, %v2072
      %2074 = vdwg.mxu0
      %v2075 = vld [vmem:[%s6] sm:$0x3]
      %v2077 = vlaneseq
      %v2078 = vshrl.u32 %v2077, 7
      %v2079 = vsub.s32 0, %v2078
      %v2080 = vrot.slane %v2075, %v2079
      %v2081 = vlaneseq
      %v2082 = vshrl.u32 %v2081, 7
      %v2083 = vsub.s32 1, %v2082
      %v2084 = vrot.slane %v2075, %v2083
      %v2088 = vsel %vm1946, %v1684, 0
      %v2091 = vsel %vm1946, %v1690, 0
      %v2094 = vsel %vm1946, %v1696, 0
      %v2097 = vsel %vm1946, %v1702, 0
      %v2100 = vsel %vm1946, %v1708, 0
      %v2103 = vsel %vm1946, %v1714, 0
      %v2106 = vsel %vm1946, %v1720, 0
      %2108 = vmatprep.subr.mxu0 %v1826
      %2109 = vmatpush1.msra.mxu0 %v1825
      %2110 = vmatprep.subr.mxu0 %v1828
      %2111 = vmatpush1.msra.mxu0 %v1827
      %2112 = vmatprep.subr.mxu0 %v1830
      %2113 = vmatpush1.msra.mxu0 %v1829
      %2114 = vmatprep.subr.mxu0 %v1832
      %2115 = vmatpush1.msra.mxu0 %v1831
      %2116 = vmatprep.subr.mxu0 %v1834
      %2117 = vmatpush1.msra.mxu0 %v1833
      %2118 = vmatprep.subr.mxu0 %v1836
      %2119 = vmatpush1.msra.mxu0 %v1835
      %2120 = vmatprep.subr.mxu0 %v1838
      %2121 = vmatpush1.msra.mxu0 %v1837
      %2122 = vmatprep.subr.mxu0 %v1840
      %2123 = vmatpush1.msra.mxu0 %v1839
      %2124 = vmatprep.subr.mxu0 %v1842
      %2125 = vmatpush1.msra.mxu0 %v1841
      %2126 = vmatprep.subr.mxu0 %v1844
      %2127 = vmatpush1.msra.mxu0 %v1843
      %2128 = vmatprep.subr.mxu0 %v1846
      %2129 = vmatpush1.msra.mxu0 %v1845
      %2130 = vmatprep.subr.mxu0 %v1848
      %2131 = vmatpush1.msra.mxu0 %v1847
      %2132 = vmatprep.subr.mxu0 %v1850
      %2133 = vmatpush1.msra.mxu0 %v1849
      %2134 = vmatprep.subr.mxu0 %v1852
      %2135 = vmatpush1.msra.mxu0 %v1851
      %2136 = vmatprep.subr.mxu0 %v1854
      %2137 = vmatpush1.msra.mxu0 %v1853
      %2138 = vmatprep.subr.mxu0 %v1856
      %2139 = vmatpush1.msra.mxu0 %v1855
      %2140 = vmatprep.subr.mxu0 %v1858
      %2141 = vmatpush1.msra.mxu0 %v1857
      %2142 = vmatprep.subr.mxu0 %v1860
      %2143 = vmatpush1.msra.mxu0 %v1859
      %2144 = vmatprep.subr.mxu0 %v1862
      %2145 = vmatpush1.msra.mxu0 %v1861
      %2146 = vmatprep.subr.mxu0 %v1864
      %2147 = vmatpush1.msra.mxu0 %v1863
      %2148 = vmatprep.subr.mxu0 %v1866
      %2149 = vmatpush1.msra.mxu0 %v1865
      %2150 = vmatprep.subr.mxu0 %v1868
      %2151 = vmatpush1.msra.mxu0 %v1867
      %2152 = vmatprep.subr.mxu0 %v1870
      %2153 = vmatpush1.msra.mxu0 %v1869
      %2154 = vmatprep.subr.mxu0 %v1872
      %2155 = vmatpush1.msra.mxu0 %v1871
      %2156 = vmatprep.subr.mxu0 %v1874
      %2157 = vmatpush1.msra.mxu0 %v1873
      %2158 = vmatprep.subr.mxu0 %v1876
      %2159 = vmatpush1.msra.mxu0 %v1875
      %2160 = vmatprep.subr.mxu0 %v1878
      %2161 = vmatpush1.msra.mxu0 %v1877
      %2162 = vmatprep.subr.mxu0 %v1880
      %2163 = vmatpush1.msra.mxu0 %v1879
      %2164 = vmatprep.subr.mxu0 %v1882
      %2165 = vmatpush1.msra.mxu0 %v1881
      %2166 = vmatprep.subr.mxu0 %v1884
      %2167 = vmatpush1.msra.mxu0 %v1883
      %2168 = vmatprep.subr.mxu0 0.0
      %2169 = vmatpush1.msra.mxu0 0.0
      %2170 = vmatprep.subr.mxu0 0.0
      %2171 = vmatpush1.msra.mxu0 0.0
      %2172 = vmatprep.mubr.f32.mxu0 %v2088
      %2173 = vmatmul.mubr.f32.gmra.mrb[0].mxu0 %v1682
      %v2174 = vpop.f32.mrb[0].mxu0
      %v2175 = vadd.f32 %v2080, %v2174
      %v2176 = vpop.f32.mrb[0].mxu0
      %v2177 = vadd.f32 %v2084, %v2176
      %2178 = vmatprep.mubr.f32.mxu0 %v2091
      %2179 = vmatmul.mubr.f32.gmra.mrb[0].mxu0 %v1688
      %v2180 = vpop.f32.mrb[0].mxu0
      %v2181 = vadd.f32 %v2080, %v2180
      %v2182 = vpop.f32.mrb[0].mxu0
      %v2183 = vadd.f32 %v2084, %v2182
      %2184 = vmatprep.mubr.f32.mxu0 %v2094
      %2185 = vmatmul.mubr.f32.gmra.mrb[0].mxu0 %v1694
      %v2186 = vpop.f32.mrb[0].mxu0
      %v2187 = vadd.f32 %v2080, %v2186
      %v2188 = vpop.f32.mrb[0].mxu0
      %v2189 = vadd.f32 %v2084, %v2188
      %2190 = vmatprep.mubr.f32.mxu0 %v2097
      %2191 = vmatmul.mubr.f32.gmra.mrb[0].mxu0 %v1700
      %v2192 = vpop.f32.mrb[0].mxu0
      %v2193 = vadd.f32 %v2080, %v2192
      %v2194 = vpop.f32.mrb[0].mxu0
      %v2195 = vadd.f32 %v2084, %v2194
      %2196 = vmatprep.mubr.f32.mxu0 %v2100
      %2197 = vmatmul.mubr.f32.gmra.mrb[0].mxu0 %v1706
      %v2198 = vpop.f32.mrb[0].mxu0
      %v2199 = vadd.f32 %v2080, %v2198
      %v2200 = vpop.f32.mrb[0].mxu0
      %v2201 = vadd.f32 %v2084, %v2200
      %2202 = vmatprep.mubr.f32.mxu0 %v2103
      %2203 = vmatmul.mubr.f32.gmra.mrb[0].mxu0 %v1712
      %v2204 = vpop.f32.mrb[0].mxu0
      %v2205 = vadd.f32 %v2080, %v2204
      %v2206 = vpop.f32.mrb[0].mxu0
      %v2207 = vadd.f32 %v2084, %v2206
      %2208 = vmatprep.mubr.f32.mxu0 %v2106
      %2209 = vmatmul.mubr.f32.gmra.mrb[0].mxu0 %v1718
      %v2210 = vpop.f32.mrb[0].mxu0
      %v2211 = vadd.f32 %v2080, %v2210
      %v2212 = vpop.f32.mrb[0].mxu0
      %v2213 = vadd.f32 %v2084, %v2212
      %2214 = vdwg.mxu0
      %v2216 = vsel %vm1946, %v1642, 0
      %v2219 = vsel %vm1946, %v1648, 0
      %v2222 = vsel %vm1946, %v1654, 0
      %v2225 = vsel %vm1946, %v1660, 0
      %v2228 = vsel %vm1946, %v1666, 0
      %v2231 = vsel %vm1946, %v1672, 0
      %v2234 = vsel %vm1946, %v1678, 0
      %2236 = vmatprep.subr.mxu0 %v1765
      %2237 = vmatpush1.msra.mxu0 %v1764
      %2238 = vmatprep.subr.mxu0 %v1767
      %2239 = vmatpush1.msra.mxu0 %v1766
      %2240 = vmatprep.subr.mxu0 %v1769
      %2241 = vmatpush1.msra.mxu0 %v1768
      %2242 = vmatprep.subr.mxu0 %v1771
      %2243 = vmatpush1.msra.mxu0 %v1770
      %2244 = vmatprep.subr.mxu0 %v1773
      %2245 = vmatpush1.msra.mxu0 %v1772
      %2246 = vmatprep.subr.mxu0 %v1775
      %2247 = vmatpush1.msra.mxu0 %v1774
      %2248 = vmatprep.subr.mxu0 %v1777
      %2249 = vmatpush1.msra.mxu0 %v1776
      %2250 = vmatprep.subr.mxu0 %v1779
      %2251 = vmatpush1.msra.mxu0 %v1778
      %2252 = vmatprep.subr.mxu0 %v1781
      %2253 = vmatpush1.msra.mxu0 %v1780
      %2254 = vmatprep.subr.mxu0 %v1783
      %2255 = vmatpush1.msra.mxu0 %v1782
      %2256 = vmatprep.subr.mxu0 %v1785
      %2257 = vmatpush1.msra.mxu0 %v1784
      %2258 = vmatprep.subr.mxu0 %v1787
      %2259 = vmatpush1.msra.mxu0 %v1786
      %2260 = vmatprep.subr.mxu0 %v1789
      %2261 = vmatpush1.msra.mxu0 %v1788
      %2262 = vmatprep.subr.mxu0 %v1791
      %2263 = vmatpush1.msra.mxu0 %v1790
      %2264 = vmatprep.subr.mxu0 %v1793
      %2265 = vmatpush1.msra.mxu0 %v1792
      %2266 = vmatprep.subr.mxu0 %v1795
      %2267 = vmatpush1.msra.mxu0 %v1794
      %2268 = vmatprep.subr.mxu0 %v1797
      %2269 = vmatpush1.msra.mxu0 %v1796
      %2270 = vmatprep.subr.mxu0 %v1799
      %2271 = vmatpush1.msra.mxu0 %v1798
      %2272 = vmatprep.subr.mxu0 %v1801
      %2273 = vmatpush1.msra.mxu0 %v1800
      %2274 = vmatprep.subr.mxu0 %v1803
      %2275 = vmatpush1.msra.mxu0 %v1802
      %2276 = vmatprep.subr.mxu0 %v1805
      %2277 = vmatpush1.msra.mxu0 %v1804
      %2278 = vmatprep.subr.mxu0 %v1807
      %2279 = vmatpush1.msra.mxu0 %v1806
      %2280 = vmatprep.subr.mxu0 %v1809
      %2281 = vmatpush1.msra.mxu0 %v1808
      %2282 = vmatprep.subr.mxu0 %v1811
      %2283 = vmatpush1.msra.mxu0 %v1810
      %2284 = vmatprep.subr.mxu0 %v1813
      %2285 = vmatpush1.msra.mxu0 %v1812
      %2286 = vmatprep.subr.mxu0 %v1815
      %2287 = vmatpush1.msra.mxu0 %v1814
      %2288 = vmatprep.subr.mxu0 %v1817
      %2289 = vmatpush1.msra.mxu0 %v1816
      %2290 = vmatprep.subr.mxu0 %v1819
      %2291 = vmatpush1.msra.mxu0 %v1818
      %2292 = vmatprep.subr.mxu0 %v1821
      %2293 = vmatpush1.msra.mxu0 %v1820
      %2294 = vmatprep.subr.mxu0 %v1823
      %2295 = vmatpush1.msra.mxu0 %v1822
      %2296 = vmatprep.subr.mxu0 0.0
      %2297 = vmatpush1.msra.mxu0 0.0
      %2298 = vmatprep.subr.mxu0 0.0
      %2299 = vmatpush1.msra.mxu0 0.0
      %2300 = vmatprep.mubr.f32.mxu0 %v2216
      %2301 = vmatmul.mubr.f32.gmra.mrb[0].mxu0 %v1640
      %v2302 = vpop.f32.mrb[0].mxu0
      %v2303 = vadd.f32 %v2035, %v2302
      %v2304 = vpop.f32.mrb[0].mxu0
      %v2305 = vadd.f32 %v2037, %v2304
      %2306 = vmatprep.mubr.f32.mxu0 %v2219
      %2307 = vmatmul.mubr.f32.gmra.mrb[0].mxu0 %v1646
      %v2308 = vpop.f32.mrb[0].mxu0
      %v2309 = vadd.f32 %v2041, %v2308
      %v2310 = vpop.f32.mrb[0].mxu0
      %v2311 = vadd.f32 %v2043, %v2310
      %2312 = vmatprep.mubr.f32.mxu0 %v2222
      %2313 = vmatmul.mubr.f32.gmra.mrb[0].mxu0 %v1652
      %v2314 = vpop.f32.mrb[0].mxu0
      %v2315 = vadd.f32 %v2047, %v2314
      %v2316 = vpop.f32.mrb[0].mxu0
      %v2317 = vadd.f32 %v2049, %v2316
      %2318 = vmatprep.mubr.f32.mxu0 %v2225
      %2319 = vmatmul.mubr.f32.gmra.mrb[0].mxu0 %v1658
      %v2320 = vpop.f32.mrb[0].mxu0
      %v2321 = vadd.f32 %v2053, %v2320
      %v2322 = vpop.f32.mrb[0].mxu0
      %v2323 = vadd.f32 %v2055, %v2322
      %2324 = vmatprep.mubr.f32.mxu0 %v2228
      %2325 = vmatmul.mubr.f32.gmra.mrb[0].mxu0 %v1664
      %v2326 = vpop.f32.mrb[0].mxu0
      %v2327 = vadd.f32 %v2059, %v2326
      %v2328 = vpop.f32.mrb[0].mxu0
      %v2329 = vadd.f32 %v2061, %v2328
      %2330 = vmatprep.mubr.f32.mxu0 %v2231
      %2331 = vmatmul.mubr.f32.gmra.mrb[0].mxu0 %v1670
      %v2332 = vpop.f32.mrb[0].mxu0
      %v2333 = vadd.f32 %v2065, %v2332
      %v2334 = vpop.f32.mrb[0].mxu0
      %v2335 = vadd.f32 %v2067, %v2334
      %2336 = vmatprep.mubr.f32.mxu0 %v2234
      %2337 = vmatmul.mubr.f32.gmra.mrb[0].mxu0 %v1676
      %v2338 = vpop.f32.mrb[0].mxu0
      %v2339 = vadd.f32 %v2071, %v2338
      %v2340 = vpop.f32.mrb[0].mxu0
      %v2341 = vadd.f32 %v2073, %v2340
      %2342 = vdwg.mxu0
      %v2343 = vadd.f32 %v2303, %v2175
      %v2344 = vadd.f32 %v2305, %v2177
      %v2345 = vadd.f32 %v2309, %v2181
      %v2346 = vadd.f32 %v2311, %v2183
      %v2347 = vadd.f32 %v2315, %v2187
      %v2348 = vadd.f32 %v2317, %v2189
      %v2349 = vadd.f32 %v2321, %v2193
      %v2350 = vadd.f32 %v2323, %v2195
      %v2351 = vadd.f32 %v2327, %v2199
      %v2352 = vadd.f32 %v2329, %v2201
      %v2353 = vadd.f32 %v2333, %v2205
      %v2354 = vadd.f32 %v2335, %v2207
      %v2355 = vadd.f32 %v2339, %v2211
      %v2356 = vadd.f32 %v2341, %v2213
      %v2357 = vmax.f32 %v2343, 0.0
      %v2358 = vmax.f32 %v2344, 0.0
      %v2359 = vmax.f32 %v2345, 0.0
      %v2360 = vmax.f32 %v2346, 0.0
      %v2361 = vmax.f32 %v2347, 0.0
      %v2362 = vmax.f32 %v2348, 0.0
      %v2363 = vmax.f32 %v2349, 0.0
      %v2364 = vmax.f32 %v2350, 0.0
      %v2365 = vmax.f32 %v2351, 0.0
      %v2366 = vmax.f32 %v2352, 0.0
      %v2367 = vmax.f32 %v2353, 0.0
      %v2368 = vmax.f32 %v2354, 0.0
      %v2369 = vmax.f32 %v2355, 0.0
      %v2370 = vmax.f32 %v2356, 0.0
      %v2371 = vld [vmem:[%s7] sm:$0xff]
      %v2372 = vld [vmem:[%s7 + $0x8] sm:$0xff]
      %v2373 = vld [vmem:[%s7 + $0x10] sm:$0xff]
      %v2374 = vld [vmem:[%s7 + $0x18] sm:$0xff]
      %v2375 = vld [vmem:[%s7 + $0x20] sm:$0xff]
      %v2376 = vld [vmem:[%s7 + $0x28] sm:$0xff]
      %v2377 = vld [vmem:[%s7 + $0x30] sm:$0xff]
      %v2378 = vld [vmem:[%s7 + $0x38] sm:$0xff]
      %v2379 = vld [vmem:[%s7 + $0x40] sm:$0xff]
      %vm2380 = vcmask 457728
      %v2382 = vsel %vm2380, %v2371, 0
      %v2385 = vsel %vm2380, %v2372, 0
      %v2388 = vsel %vm2380, %v2373, 0
      %v2391 = vsel %vm2380, %v2374, 0
      %v2394 = vsel %vm2380, %v2375, 0
      %v2397 = vsel %vm2380, %v2376, 0
      %v2400 = vsel %vm2380, %v2377, 0
      %v2403 = vsel %vm2380, %v2378, 0
      %v2406 = vsel %vm2380, %v2379, 0
      %2408 = vmatprep.subr.mxu0 %v2358
      %2409 = vmatpush1.msra.mxu0 %v2357
      %2410 = vmatprep.subr.mxu0 %v2360
      %2411 = vmatpush1.msra.mxu0 %v2359
      %2412 = vmatprep.subr.mxu0 %v2362
      %2413 = vmatpush1.msra.mxu0 %v2361
      %2414 = vmatprep.subr.mxu0 %v2364
      %2415 = vmatpush1.msra.mxu0 %v2363
      %2416 = vmatprep.subr.mxu0 %v2366
      %2417 = vmatpush1.msra.mxu0 %v2365
      %2418 = vmatprep.subr.mxu0 %v2368
      %2419 = vmatpush1.msra.mxu0 %v2367
      %2420 = vmatprep.subr.mxu0 %v2370
      %2421 = vmatpush1.msra.mxu0 %v2369
      %2422 = vmatprep.subr.mxu0 0.0
      %2423 = vmatpush1.msra.mxu0 0.0
      %2424 = vmatprep.subr.mxu0 0.0
      %2425 = vmatpush1.msra.mxu0 0.0
      %2426 = vmatprep.subr.mxu0 0.0
      %2427 = vmatpush1.msra.mxu0 0.0
      %2428 = vmatprep.subr.mxu0 0.0
      %2429 = vmatpush1.msra.mxu0 0.0
      %2430 = vmatprep.subr.mxu0 0.0
      %2431 = vmatpush1.msra.mxu0 0.0
      %2432 = vmatprep.subr.mxu0 0.0
      %2433 = vmatpush1.msra.mxu0 0.0
      %2434 = vmatprep.subr.mxu0 0.0
      %2435 = vmatpush1.msra.mxu0 0.0
      %2436 = vmatprep.subr.mxu0 0.0
      %2437 = vmatpush1.msra.mxu0 0.0
      %2438 = vmatprep.subr.mxu0 0.0
      %2439 = vmatpush1.msra.mxu0 0.0
      %2440 = vmatprep.subr.mxu0 0.0
      %2441 = vmatpush1.msra.mxu0 0.0
      %2442 = vmatprep.subr.mxu0 0.0
      %2443 = vmatpush1.msra.mxu0 0.0
      %2444 = vmatprep.subr.mxu0 0.0
      %2445 = vmatpush1.msra.mxu0 0.0
      %2446 = vmatprep.subr.mxu0 0.0
      %2447 = vmatpush1.msra.mxu0 0.0
      %2448 = vmatprep.subr.mxu0 0.0
      %2449 = vmatpush1.msra.mxu0 0.0
      %2450 = vmatprep.subr.mxu0 0.0
      %2451 = vmatpush1.msra.mxu0 0.0
      %2452 = vmatprep.subr.mxu0 0.0
      %2453 = vmatpush1.msra.mxu0 0.0
      %2454 = vmatprep.subr.mxu0 0.0
      %2455 = vmatpush1.msra.mxu0 0.0
      %2456 = vmatprep.subr.mxu0 0.0
      %2457 = vmatpush1.msra.mxu0 0.0
      %2458 = vmatprep.subr.mxu0 0.0
      %2459 = vmatpush1.msra.mxu0 0.0
      %2460 = vmatprep.subr.mxu0 0.0
      %2461 = vmatpush1.msra.mxu0 0.0
      %2462 = vmatprep.subr.mxu0 0.0
      %2463 = vmatpush1.msra.mxu0 0.0
      %2464 = vmatprep.subr.mxu0 0.0
      %2465 = vmatpush1.msra.mxu0 0.0
      %2466 = vmatprep.subr.mxu0 0.0
      %2467 = vmatpush1.msra.mxu0 0.0
      %2468 = vmatprep.subr.mxu0 0.0
      %2469 = vmatpush1.msra.mxu0 0.0
      %2470 = vmatprep.subr.mxu0 0.0
      %2471 = vmatpush1.msra.mxu0 0.0
      %2472 = vmatprep.mubr.f32.mxu0 0.0
      %2473 = vmatmul.mubr.f32.gmra.mrb[0].mxu0 %v2382
      %v2474 = vpop.f32.mrb[0].mxu0
      %v2475 = vadd.f32 0.0, %v2474
      %v2476 = vpop.f32.mrb[0].mxu0
      %v2477 = vadd.f32 0.0, %v2476
      %2478 = vmatprep.mubr.f32.mxu0 0.0
      %2479 = vmatmul.mubr.f32.gmra.mrb[0].mxu0 %v2385
      %v2480 = vpop.f32.mrb[0].mxu0
      %v2481 = vadd.f32 0.0, %v2480
      %v2482 = vpop.f32.mrb[0].mxu0
      %v2483 = vadd.f32 0.0, %v2482
      %2484 = vmatprep.mubr.f32.mxu0 0.0
      %2485 = vmatmul.mubr.f32.gmra.mrb[0].mxu0 %v2388
      %v2486 = vpop.f32.mrb[0].mxu0
      %v2487 = vadd.f32 0.0, %v2486
      %v2488 = vpop.f32.mrb[0].mxu0
      %v2489 = vadd.f32 0.0, %v2488
      %2490 = vmatprep.mubr.f32.mxu0 0.0
      %2491 = vmatmul.mubr.f32.gmra.mrb[0].mxu0 %v2391
      %v2492 = vpop.f32.mrb[0].mxu0
      %v2493 = vadd.f32 0.0, %v2492
      %v2494 = vpop.f32.mrb[0].mxu0
      %v2495 = vadd.f32 0.0, %v2494
      %2496 = vmatprep.mubr.f32.mxu0 0.0
      %2497 = vmatmul.mubr.f32.gmra.mrb[0].mxu0 %v2394
      %v2498 = vpop.f32.mrb[0].mxu0
      %v2499 = vadd.f32 0.0, %v2498
      %v2500 = vpop.f32.mrb[0].mxu0
      %v2501 = vadd.f32 0.0, %v2500
      %2502 = vmatprep.mubr.f32.mxu0 0.0
      %2503 = vmatmul.mubr.f32.gmra.mrb[0].mxu0 %v2397
      %v2504 = vpop.f32.mrb[0].mxu0
      %v2505 = vadd.f32 0.0, %v2504
      %v2506 = vpop.f32.mrb[0].mxu0
      %v2507 = vadd.f32 0.0, %v2506
      %2508 = vmatprep.mubr.f32.mxu0 0.0
      %2509 = vmatmul.mubr.f32.gmra.mrb[0].mxu0 %v2400
      %v2510 = vpop.f32.mrb[0].mxu0
      %v2511 = vadd.f32 0.0, %v2510
      %v2512 = vpop.f32.mrb[0].mxu0
      %v2513 = vadd.f32 0.0, %v2512
      %2514 = vmatprep.mubr.f32.mxu0 0.0
      %2515 = vmatmul.mubr.f32.gmra.mrb[0].mxu0 %v2403
      %v2516 = vpop.f32.mrb[0].mxu0
      %v2517 = vadd.f32 0.0, %v2516
      %v2518 = vpop.f32.mrb[0].mxu0
      %v2519 = vadd.f32 0.0, %v2518
      %2520 = vmatprep.mubr.f32.mxu0 0.0
      %2521 = vmatmul.mubr.f32.gmra.mrb[0].mxu0 %v2406
      %v2522 = vpop.f32.mrb[0].mxu0
      %v2523 = vadd.f32 0.0, %v2522
      %v2524 = vpop.f32.mrb[0].mxu0
      %v2525 = vadd.f32 0.0, %v2524
      %2526 = vdwg.mxu0
      %v2527 = vld [vmem:[%s8] sm:$0xff]
      %v2528 = vld [vmem:[%s8 + $0x8] sm:$0xff]
      %v2529 = vld [vmem:[%s8 + $0x10] sm:$0xff]
      %v2530 = vld [vmem:[%s8 + $0x18] sm:$0xff]
      %v2531 = vld [vmem:[%s8 + $0x20] sm:$0xff]
      %v2532 = vld [vmem:[%s8 + $0x28] sm:$0xff]
      %v2533 = vld [vmem:[%s8 + $0x30] sm:$0xff]
      %v2534 = vld [vmem:[%s8 + $0x38] sm:$0xff]
      %v2535 = vld [vmem:[%s8 + $0x40] sm:$0xff]
      %v2536 = vld [vmem:[%s8 + $0x48] sm:$0xff]
      %v2537 = vld [vmem:[%s8 + $0x50] sm:$0xff]
      %v2538 = vld [vmem:[%s8 + $0x58] sm:$0xff]
      %v2539 = vld [vmem:[%s8 + $0x60] sm:$0xff]
      %v2540 = vld [vmem:[%s8 + $0x68] sm:$0xff]
      %v2541 = vld [vmem:[%s8 + $0x70] sm:$0xff]
      %v2542 = vld [vmem:[%s8 + $0x78] sm:$0xff]
      %v2543 = vld [vmem:[%s8 + $0x80] sm:$0xff]
      %v2544 = vld [vmem:[%s8 + $0x88] sm:$0xff]
      %v2545 = vld [vmem:[%s8 + $0x90] sm:$0xff]
      %v2546 = vld [vmem:[%s8 + $0x98] sm:$0xff]
      %v2547 = vld [vmem:[%s8 + $0xa0] sm:$0xff]
      %v2548 = vld [vmem:[%s8 + $0xa8] sm:$0xff]
      %v2549 = vld [vmem:[%s8 + $0xb0] sm:$0xff]
      %v2550 = vld [vmem:[%s8 + $0xb8] sm:$0xff]
      %v2551 = vld [vmem:[%s8 + $0xc0] sm:$0xff]
      %v2552 = vld [vmem:[%s8 + $0xc8] sm:$0xff]
      %v2553 = vld [vmem:[%s8 + $0xd0] sm:$0xff]
      %v2554 = vld [vmem:[%s8 + $0xd8] sm:$0xff]
      %s2555 = scalar_lea.vmem %s8, 224
      %v2556 = vld [vmem:[%s2555] sm:$0xff]
      %v2557 = vld [vmem:[%s2555 + $0x8] sm:$0xff]
      %v2558 = vld [vmem:[%s2555 + $0x10] sm:$0xff]
      %v2559 = vld [vmem:[%s2555 + $0x18] sm:$0xff]
      %v2560 = vld [vmem:[%s2555 + $0x20] sm:$0xff]
      %v2561 = vld [vmem:[%s2555 + $0x28] sm:$0xff]
      %v2562 = vld [vmem:[%s2555 + $0x30] sm:$0xff]
      %v2563 = vld [vmem:[%s2555 + $0x38] sm:$0xff]
      %v2564 = vld [vmem:[%s2555 + $0x40] sm:$0xff]
      %v2565 = vld [vmem:[%s2555 + $0x48] sm:$0xff]
      %v2566 = vld [vmem:[%s2555 + $0x50] sm:$0xff]
      %v2567 = vld [vmem:[%s2555 + $0x58] sm:$0xff]
      %v2568 = vld [vmem:[%s2555 + $0x60] sm:$0xff]
      %v2569 = vld [vmem:[%s2555 + $0x68] sm:$0xff]
      %v2570 = vld [vmem:[%s2555 + $0x70] sm:$0xff]
      %v2571 = vld [vmem:[%s2555 + $0x78] sm:$0xff]
      %v2572 = vld [vmem:[%s2555 + $0x80] sm:$0xff]
      %v2573 = vld [vmem:[%s2555 + $0x88] sm:$0xff]
      %v2574 = vld [vmem:[%s2555 + $0x90] sm:$0xff]
      %v2575 = vld [vmem:[%s2555 + $0x98] sm:$0xff]
      %v2576 = vld [vmem:[%s2555 + $0xa0] sm:$0xff]
      %v2577 = vld [vmem:[%s2555 + $0xa8] sm:$0xff]
      %v2578 = vld [vmem:[%s2555 + $0xb0] sm:$0xff]
      %v2579 = vld [vmem:[%s2555 + $0xb8] sm:$0xff]
      %v2580 = vld [vmem:[%s2555 + $0xc0] sm:$0xff]
      %v2581 = vld [vmem:[%s2555 + $0xc8] sm:$0xff]
      %v2582 = vld [vmem:[%s2555 + $0xd0] sm:$0xff]
      %v2583 = vld [vmem:[%s2555 + $0xd8] sm:$0xff]
      %s2584 = scalar_lea.vmem %s8, 448
      %v2585 = vld [vmem:[%s2584] sm:$0xff]
      %v2586 = vld [vmem:[%s2584 + $0x8] sm:$0xff]
      %v2587 = vld [vmem:[%s2584 + $0x10] sm:$0xff]
      %v2588 = vld [vmem:[%s2584 + $0x18] sm:$0xff]
      %v2589 = vld [vmem:[%s2584 + $0x20] sm:$0xff]
      %v2590 = vld [vmem:[%s2584 + $0x28] sm:$0xff]
      %v2591 = vld [vmem:[%s2584 + $0x30] sm:$0xff]
      %v2592 = vld [vmem:[%s2584 + $0x38] sm:$0xff]
      %v2593 = vld [vmem:[%s2584 + $0x40] sm:$0xff]
      %v2594 = vld [vmem:[%s2584 + $0x48] sm:$0xff]
      %v2595 = vld [vmem:[%s2584 + $0x50] sm:$0xff]
      %v2596 = vld [vmem:[%s2584 + $0x58] sm:$0xff]
      %v2597 = vld [vmem:[%s2584 + $0x60] sm:$0xff]
      %v2598 = vld [vmem:[%s2584 + $0x68] sm:$0xff]
      %v2599 = vld [vmem:[%s2584 + $0x70] sm:$0xff]
      %v2600 = vld [vmem:[%s2584 + $0x78] sm:$0xff]
      %v2601 = vld [vmem:[%s2584 + $0x80] sm:$0xff]
      %v2602 = vld [vmem:[%s2584 + $0x88] sm:$0xff]
      %v2603 = vld [vmem:[%s2584 + $0x90] sm:$0xff]
      %v2604 = vld [vmem:[%s2584 + $0x98] sm:$0xff]
      %v2605 = vld [vmem:[%s2584 + $0xa0] sm:$0xff]
      %v2606 = vld [vmem:[%s2584 + $0xa8] sm:$0xff]
      %v2607 = vld [vmem:[%s2584 + $0xb0] sm:$0xff]
      %v2608 = vld [vmem:[%s2584 + $0xb8] sm:$0xff]
      %v2609 = vld [vmem:[%s2584 + $0xc0] sm:$0xff]
      %v2610 = vld [vmem:[%s2584 + $0xc8] sm:$0xff]
      %v2611 = vld [vmem:[%s2584 + $0xd0] sm:$0xff]
      %v2612 = vld [vmem:[%s2584 + $0xd8] sm:$0xff]
      %vm2613 = vcmask 785408
      %v2615 = vsel %vm2613, %v2513, 0
      %v2618 = vsel %vm2613, %v2519, 0
      %v2621 = vsel %vm2613, %v2525, 0
      %2623 = vmatprep.subr.mxu0 0.0
      %2624 = vmatpush1.msra.mxu0 %v2585
      %2625 = vmatprep.subr.mxu0 0.0
      %2626 = vmatpush1.msra.mxu0 %v2586
      %2627 = vmatprep.subr.mxu0 0.0
      %2628 = vmatpush1.msra.mxu0 %v2587
      %2629 = vmatprep.subr.mxu0 0.0
      %2630 = vmatpush1.msra.mxu0 %v2588
      %2631 = vmatprep.subr.mxu0 0.0
      %2632 = vmatpush1.msra.mxu0 %v2589
      %2633 = vmatprep.subr.mxu0 0.0
      %2634 = vmatpush1.msra.mxu0 %v2590
      %2635 = vmatprep.subr.mxu0 0.0
      %2636 = vmatpush1.msra.mxu0 %v2591
      %2637 = vmatprep.subr.mxu0 0.0
      %2638 = vmatpush1.msra.mxu0 %v2592
      %2639 = vmatprep.subr.mxu0 0.0
      %2640 = vmatpush1.msra.mxu0 %v2593
      %2641 = vmatprep.subr.mxu0 0.0
      %2642 = vmatpush1.msra.mxu0 %v2594
      %2643 = vmatprep.subr.mxu0 0.0
      %2644 = vmatpush1.msra.mxu0 %v2595
      %2645 = vmatprep.subr.mxu0 0.0
      %2646 = vmatpush1.msra.mxu0 %v2596
      %2647 = vmatprep.subr.mxu0 0.0
      %2648 = vmatpush1.msra.mxu0 %v2597
      %2649 = vmatprep.subr.mxu0 0.0
      %2650 = vmatpush1.msra.mxu0 %v2598
      %2651 = vmatprep.subr.mxu0 0.0
      %2652 = vmatpush1.msra.mxu0 %v2599
      %2653 = vmatprep.subr.mxu0 0.0
      %2654 = vmatpush1.msra.mxu0 %v2600
      %2655 = vmatprep.subr.mxu0 0.0
      %2656 = vmatpush1.msra.mxu0 %v2601
      %2657 = vmatprep.subr.mxu0 0.0
      %2658 = vmatpush1.msra.mxu0 %v2602
      %2659 = vmatprep.subr.mxu0 0.0
      %2660 = vmatpush1.msra.mxu0 %v2603
      %2661 = vmatprep.subr.mxu0 0.0
      %2662 = vmatpush1.msra.mxu0 %v2604
      %2663 = vmatprep.subr.mxu0 0.0
      %2664 = vmatpush1.msra.mxu0 %v2605
      %2665 = vmatprep.subr.mxu0 0.0
      %2666 = vmatpush1.msra.mxu0 %v2606
      %2667 = vmatprep.subr.mxu0 0.0
      %2668 = vmatpush1.msra.mxu0 %v2607
      %2669 = vmatprep.subr.mxu0 0.0
      %2670 = vmatpush1.msra.mxu0 %v2608
      %2671 = vmatprep.subr.mxu0 0.0
      %2672 = vmatpush1.msra.mxu0 %v2609
      %2673 = vmatprep.subr.mxu0 0.0
      %2674 = vmatpush1.msra.mxu0 %v2610
      %2675 = vmatprep.subr.mxu0 0.0
      %2676 = vmatpush1.msra.mxu0 %v2611
      %2677 = vmatprep.subr.mxu0 0.0
      %2678 = vmatpush1.msra.mxu0 %v2612
      %2679 = vmatprep.subr.mxu0 0.0
      %2680 = vmatpush1.msra.mxu0 0.0
      %2681 = vmatprep.subr.mxu0 0.0
      %2682 = vmatpush1.msra.mxu0 0.0
      %2683 = vmatprep.subr.mxu0 0.0
      %2684 = vmatpush1.msra.mxu0 0.0
      %2685 = vmatprep.subr.mxu0 0.0
      %2686 = vmatpush1.msra.mxu0 0.0
      %2687 = vmatprep.mubr.f32.mxu0 %v2615
      %2688 = vmatmul.mubr.f32.gmra.mrb[0].mxu0 %v2511
      %v2689 = vpop.f32.mrb[0].mxu0
      %v2690 = vadd.f32 0.0, %v2689
      %v2691 = vpop.f32.mrb[0].mxu0
      %2692 = vmatprep.mubr.f32.mxu0 %v2618
      %2693 = vmatmul.mubr.f32.gmra.mrb[0].mxu0 %v2517
      %v2694 = vpop.f32.mrb[0].mxu0
      %v2695 = vadd.f32 0.0, %v2694
      %v2696 = vpop.f32.mrb[0].mxu0
      %2697 = vmatprep.mubr.f32.mxu0 %v2621
      %2698 = vmatmul.mubr.f32.gmra.mrb[0].mxu0 %v2523
      %v2699 = vpop.f32.mrb[0].mxu0
      %v2700 = vadd.f32 0.0, %v2699
      %v2701 = vpop.f32.mrb[0].mxu0
      %2702 = vdwg.mxu0
      %v2703 = vld [vmem:[%s9] sm:$0x1]
      %v2705 = vlaneseq
      %v2706 = vshrl.u32 %v2705, 7
      %v2707 = vsub.s32 0, %v2706
      %v2708 = vrot.slane %v2703, %v2707
      %v2711 = vsel %vm2613, %v2495, 0
      %v2714 = vsel %vm2613, %v2501, 0
      %v2717 = vsel %vm2613, %v2507, 0
      %2719 = vmatprep.subr.mxu0 0.0
      %2720 = vmatpush1.msra.mxu0 %v2556
      %2721 = vmatprep.subr.mxu0 0.0
      %2722 = vmatpush1.msra.mxu0 %v2557
      %2723 = vmatprep.subr.mxu0 0.0
      %2724 = vmatpush1.msra.mxu0 %v2558
      %2725 = vmatprep.subr.mxu0 0.0
      %2726 = vmatpush1.msra.mxu0 %v2559
      %2727 = vmatprep.subr.mxu0 0.0
      %2728 = vmatpush1.msra.mxu0 %v2560
      %2729 = vmatprep.subr.mxu0 0.0
      %2730 = vmatpush1.msra.mxu0 %v2561
      %2731 = vmatprep.subr.mxu0 0.0
      %2732 = vmatpush1.msra.mxu0 %v2562
      %2733 = vmatprep.subr.mxu0 0.0
      %2734 = vmatpush1.msra.mxu0 %v2563
      %2735 = vmatprep.subr.mxu0 0.0
      %2736 = vmatpush1.msra.mxu0 %v2564
      %2737 = vmatprep.subr.mxu0 0.0
      %2738 = vmatpush1.msra.mxu0 %v2565
      %2739 = vmatprep.subr.mxu0 0.0
      %2740 = vmatpush1.msra.mxu0 %v2566
      %2741 = vmatprep.subr.mxu0 0.0
      %2742 = vmatpush1.msra.mxu0 %v2567
      %2743 = vmatprep.subr.mxu0 0.0
      %2744 = vmatpush1.msra.mxu0 %v2568
      %2745 = vmatprep.subr.mxu0 0.0
      %2746 = vmatpush1.msra.mxu0 %v2569
      %2747 = vmatprep.subr.mxu0 0.0
      %2748 = vmatpush1.msra.mxu0 %v2570
      %2749 = vmatprep.subr.mxu0 0.0
      %2750 = vmatpush1.msra.mxu0 %v2571
      %2751 = vmatprep.subr.mxu0 0.0
      %2752 = vmatpush1.msra.mxu0 %v2572
      %2753 = vmatprep.subr.mxu0 0.0
      %2754 = vmatpush1.msra.mxu0 %v2573
      %2755 = vmatprep.subr.mxu0 0.0
      %2756 = vmatpush1.msra.mxu0 %v2574
      %2757 = vmatprep.subr.mxu0 0.0
      %2758 = vmatpush1.msra.mxu0 %v2575
      %2759 = vmatprep.subr.mxu0 0.0
      %2760 = vmatpush1.msra.mxu0 %v2576
      %2761 = vmatprep.subr.mxu0 0.0
      %2762 = vmatpush1.msra.mxu0 %v2577
      %2763 = vmatprep.subr.mxu0 0.0
      %2764 = vmatpush1.msra.mxu0 %v2578
      %2765 = vmatprep.subr.mxu0 0.0
      %2766 = vmatpush1.msra.mxu0 %v2579
      %2767 = vmatprep.subr.mxu0 0.0
      %2768 = vmatpush1.msra.mxu0 %v2580
      %2769 = vmatprep.subr.mxu0 0.0
      %2770 = vmatpush1.msra.mxu0 %v2581
      %2771 = vmatprep.subr.mxu0 0.0
      %2772 = vmatpush1.msra.mxu0 %v2582
      %2773 = vmatprep.subr.mxu0 0.0
      %2774 = vmatpush1.msra.mxu0 %v2583
      %2775 = vmatprep.subr.mxu0 0.0
      %2776 = vmatpush1.msra.mxu0 0.0
      %2777 = vmatprep.subr.mxu0 0.0
      %2778 = vmatpush1.msra.mxu0 0.0
      %2779 = vmatprep.subr.mxu0 0.0
      %2780 = vmatpush1.msra.mxu0 0.0
      %2781 = vmatprep.subr.mxu0 0.0
      %2782 = vmatpush1.msra.mxu0 0.0
      %2783 = vmatprep.mubr.f32.mxu0 %v2711
      %2784 = vmatmul.mubr.f32.gmra.mrb[0].mxu0 %v2493
      %v2785 = vpop.f32.mrb[0].mxu0
      %v2786 = vadd.f32 %v2708, %v2785
      %v2787 = vpop.f32.mrb[0].mxu0
      %2788 = vmatprep.mubr.f32.mxu0 %v2714
      %2789 = vmatmul.mubr.f32.gmra.mrb[0].mxu0 %v2499
      %v2790 = vpop.f32.mrb[0].mxu0
      %v2791 = vadd.f32 %v2708, %v2790
      %v2792 = vpop.f32.mrb[0].mxu0
      %2793 = vmatprep.mubr.f32.mxu0 %v2717
      %2794 = vmatmul.mubr.f32.gmra.mrb[0].mxu0 %v2505
      %v2795 = vpop.f32.mrb[0].mxu0
      %v2796 = vadd.f32 %v2708, %v2795
      %v2797 = vpop.f32.mrb[0].mxu0
      %2798 = vdwg.mxu0
      %v2800 = vsel %vm2613, %v2477, 0
      %v2803 = vsel %vm2613, %v2483, 0
      %v2806 = vsel %vm2613, %v2489, 0
      %2808 = vmatprep.subr.mxu0 0.0
      %2809 = vmatpush1.msra.mxu0 %v2527
      %2810 = vmatprep.subr.mxu0 0.0
      %2811 = vmatpush1.msra.mxu0 %v2528
      %2812 = vmatprep.subr.mxu0 0.0
      %2813 = vmatpush1.msra.mxu0 %v2529
      %2814 = vmatprep.subr.mxu0 0.0
      %2815 = vmatpush1.msra.mxu0 %v2530
      %2816 = vmatprep.subr.mxu0 0.0
      %2817 = vmatpush1.msra.mxu0 %v2531
      %2818 = vmatprep.subr.mxu0 0.0
      %2819 = vmatpush1.msra.mxu0 %v2532
      %2820 = vmatprep.subr.mxu0 0.0
      %2821 = vmatpush1.msra.mxu0 %v2533
      %2822 = vmatprep.subr.mxu0 0.0
      %2823 = vmatpush1.msra.mxu0 %v2534
      %2824 = vmatprep.subr.mxu0 0.0
      %2825 = vmatpush1.msra.mxu0 %v2535
      %2826 = vmatprep.subr.mxu0 0.0
      %2827 = vmatpush1.msra.mxu0 %v2536
      %2828 = vmatprep.subr.mxu0 0.0
      %2829 = vmatpush1.msra.mxu0 %v2537
      %2830 = vmatprep.subr.mxu0 0.0
      %2831 = vmatpush1.msra.mxu0 %v2538
      %2832 = vmatprep.subr.mxu0 0.0
      %2833 = vmatpush1.msra.mxu0 %v2539
      %2834 = vmatprep.subr.mxu0 0.0
      %2835 = vmatpush1.msra.mxu0 %v2540
      %2836 = vmatprep.subr.mxu0 0.0
      %2837 = vmatpush1.msra.mxu0 %v2541
      %2838 = vmatprep.subr.mxu0 0.0
      %2839 = vmatpush1.msra.mxu0 %v2542
      %2840 = vmatprep.subr.mxu0 0.0
      %2841 = vmatpush1.msra.mxu0 %v2543
      %2842 = vmatprep.subr.mxu0 0.0
      %2843 = vmatpush1.msra.mxu0 %v2544
      %2844 = vmatprep.subr.mxu0 0.0
      %2845 = vmatpush1.msra.mxu0 %v2545
      %2846 = vmatprep.subr.mxu0 0.0
      %2847 = vmatpush1.msra.mxu0 %v2546
      %2848 = vmatprep.subr.mxu0 0.0
      %2849 = vmatpush1.msra.mxu0 %v2547
      %2850 = vmatprep.subr.mxu0 0.0
      %2851 = vmatpush1.msra.mxu0 %v2548
      %2852 = vmatprep.subr.mxu0 0.0
      %2853 = vmatpush1.msra.mxu0 %v2549
      %2854 = vmatprep.subr.mxu0 0.0
      %2855 = vmatpush1.msra.mxu0 %v2550
      %2856 = vmatprep.subr.mxu0 0.0
      %2857 = vmatpush1.msra.mxu0 %v2551
      %2858 = vmatprep.subr.mxu0 0.0
      %2859 = vmatpush1.msra.mxu0 %v2552
      %2860 = vmatprep.subr.mxu0 0.0
      %2861 = vmatpush1.msra.mxu0 %v2553
      %2862 = vmatprep.subr.mxu0 0.0
      %2863 = vmatpush1.msra.mxu0 %v2554
      %2864 = vmatprep.subr.mxu0 0.0
      %2865 = vmatpush1.msra.mxu0 0.0
      %2866 = vmatprep.subr.mxu0 0.0
      %2867 = vmatpush1.msra.mxu0 0.0
      %2868 = vmatprep.subr.mxu0 0.0
      %2869 = vmatpush1.msra.mxu0 0.0
      %2870 = vmatprep.subr.mxu0 0.0
      %2871 = vmatpush1.msra.mxu0 0.0
      %2872 = vmatprep.mubr.f32.mxu0 %v2800
      %2873 = vmatmul.mubr.f32.gmra.mrb[0].mxu0 %v2475
      %v2874 = vpop.f32.mrb[0].mxu0
      %v2875 = vadd.f32 %v2690, %v2874
      %v2876 = vpop.f32.mrb[0].mxu0
      %2877 = vmatprep.mubr.f32.mxu0 %v2803
      %2878 = vmatmul.mubr.f32.gmra.mrb[0].mxu0 %v2481
      %v2879 = vpop.f32.mrb[0].mxu0
      %v2880 = vadd.f32 %v2695, %v2879
      %v2881 = vpop.f32.mrb[0].mxu0
      %2882 = vmatprep.mubr.f32.mxu0 %v2806
      %2883 = vmatmul.mubr.f32.gmra.mrb[0].mxu0 %v2487
      %v2884 = vpop.f32.mrb[0].mxu0
      %v2885 = vadd.f32 %v2700, %v2884
      %v2886 = vpop.f32.mrb[0].mxu0
      %2887 = vdwg.mxu0
      %v2888 = vadd.f32 %v2875, %v2786
      %v2889 = vadd.f32 %v2880, %v2791
      %v2890 = vadd.f32 %v2885, %v2796
      %v2891 = vmax.f32 %v2888, 0.0
      %v2892 = vmax.f32 %v2889, 0.0
      %v2893 = vmax.f32 %v2890, 0.0
      %v2894 = vld [vmem:[%s10] sm:$0xff]
      %v2895 = vld [vmem:[%s10 + $0x8] sm:$0xff]
      %v2896 = vld [vmem:[%s10 + $0x10] sm:$0xff]
      %vm2897 = vcmask 195584
      %v2899 = vsel %vm2897, %v2894, 0
      %v2902 = vsel %vm2897, %v2895, 0
      %v2905 = vsel %vm2897, %v2896, 0
      %2907 = vmatprep.subr.mxu0 0.0
      %2908 = vmatpush1.msra.mxu0 %v2891
      %2909 = vmatprep.subr.mxu0 0.0
      %2910 = vmatpush1.msra.mxu0 %v2892
      %2911 = vmatprep.subr.mxu0 0.0
      %2912 = vmatpush1.msra.mxu0 %v2893
      %2913 = vmatprep.subr.mxu0 0.0
      %2914 = vmatpush1.msra.mxu0 0.0
      %2915 = vmatprep.subr.mxu0 0.0
      %2916 = vmatpush1.msra.mxu0 0.0
      %2917 = vmatprep.subr.mxu0 0.0
      %2918 = vmatpush1.msra.mxu0 0.0
      %2919 = vmatprep.subr.mxu0 0.0
      %2920 = vmatpush1.msra.mxu0 0.0
      %2921 = vmatprep.subr.mxu0 0.0
      %2922 = vmatpush1.msra.mxu0 0.0
      %2923 = vmatprep.subr.mxu0 0.0
      %2924 = vmatpush1.msra.mxu0 0.0
      %2925 = vmatprep.subr.mxu0 0.0
      %2926 = vmatpush1.msra.mxu0 0.0
      %2927 = vmatprep.subr.mxu0 0.0
      %2928 = vmatpush1.msra.mxu0 0.0
      %2929 = vmatprep.subr.mxu0 0.0
      %2930 = vmatpush1.msra.mxu0 0.0
      %2931 = vmatprep.subr.mxu0 0.0
      %2932 = vmatpush1.msra.mxu0 0.0
      %2933 = vmatprep.subr.mxu0 0.0
      %2934 = vmatpush1.msra.mxu0 0.0
      %2935 = vmatprep.subr.mxu0 0.0
      %2936 = vmatpush1.msra.mxu0 0.0
      %2937 = vmatprep.subr.mxu0 0.0
      %2938 = vmatpush1.msra.mxu0 0.0
      %2939 = vmatprep.subr.mxu0 0.0
      %2940 = vmatpush1.msra.mxu0 0.0
      %2941 = vmatprep.subr.mxu0 0.0
      %2942 = vmatpush1.msra.mxu0 0.0
      %2943 = vmatprep.subr.mxu0 0.0
      %2944 = vmatpush1.msra.mxu0 0.0
      %2945 = vmatprep.subr.mxu0 0.0
      %2946 = vmatpush1.msra.mxu0 0.0
      %2947 = vmatprep.subr.mxu0 0.0
      %2948 = vmatpush1.msra.mxu0 0.0
      %2949 = vmatprep.subr.mxu0 0.0
      %2950 = vmatpush1.msra.mxu0 0.0
      %2951 = vmatprep.subr.mxu0 0.0
      %2952 = vmatpush1.msra.mxu0 0.0
      %2953 = vmatprep.subr.mxu0 0.0
      %2954 = vmatpush1.msra.mxu0 0.0
      %2955 = vmatprep.subr.mxu0 0.0
      %2956 = vmatpush1.msra.mxu0 0.0
      %2957 = vmatprep.subr.mxu0 0.0
      %2958 = vmatpush1.msra.mxu0 0.0
      %2959 = vmatprep.subr.mxu0 0.0
      %2960 = vmatpush1.msra.mxu0 0.0
      %2961 = vmatprep.subr.mxu0 0.0
      %2962 = vmatpush1.msra.mxu0 0.0
      %2963 = vmatprep.subr.mxu0 0.0
      %2964 = vmatpush1.msra.mxu0 0.0
      %2965 = vmatprep.subr.mxu0 0.0
      %2966 = vmatpush1.msra.mxu0 0.0
      %2967 = vmatprep.subr.mxu0 0.0
      %2968 = vmatpush1.msra.mxu0 0.0
      %2969 = vmatprep.subr.mxu0 0.0
      %2970 = vmatpush1.msra.mxu0 0.0
      %2971 = vmatprep.mubr.f32.mxu0 0.0
      %2972 = vmatmul.mubr.f32.gmra.mrb[0].mxu0 %v2899
      %v2973 = vpop.f32.mrb[0].mxu0
      %v2974 = vadd.f32 0.0, %v2973
      %v2975 = vpop.f32.mrb[0].mxu0
      %2976 = vmatprep.mubr.f32.mxu0 0.0
      %2977 = vmatmul.mubr.f32.gmra.mrb[0].mxu0 %v2902
      %v2978 = vpop.f32.mrb[0].mxu0
      %v2979 = vadd.f32 0.0, %v2978
      %v2980 = vpop.f32.mrb[0].mxu0
      %2981 = vmatprep.mubr.f32.mxu0 0.0
      %2982 = vmatmul.mubr.f32.gmra.mrb[0].mxu0 %v2905
      %v2983 = vpop.f32.mrb[0].mxu0
      %v2984 = vadd.f32 0.0, %v2983
      %v2985 = vpop.f32.mrb[0].mxu0
      %2986 = vdwg.mxu0
      %v2987 = vld [vmem:[%s11] sm:$0xff]
      %v2988 = vld [vmem:[%s11 + $0x8] sm:$0xff]
      %v2989 = vld [vmem:[%s11 + $0x10] sm:$0xff]
      %v2990 = vld [vmem:[%s11 + $0x18] sm:$0xff]
      %v2991 = vld [vmem:[%s11 + $0x20] sm:$0xff]
      %v2992 = vld [vmem:[%s11 + $0x28] sm:$0xff]
      %v2993 = vld [vmem:[%s11 + $0x30] sm:$0xff]
      %v2994 = vld [vmem:[%s11 + $0x38] sm:$0xff]
      %v2995 = vld [vmem:[%s11 + $0x40] sm:$0xff]
      %v2996 = vld [vmem:[%s11 + $0x48] sm:$0xff]
      %v2997 = vld [vmem:[%s11 + $0x50] sm:$0xff]
      %v2998 = vld [vmem:[%s11 + $0x58] sm:$0xff]
      %s2999 = scalar_lea.vmem %s11, 96
      %v3000 = vld [vmem:[%s2999] sm:$0xff]
      %v3001 = vld [vmem:[%s2999 + $0x8] sm:$0xff]
      %v3002 = vld [vmem:[%s2999 + $0x10] sm:$0xff]
      %v3003 = vld [vmem:[%s2999 + $0x18] sm:$0xff]
      %v3004 = vld [vmem:[%s2999 + $0x20] sm:$0xff]
      %v3005 = vld [vmem:[%s2999 + $0x28] sm:$0xff]
      %v3006 = vld [vmem:[%s2999 + $0x30] sm:$0xff]
      %v3007 = vld [vmem:[%s2999 + $0x38] sm:$0xff]
      %v3008 = vld [vmem:[%s2999 + $0x40] sm:$0xff]
      %v3009 = vld [vmem:[%s2999 + $0x48] sm:$0xff]
      %v3010 = vld [vmem:[%s2999 + $0x50] sm:$0xff]
      %v3011 = vld [vmem:[%s2999 + $0x58] sm:$0xff]
      %s3012 = scalar_lea.vmem %s11, 192
      %v3013 = vld [vmem:[%s3012] sm:$0xff]
      %v3014 = vld [vmem:[%s3012 + $0x8] sm:$0xff]
      %v3015 = vld [vmem:[%s3012 + $0x10] sm:$0xff]
      %v3016 = vld [vmem:[%s3012 + $0x18] sm:$0xff]
      %v3017 = vld [vmem:[%s3012 + $0x20] sm:$0xff]
      %v3018 = vld [vmem:[%s3012 + $0x28] sm:$0xff]
      %v3019 = vld [vmem:[%s3012 + $0x30] sm:$0xff]
      %v3020 = vld [vmem:[%s3012 + $0x38] sm:$0xff]
      %v3021 = vld [vmem:[%s3012 + $0x40] sm:$0xff]
      %v3022 = vld [vmem:[%s3012 + $0x48] sm:$0xff]
      %v3023 = vld [vmem:[%s3012 + $0x50] sm:$0xff]
      %v3024 = vld [vmem:[%s3012 + $0x58] sm:$0xff]
      %v3026 = vsel %vm2613, %v2984, 0
      %3028 = vmatprep.subr.mxu0 0.0
      %3029 = vmatpush1.msra.mxu0 %v3013
      %3030 = vmatprep.subr.mxu0 0.0
      %3031 = vmatpush1.msra.mxu0 %v3014
      %3032 = vmatprep.subr.mxu0 0.0
      %3033 = vmatpush1.msra.mxu0 %v3015
      %3034 = vmatprep.subr.mxu0 0.0
      %3035 = vmatpush1.msra.mxu0 %v3016
      %3036 = vmatprep.subr.mxu0 0.0
      %3037 = vmatpush1.msra.mxu0 %v3017
      %3038 = vmatprep.subr.mxu0 0.0
      %3039 = vmatpush1.msra.mxu0 %v3018
      %3040 = vmatprep.subr.mxu0 0.0
      %3041 = vmatpush1.msra.mxu0 %v3019
      %3042 = vmatprep.subr.mxu0 0.0
      %3043 = vmatpush1.msra.mxu0 %v3020
      %3044 = vmatprep.subr.mxu0 0.0
      %3045 = vmatpush1.msra.mxu0 %v3021
      %3046 = vmatprep.subr.mxu0 0.0
      %3047 = vmatpush1.msra.mxu0 %v3022
      %3048 = vmatprep.subr.mxu0 0.0
      %3049 = vmatpush1.msra.mxu0 %v3023
      %3050 = vmatprep.subr.mxu0 0.0
      %3051 = vmatpush1.msra.mxu0 %v3024
      %3052 = vmatprep.subr.mxu0 0.0
      %3053 = vmatpush1.msra.mxu0 0.0
      %3054 = vmatprep.subr.mxu0 0.0
      %3055 = vmatpush1.msra.mxu0 0.0
      %3056 = vmatprep.subr.mxu0 0.0
      %3057 = vmatpush1.msra.mxu0 0.0
      %3058 = vmatprep.subr.mxu0 0.0
      %3059 = vmatpush1.msra.mxu0 0.0
      %3060 = vmatprep.subr.mxu0 0.0
      %3061 = vmatpush1.msra.mxu0 0.0
      %3062 = vmatprep.subr.mxu0 0.0
      %3063 = vmatpush1.msra.mxu0 0.0
      %3064 = vmatprep.subr.mxu0 0.0
      %3065 = vmatpush1.msra.mxu0 0.0
      %3066 = vmatprep.subr.mxu0 0.0
      %3067 = vmatpush1.msra.mxu0 0.0
      %3068 = vmatprep.subr.mxu0 0.0
      %3069 = vmatpush1.msra.mxu0 0.0
      %3070 = vmatprep.subr.mxu0 0.0
      %3071 = vmatpush1.msra.mxu0 0.0
      %3072 = vmatprep.subr.mxu0 0.0
      %3073 = vmatpush1.msra.mxu0 0.0
      %3074 = vmatprep.subr.mxu0 0.0
      %3075 = vmatpush1.msra.mxu0 0.0
      %3076 = vmatprep.subr.mxu0 0.0
      %3077 = vmatpush1.msra.mxu0 0.0
      %3078 = vmatprep.subr.mxu0 0.0
      %3079 = vmatpush1.msra.mxu0 0.0
      %3080 = vmatprep.subr.mxu0 0.0
      %3081 = vmatpush1.msra.mxu0 0.0
      %3082 = vmatprep.subr.mxu0 0.0
      %3083 = vmatpush1.msra.mxu0 0.0
      %3084 = vmatprep.subr.mxu0 0.0
      %3085 = vmatpush1.msra.mxu0 0.0
      %3086 = vmatprep.subr.mxu0 0.0
      %3087 = vmatpush1.msra.mxu0 0.0
      %3088 = vmatprep.subr.mxu0 0.0
      %3089 = vmatpush1.msra.mxu0 0.0
      %3090 = vmatprep.subr.mxu0 0.0
      %3091 = vmatpush1.msra.mxu0 0.0
      %3092 = vmatprep.mubr.f32.mxu0 0.0
      %3093 = vmatmul.mubr.f32.gmra.mrb[0].mxu0 %v3026
      %v3094 = vpop.f32.mrb[0].mxu0
      %v3095 = vadd.f32 0.0, %v3094
      %v3096 = vpop.f32.mrb[0].mxu0
      %3097 = vdwg.mxu0
      %v3098 = vld [vmem:[%s12] sm:$0x1]
      %v3100 = vlaneseq
      %v3101 = vshrl.u32 %v3100, 7
      %v3102 = vsub.s32 0, %v3101
      %v3103 = vrot.slane %v3098, %v3102
      %v3106 = vsel %vm2613, %v2979, 0
      %3108 = vmatprep.subr.mxu0 0.0
      %3109 = vmatpush1.msra.mxu0 %v3000
      %3110 = vmatprep.subr.mxu0 0.0
      %3111 = vmatpush1.msra.mxu0 %v3001
      %3112 = vmatprep.subr.mxu0 0.0
      %3113 = vmatpush1.msra.mxu0 %v3002
      %3114 = vmatprep.subr.mxu0 0.0
      %3115 = vmatpush1.msra.mxu0 %v3003
      %3116 = vmatprep.subr.mxu0 0.0
      %3117 = vmatpush1.msra.mxu0 %v3004
      %3118 = vmatprep.subr.mxu0 0.0
      %3119 = vmatpush1.msra.mxu0 %v3005
      %3120 = vmatprep.subr.mxu0 0.0
      %3121 = vmatpush1.msra.mxu0 %v3006
      %3122 = vmatprep.subr.mxu0 0.0
      %3123 = vmatpush1.msra.mxu0 %v3007
      %3124 = vmatprep.subr.mxu0 0.0
      %3125 = vmatpush1.msra.mxu0 %v3008
      %3126 = vmatprep.subr.mxu0 0.0
      %3127 = vmatpush1.msra.mxu0 %v3009
      %3128 = vmatprep.subr.mxu0 0.0
      %3129 = vmatpush1.msra.mxu0 %v3010
      %3130 = vmatprep.subr.mxu0 0.0
      %3131 = vmatpush1.msra.mxu0 %v3011
      %3132 = vmatprep.subr.mxu0 0.0
      %3133 = vmatpush1.msra.mxu0 0.0
      %3134 = vmatprep.subr.mxu0 0.0
      %3135 = vmatpush1.msra.mxu0 0.0
      %3136 = vmatprep.subr.mxu0 0.0
      %3137 = vmatpush1.msra.mxu0 0.0
      %3138 = vmatprep.subr.mxu0 0.0
      %3139 = vmatpush1.msra.mxu0 0.0
      %3140 = vmatprep.subr.mxu0 0.0
      %3141 = vmatpush1.msra.mxu0 0.0
      %3142 = vmatprep.subr.mxu0 0.0
      %3143 = vmatpush1.msra.mxu0 0.0
      %3144 = vmatprep.subr.mxu0 0.0
      %3145 = vmatpush1.msra.mxu0 0.0
      %3146 = vmatprep.subr.mxu0 0.0
      %3147 = vmatpush1.msra.mxu0 0.0
      %3148 = vmatprep.subr.mxu0 0.0
      %3149 = vmatpush1.msra.mxu0 0.0
      %3150 = vmatprep.subr.mxu0 0.0
      %3151 = vmatpush1.msra.mxu0 0.0
      %3152 = vmatprep.subr.mxu0 0.0
      %3153 = vmatpush1.msra.mxu0 0.0
      %3154 = vmatprep.subr.mxu0 0.0
      %3155 = vmatpush1.msra.mxu0 0.0
      %3156 = vmatprep.subr.mxu0 0.0
      %3157 = vmatpush1.msra.mxu0 0.0
      %3158 = vmatprep.subr.mxu0 0.0
      %3159 = vmatpush1.msra.mxu0 0.0
      %3160 = vmatprep.subr.mxu0 0.0
      %3161 = vmatpush1.msra.mxu0 0.0
      %3162 = vmatprep.subr.mxu0 0.0
      %3163 = vmatpush1.msra.mxu0 0.0
      %3164 = vmatprep.subr.mxu0 0.0
      %3165 = vmatpush1.msra.mxu0 0.0
      %3166 = vmatprep.subr.mxu0 0.0
      %3167 = vmatpush1.msra.mxu0 0.0
      %3168 = vmatprep.subr.mxu0 0.0
      %3169 = vmatpush1.msra.mxu0 0.0
      %3170 = vmatprep.subr.mxu0 0.0
      %3171 = vmatpush1.msra.mxu0 0.0
      %3172 = vmatprep.mubr.f32.mxu0 0.0
      %3173 = vmatmul.mubr.f32.gmra.mrb[0].mxu0 %v3106
      %v3174 = vpop.f32.mrb[0].mxu0
      %v3175 = vadd.f32 %v3103, %v3174
      %v3176 = vpop.f32.mrb[0].mxu0
      %3177 = vdwg.mxu0
      %v3179 = vsel %vm2613, %v2974, 0
      %3181 = vmatprep.subr.mxu0 0.0
      %3182 = vmatpush1.msra.mxu0 %v2987
      %3183 = vmatprep.subr.mxu0 0.0
      %3184 = vmatpush1.msra.mxu0 %v2988
      %3185 = vmatprep.subr.mxu0 0.0
      %3186 = vmatpush1.msra.mxu0 %v2989
      %3187 = vmatprep.subr.mxu0 0.0
      %3188 = vmatpush1.msra.mxu0 %v2990
      %3189 = vmatprep.subr.mxu0 0.0
      %3190 = vmatpush1.msra.mxu0 %v2991
      %3191 = vmatprep.subr.mxu0 0.0
      %3192 = vmatpush1.msra.mxu0 %v2992
      %3193 = vmatprep.subr.mxu0 0.0
      %3194 = vmatpush1.msra.mxu0 %v2993
      %3195 = vmatprep.subr.mxu0 0.0
      %3196 = vmatpush1.msra.mxu0 %v2994
      %3197 = vmatprep.subr.mxu0 0.0
      %3198 = vmatpush1.msra.mxu0 %v2995
      %3199 = vmatprep.subr.mxu0 0.0
      %3200 = vmatpush1.msra.mxu0 %v2996
      %3201 = vmatprep.subr.mxu0 0.0
      %3202 = vmatpush1.msra.mxu0 %v2997
      %3203 = vmatprep.subr.mxu0 0.0
      %3204 = vmatpush1.msra.mxu0 %v2998
      %3205 = vmatprep.subr.mxu0 0.0
      %3206 = vmatpush1.msra.mxu0 0.0
      %3207 = vmatprep.subr.mxu0 0.0
      %3208 = vmatpush1.msra.mxu0 0.0
      %3209 = vmatprep.subr.mxu0 0.0
      %3210 = vmatpush1.msra.mxu0 0.0
      %3211 = vmatprep.subr.mxu0 0.0
      %3212 = vmatpush1.msra.mxu0 0.0
      %3213 = vmatprep.subr.mxu0 0.0
      %3214 = vmatpush1.msra.mxu0 0.0
      %3215 = vmatprep.subr.mxu0 0.0
      %3216 = vmatpush1.msra.mxu0 0.0
      %3217 = vmatprep.subr.mxu0 0.0
      %3218 = vmatpush1.msra.mxu0 0.0
      %3219 = vmatprep.subr.mxu0 0.0
      %3220 = vmatpush1.msra.mxu0 0.0
      %3221 = vmatprep.subr.mxu0 0.0
      %3222 = vmatpush1.msra.mxu0 0.0
      %3223 = vmatprep.subr.mxu0 0.0
      %3224 = vmatpush1.msra.mxu0 0.0
      %3225 = vmatprep.subr.mxu0 0.0
      %3226 = vmatpush1.msra.mxu0 0.0
      %3227 = vmatprep.subr.mxu0 0.0
      %3228 = vmatpush1.msra.mxu0 0.0
      %3229 = vmatprep.subr.mxu0 0.0
      %3230 = vmatpush1.msra.mxu0 0.0
      %3231 = vmatprep.subr.mxu0 0.0
      %3232 = vmatpush1.msra.mxu0 0.0
      %3233 = vmatprep.subr.mxu0 0.0
      %3234 = vmatpush1.msra.mxu0 0.0
      %3235 = vmatprep.subr.mxu0 0.0
      %3236 = vmatpush1.msra.mxu0 0.0
      %3237 = vmatprep.subr.mxu0 0.0
      %3238 = vmatpush1.msra.mxu0 0.0
      %3239 = vmatprep.subr.mxu0 0.0
      %3240 = vmatpush1.msra.mxu0 0.0
      %3241 = vmatprep.subr.mxu0 0.0
      %3242 = vmatpush1.msra.mxu0 0.0
      %3243 = vmatprep.subr.mxu0 0.0
      %3244 = vmatpush1.msra.mxu0 0.0
      %3245 = vmatprep.mubr.f32.mxu0 0.0
      %3246 = vmatmul.mubr.f32.gmra.mrb[0].mxu0 %v3179
      %v3247 = vpop.f32.mrb[0].mxu0
      %v3248 = vadd.f32 %v3095, %v3247
      %v3249 = vpop.f32.mrb[0].mxu0
      %3250 = vdwg.mxu0
      %v3251 = vadd.f32 %v3248, %v3175
      %vm3252 = vcmask 31744
      %3253 = vst.msk [vmem:[%s440] sm:$0xff] %vm3252, %v3251
      %p3254 = scmp.lt.s32.totalorder %s24, 1
      %s3255 = scalar_select %p3254, %s24, 1
      %s3256 = smul.addr %s3255, 8
      %s3257 = scalar_lea.vmem %s13, %s3256
      // Predicated region
      $region73: #{_lambda_.1} parent=71 // pred_check
        %p3258 = pneg %p320
      $region74: #{_lambda_.1} parent=71 // pred_check_branch
        %3260 = sbr.rel (%p3258) target = $region76
      $region75: #{_lambda_.1} parent=71 // pred_region
        _
      $region76: #{_lambda_.1} parent=71 // pred_fallthru
        _
    $region72: #{_lambda_.1} parent=5 // pred_fallthru
      _
    %p3261 = scmp.le.s32.totalorder 2, %s19
    // Predicated region
    $region77: #{_lambda_.1} parent=5 // pred_check
      %p3262 = pneg %p3261
    $region78: #{_lambda_.1} parent=5 // pred_check_branch
      %3264 = sbr.rel (%p3262) target = $region80
    $region79: #{_lambda_.1} parent=5 // pred_region
      %s3265 = ssub.s32 %s19, 2
      // Predicated region
      $region81: #{_lambda_.1} parent=79 // pred_check
        %p3266 = pneg %p326
      $region82: #{_lambda_.1} parent=79 // pred_check_branch
        %3268 = sbr.rel (%p3266) target = $region84
      $region83: #{_lambda_.1} parent=79 // pred_region
        %p3269 = scmp.lt.s32.totalorder %s25, 1
        %s3270 = scalar_select %p3269, %s25, 1
        %s3271 = smul.addr %s3270, 8
        %s3272 = scalar_lea.vmem %s13, %s3271
      $region84: #{_lambda_.1} parent=79 // pred_fallthru
        _
    $region80: #{_lambda_.1} parent=5 // pred_fallthru
      _
  $region6: #{_lambda_.1} parent=0 // loop_footer
    %s23 = sadd.s32 1, %s19
  $region7: #{_lambda_.1} parent=0 // loop_footer_branch
    %18 = sbr.rel target = $region3
  $region8: #{_lambda_.1} parent=0 // loop_exit
    _

</llo_original>
